<compile_context>
chip_gen: v7x
topology: tpu7x:2x2x1
jax: 0.10.0
libtpu: 0.0.40
codegen_flags: <defaults>
</compile_context>

<pallas_src>
import functools

import jax
import jax.numpy as jnp
from jax.experimental import pallas as pl
from jax.experimental.pallas import tpu as pltpu

BN_EPS = 1e-5


# --------------------------------------------------------------------------
# In-kernel helpers
# --------------------------------------------------------------------------
def _conv3x3_im2col(vals, w_ref, pad_ref, H, W, C):
    """3x3 'same' conv of one sample as a single MXU matmul.

    vals: (H, W, C) bf16 conv input.  w_ref: (9*C, Cout) bf16 ref.
    pad_ref: (H+2, W+2, C) bf16 VMEM scratch (zero halo written here).
    Returns (H*W, Cout) float32.
    """
    # Zero only the 1-wide halo (not the whole scratch), then write interior.
    zrow = jnp.zeros((1, W + 2, C), jnp.bfloat16)
    zcol = jnp.zeros((H, 1, C), jnp.bfloat16)
    pad_ref[0:1, :, :] = zrow
    pad_ref[H + 1:H + 2, :, :] = zrow
    pad_ref[1:H + 1, 0:1, :] = zcol
    pad_ref[1:H + 1, W + 1:W + 2, :] = zcol
    pad_ref[1:H + 1, 1:W + 1, :] = vals

    # im2col: 9 shifted windows read straight from the ref, concatenated along
    # channels -> one (H*W, 9*C) x (9*C, Cout) matmul on the MXU.
    cols = []
    for kh in range(3):
        for kw in range(3):
            cols.append(pad_ref[kh:kh + H, kw:kw + W, :].reshape(H * W, C))
    patch = jnp.concatenate(cols, axis=-1)                      # (H*W, 9*C) bf16
    return jnp.dot(patch, w_ref[...], preferred_element_type=jnp.float32)


def _emit_conv_out(o_f32, o_ref, st_ref, o_shape):
    """Round conv output to bf16, store it, and emit per-tile BN partials
    (per-channel sum and sum-of-squares) computed from the stored values."""
    o_bf = o_f32.astype(jnp.bfloat16)
    ov = o_bf.astype(jnp.float32)
    s = jnp.sum(ov, axis=0, keepdims=True)                      # (1, C)
    ss = jnp.sum(ov * ov, axis=0, keepdims=True)                # (1, C)
    st_ref[...] = jnp.concatenate([s, ss], axis=0).reshape(1, 2, -1)
    o_ref[...] = o_bf.reshape(o_shape)


# --------------------------------------------------------------------------
# Kernels (grid over batch; one sample per grid step)
# --------------------------------------------------------------------------
def _conv1_kernel(x_ref, w1_ref, o1_ref, st1_ref, pad_ref, *, H, W, C):
    # x_ref: (1, H, W, C) bf16
    o1 = _conv3x3_im2col(x_ref[0], w1_ref, pad_ref, H, W, C)
    _emit_conv_out(o1, o1_ref, st1_ref, (1, H, W, C))


def _conv2_kernel(o1_ref, bn1_ref, w2_ref, o2_ref, st2_ref, pad_ref, *, H, W, C):
    # bn1_ref: (4, C) f32 rows = [mean, inv_std, gamma, beta] (global stats).
    mean = bn1_ref[0:1, :]
    inv = bn1_ref[1:2, :]
    gamma = bn1_ref[2:3, :]
    beta = bn1_ref[3:4, :]
    o1 = o1_ref[0].astype(jnp.float32)                          # (H, W, C)
    h1 = jnp.maximum((o1 - mean) * inv * gamma + beta, 0.0)     # BN1 + ReLU, f32
    o2 = _conv3x3_im2col(h1.astype(jnp.bfloat16), w2_ref, pad_ref, H, W, C)
    _emit_conv_out(o2, o2_ref, st2_ref, (1, H * W, C))


def _bn2_add_relu_kernel(o2_ref, bn2_ref, x_ref, out_ref, *, H, W, C):
    # out_ref: (H, W*C) f32 -- lane-dense slab of the (N*H, W*C) output.
    mean = bn2_ref[0:1, :]
    inv = bn2_ref[1:2, :]
    gamma = bn2_ref[2:3, :]
    beta = bn2_ref[3:4, :]
    o2 = o2_ref[0].astype(jnp.float32)                          # (H*W, C)
    y = (o2 - mean) * inv * gamma + beta + x_ref[0]             # BN2 + identity
    out_ref[...] = jnp.maximum(y, 0.0).reshape(H, W * C)


# --------------------------------------------------------------------------
# Wrapper
# --------------------------------------------------------------------------
def _finalize_bn(partials, count, gamma, beta):
    """Reduce per-tile (sum, sumsq) partials -> (4, C) [mean, inv_std, g, b]."""
    s = jnp.sum(partials[:, 0, :], axis=0)
    ss = jnp.sum(partials[:, 1, :], axis=0)
    mean = s / count
    var = jnp.maximum(ss / count - mean * mean, 0.0)   # biased var; guard cancellation
    inv = jax.lax.rsqrt(var + BN_EPS)
    return jnp.stack(
        [mean, inv, gamma.astype(jnp.float32), beta.astype(jnp.float32)], axis=0)


def basic_block(x_nchw, params):
    """x_nchw: (N, C, H, W) float32.  params = (w1, g1, b1, w2, g2, b2) with
    conv weights in HWIO layout (3, 3, Cin, Cout).  stride=1, downsample=None."""
    w1, g1, b1, w2, g2, b2 = params
    N, C, H, W = x_nchw.shape
    Cout = w1.shape[-1]
    assert C == Cout, "stride=1, downsample=None requires Cin == Cout"

    # Boundary layout plumbing (would disappear entirely for an NHWC caller).
    x = jnp.transpose(x_nchw, (0, 2, 3, 1)).astype(jnp.float32)      # NHWC f32
    x_bf = x.astype(jnp.bfloat16)                                    # conv1 input
    w1r = w1.reshape(9 * C, Cout).astype(jnp.bfloat16)               # (9*Cin, Cout)
    w2r = w2.reshape(9 * Cout, Cout).astype(jnp.bfloat16)

    cp = pltpu.CompilerParams(dimension_semantics=("parallel",),
                              vmem_limit_bytes=32 * 1024 * 1024)
    count = float(N * H * W)

    # --- stage 1: conv1 + BN1 partial stats --------------------------------
    o1, st1 = pl.pallas_call(
        functools.partial(_conv1_kernel, H=H, W=W, C=C),
        grid=(N,),
        in_specs=[pl.BlockSpec((1, H, W, C), lambda n: (n, 0, 0, 0)),
                  pl.BlockSpec((9 * C, Cout), lambda n: (0, 0))],
        out_specs=[pl.BlockSpec((1, H, W, Cout), lambda n: (n, 0, 0, 0)),
                   pl.BlockSpec((1, 2, Cout), lambda n: (n, 0, 0))],
        out_shape=[jax.ShapeDtypeStruct((N, H, W, Cout), jnp.bfloat16),
                   jax.ShapeDtypeStruct((N, 2, Cout), jnp.float32)],
        scratch_shapes=[pltpu.VMEM((H + 2, W + 2, C), jnp.bfloat16)],
        compiler_params=cp,
    )(x_bf, w1r)
    bn1c = _finalize_bn(st1, count, g1, b1)                          # (4, C)

    # --- stage 2: BN1 + ReLU + conv2 + BN2 partial stats --------------------
    o2, st2 = pl.pallas_call(
        functools.partial(_conv2_kernel, H=H, W=W, C=Cout),
        grid=(N,),
        in_specs=[pl.BlockSpec((1, H, W, Cout), lambda n: (n, 0, 0, 0)),
                  pl.BlockSpec((4, Cout), lambda n: (0, 0)),
                  pl.BlockSpec((9 * Cout, Cout), lambda n: (0, 0))],
        out_specs=[pl.BlockSpec((1, H * W, Cout), lambda n: (n, 0, 0)),
                   pl.BlockSpec((1, 2, Cout), lambda n: (n, 0, 0))],
        out_shape=[jax.ShapeDtypeStruct((N, H * W, Cout), jnp.bfloat16),
                   jax.ShapeDtypeStruct((N, 2, Cout), jnp.float32)],
        scratch_shapes=[pltpu.VMEM((H + 2, W + 2, Cout), jnp.bfloat16)],
        compiler_params=cp,
    )(o1, bn1c, w2r)
    bn2c = _finalize_bn(st2, count, g2, b2)                          # (4, C)

    # --- stage 3: BN2 + identity + ReLU, lane-dense output ------------------
    out2d = pl.pallas_call(
        functools.partial(_bn2_add_relu_kernel, H=H, W=W, C=Cout),
        grid=(N,),
        in_specs=[pl.BlockSpec((1, H * W, Cout), lambda n: (n, 0, 0)),
                  pl.BlockSpec((4, Cout), lambda n: (0, 0)),
                  pl.BlockSpec((1, H * W, C), lambda n: (n, 0, 0))],
        out_specs=pl.BlockSpec((H, W * Cout), lambda n: (n, 0)),
        out_shape=jax.ShapeDtypeStruct((N * H, W * Cout), jnp.float32),
        compiler_params=cp,
    )(o2, bn2c, x.reshape(N, H * W, C))

    out = out2d.reshape(N, H, W, Cout)
    # TODO(synk): optional `downsample` submodule (stride!=1 / channel change)
    # is None in this configuration and not implemented.
    # TODO(synk): for very large spatial maps, additionally tile H with a
    # 1-row halo (Element index_map) inside each batch tile.
    return jnp.transpose(out, (0, 3, 1, 2))                          # NCHW


# --------------------------------------------------------------------------
# Plain-JAX reference (PyTorch forward, train-mode BN, f32)
# --------------------------------------------------------------------------
def reference(x_nchw, params):
    w1, g1, b1, w2, g2, b2 = params

    def conv(x, w):
        return jax.lax.conv_general_dilated(
            x, w, window_strides=(1, 1), padding=((1, 1), (1, 1)),
            dimension_numbers=("NHWC", "HWIO", "NHWC"))

    def bn(x, g, b):
        m = jnp.mean(x, axis=(0, 1, 2), keepdims=True)
        v = jnp.mean((x - m) ** 2, axis=(0, 1, 2), keepdims=True)
        return (x - m) * jax.lax.rsqrt(v + BN_EPS) * g + b

    x = jnp.transpose(x_nchw, (0, 2, 3, 1))
    o = jax.nn.relu(bn(conv(x, w1), g1, b1))
    o = bn(conv(o, w2), g2, b2) + x
    o = jax.nn.relu(o)
    return jnp.transpose(o, (0, 3, 1, 2))


if __name__ == "__main__":
    key = jax.random.PRNGKey(0)
    k_x, k_w1, k_w2 = jax.random.split(key, 3)

    N, C, H, W = 2, 4, 16, 16
    Cout = C  # in_channels == out_channels, stride=1, downsample=None

    x = jax.random.normal(k_x, (N, C, H, W), jnp.float32)

    # He-style init for the two conv weights (HWIO); BN params use PyTorch
    # defaults gamma=1, beta=0.
    w1 = jax.random.normal(k_w1, (3, 3, C, Cout), jnp.float32) * (2.0 / (C * 9)) ** 0.5
    w2 = jax.random.normal(k_w2, (3, 3, Cout, Cout), jnp.float32) * (2.0 / (Cout * 9)) ** 0.5
    g1 = jnp.ones((Cout,), jnp.float32)
    b1 = jnp.zeros((Cout,), jnp.float32)
    g2 = jnp.ones((Cout,), jnp.float32)
    b2 = jnp.zeros((Cout,), jnp.float32)
    params = (w1, g1, b1, w2, g2, b2)

    out = basic_block(x, params)
    jax.block_until_ready(out)

    ref = reference(x, params)
    assert out.shape == (N, C, H, W)
    max_err = float(jnp.max(jnp.abs(out - ref)))
    # bf16 MXU operands (f32 accumulation) -> tolerance loosened vs pure f32.
    assert jnp.allclose(out, ref, atol=5e-2, rtol=5e-2), (
        f"mismatch vs JAX reference (max abs err {max_err})")

    print("KERNEL_OK")
</pallas_src>

<mosaic_0001>
module attributes {stable_mosaic.version = 11 : i64} {
  func.func @_conv1_kernel(%arg0: i32, %arg1: memref<1x16x16x4xbf16, #tpu.memory_space<vmem>>, %arg2: memref<36x4xbf16, #tpu.memory_space<vmem>>, %arg3: memref<1x16x16x4xbf16, #tpu.memory_space<vmem>>, %arg4: memref<1x2x4xf32, #tpu.memory_space<vmem>>, %arg5: memref<18x18x4xbf16, #tpu.memory_space<vmem>>) attributes {dimension_semantics = [#tpu.dimension_semantics<parallel>], iteration_bounds = array<i64: 2>, scalar_prefetch = 0 : i64, scratch_operands = 1 : i64, tpu.core_type = #tpu.core_type<tc>, window_params = [{transform_indices = @transform_0, window_bounds = array<i64: 1, 16, 16, 4>}, {pipeline_mode = #tpu.pipeline_mode<synchronous>, transform_indices = @transform_1, window_bounds = array<i64: 36, 4>}, {transform_indices = @transform_2, window_bounds = array<i64: 1, 16, 16, 4>}, {transform_indices = @transform_3, window_bounds = array<i64: 1, 2, 4>}]} {
    %c0 = arith.constant 0 : index
    %c0_0 = arith.constant 0 : index
    %c0_1 = arith.constant 0 : index
    %c0_2 = arith.constant 0 : index
    %0 = vector.load %arg1[%c0, %c0_0, %c0_1, %c0_2] : memref<1x16x16x4xbf16, #tpu.memory_space<vmem>>, vector<1x16x16x4xbf16>
    %1 = vector.shape_cast %0 : vector<1x16x16x4xbf16> to vector<16x16x4xbf16>
    %cst = arith.constant 0.000000e+00 : bf16
    %2 = vector.broadcast %cst : bf16 to vector<1x18x4xbf16>
    %cst_3 = arith.constant 0.000000e+00 : bf16
    %3 = vector.broadcast %cst_3 : bf16 to vector<16x1x4xbf16>
    %c0_4 = arith.constant 0 : index
    %c0_5 = arith.constant 0 : index
    %c0_6 = arith.constant 0 : index
    %4 = vector.load %arg5[%c0_4, %c0_5, %c0_6] : memref<18x18x4xbf16, #tpu.memory_space<vmem>>, vector<1x18x4xbf16>
    tpu.vector_store %arg5[%c0_4, %c0_5, %c0_6], %2 {strides = array<i32>} : memref<18x18x4xbf16, #tpu.memory_space<vmem>>, vector<1x18x4xbf16>,
    %c17 = arith.constant 17 : index
    %c0_7 = arith.constant 0 : index
    %c0_8 = arith.constant 0 : index
    %5 = vector.load %arg5[%c17, %c0_7, %c0_8] : memref<18x18x4xbf16, #tpu.memory_space<vmem>>, vector<1x18x4xbf16>
    tpu.vector_store %arg5[%c17, %c0_7, %c0_8], %2 {strides = array<i32>} : memref<18x18x4xbf16, #tpu.memory_space<vmem>>, vector<1x18x4xbf16>,
    %c1 = arith.constant 1 : index
    %c0_9 = arith.constant 0 : index
    %c0_10 = arith.constant 0 : index
    %6 = vector.load %arg5[%c1, %c0_9, %c0_10] : memref<18x18x4xbf16, #tpu.memory_space<vmem>>, vector<16x1x4xbf16>
    tpu.vector_store %arg5[%c1, %c0_9, %c0_10], %3 {strides = array<i32>} : memref<18x18x4xbf16, #tpu.memory_space<vmem>>, vector<16x1x4xbf16>,
    %c1_11 = arith.constant 1 : index
    %c17_12 = arith.constant 17 : index
    %c0_13 = arith.constant 0 : index
    %7 = vector.load %arg5[%c1_11, %c17_12, %c0_13] : memref<18x18x4xbf16, #tpu.memory_space<vmem>>, vector<16x1x4xbf16>
    tpu.vector_store %arg5[%c1_11, %c17_12, %c0_13], %3 {strides = array<i32>} : memref<18x18x4xbf16, #tpu.memory_space<vmem>>, vector<16x1x4xbf16>,
    %c1_14 = arith.constant 1 : index
    %c1_15 = arith.constant 1 : index
    %c0_16 = arith.constant 0 : index
    %8 = vector.load %arg5[%c1_14, %c1_15, %c0_16] : memref<18x18x4xbf16, #tpu.memory_space<vmem>>, vector<16x16x4xbf16>
    tpu.vector_store %arg5[%c1_14, %c1_15, %c0_16], %1 {strides = array<i32>} : memref<18x18x4xbf16, #tpu.memory_space<vmem>>, vector<16x16x4xbf16>,
    %c0_17 = arith.constant 0 : index
    %c0_18 = arith.constant 0 : index
    %c0_19 = arith.constant 0 : index
    %9 = vector.load %arg5[%c0_17, %c0_18, %c0_19] : memref<18x18x4xbf16, #tpu.memory_space<vmem>>, vector<16x16x4xbf16>
    %10 = vector.shape_cast %9 : vector<16x16x4xbf16> to vector<256x4xbf16>
    %c0_20 = arith.constant 0 : index
    %c1_21 = arith.constant 1 : index
    %c0_22 = arith.constant 0 : index
    %11 = vector.load %arg5[%c0_20, %c1_21, %c0_22] : memref<18x18x4xbf16, #tpu.memory_space<vmem>>, vector<16x16x4xbf16>
    %12 = vector.shape_cast %11 : vector<16x16x4xbf16> to vector<256x4xbf16>
    %c0_23 = arith.constant 0 : index
    %c2 = arith.constant 2 : index
    %c0_24 = arith.constant 0 : index
    %13 = vector.load %arg5[%c0_23, %c2, %c0_24] : memref<18x18x4xbf16, #tpu.memory_space<vmem>>, vector<16x16x4xbf16>
    %14 = vector.shape_cast %13 : vector<16x16x4xbf16> to vector<256x4xbf16>
    %c1_25 = arith.constant 1 : index
    %c0_26 = arith.constant 0 : index
    %c0_27 = arith.constant 0 : index
    %15 = vector.load %arg5[%c1_25, %c0_26, %c0_27] : memref<18x18x4xbf16, #tpu.memory_space<vmem>>, vector<16x16x4xbf16>
    %16 = vector.shape_cast %15 : vector<16x16x4xbf16> to vector<256x4xbf16>
    %c1_28 = arith.constant 1 : index
    %c1_29 = arith.constant 1 : index
    %c0_30 = arith.constant 0 : index
    %17 = vector.load %arg5[%c1_28, %c1_29, %c0_30] : memref<18x18x4xbf16, #tpu.memory_space<vmem>>, vector<16x16x4xbf16>
    %18 = vector.shape_cast %17 : vector<16x16x4xbf16> to vector<256x4xbf16>
    %c1_31 = arith.constant 1 : index
    %c2_32 = arith.constant 2 : index
    %c0_33 = arith.constant 0 : index
    %19 = vector.load %arg5[%c1_31, %c2_32, %c0_33] : memref<18x18x4xbf16, #tpu.memory_space<vmem>>, vector<16x16x4xbf16>
    %20 = vector.shape_cast %19 : vector<16x16x4xbf16> to vector<256x4xbf16>
    %c2_34 = arith.constant 2 : index
    %c0_35 = arith.constant 0 : index
    %c0_36 = arith.constant 0 : index
    %21 = vector.load %arg5[%c2_34, %c0_35, %c0_36] : memref<18x18x4xbf16, #tpu.memory_space<vmem>>, vector<16x16x4xbf16>
    %22 = vector.shape_cast %21 : vector<16x16x4xbf16> to vector<256x4xbf16>
    %c2_37 = arith.constant 2 : index
    %c1_38 = arith.constant 1 : index
    %c0_39 = arith.constant 0 : index
    %23 = vector.load %arg5[%c2_37, %c1_38, %c0_39] : memref<18x18x4xbf16, #tpu.memory_space<vmem>>, vector<16x16x4xbf16>
    %24 = vector.shape_cast %23 : vector<16x16x4xbf16> to vector<256x4xbf16>
    %c2_40 = arith.constant 2 : index
    %c2_41 = arith.constant 2 : index
    %c0_42 = arith.constant 0 : index
    %25 = vector.load %arg5[%c2_40, %c2_41, %c0_42] : memref<18x18x4xbf16, #tpu.memory_space<vmem>>, vector<16x16x4xbf16>
    %26 = vector.shape_cast %25 : vector<16x16x4xbf16> to vector<256x4xbf16>
    %27 = tpu.concatenate %10, %12, %14, %16, %18, %20, %22, %24, %26 in 1 : vector<256x4xbf16>, vector<256x4xbf16>, vector<256x4xbf16>, vector<256x4xbf16>, vector<256x4xbf16>, vector<256x4xbf16>, vector<256x4xbf16>, vector<256x4xbf16>, vector<256x4xbf16> -> vector<256x36xbf16>
    %c0_43 = arith.constant 0 : index
    %c0_44 = arith.constant 0 : index
    %28 = vector.load %arg2[%c0_43, %c0_44] : memref<36x4xbf16, #tpu.memory_space<vmem>>, vector<36x4xbf16>
    %cst_45 = arith.constant dense<0.000000e+00> : vector<256x4xf32>
    %29 = tpu.matmul %27, %28, %cst_45 {dimension_numbers = #tpu.dot_dimension_numbers<[1], [0], [0], [1], [0, 0, 1, 1], [], []>} : vector<256x36xbf16>, vector<36x4xbf16>, vector<256x4xf32> -> vector<256x4xf32>
    %30 = arith.truncf %29 : vector<256x4xf32> to vector<256x4xbf16>
    %31 = arith.extf %30 : vector<256x4xbf16> to vector<256x4xf32>
    %cst_46 = arith.constant dense<0.000000e+00> : vector<4xf32>
    %32 = vector.multi_reduction <add>, %31, %cst_46 [0] : vector<256x4xf32> to vector<4xf32>
    %33 = vector.shape_cast %32 : vector<4xf32> to vector<1x4xf32>
    %34 = arith.mulf %31, %31 : vector<256x4xf32>
    %cst_47 = arith.constant dense<0.000000e+00> : vector<4xf32>
    %35 = vector.multi_reduction <add>, %34, %cst_47 [0] : vector<256x4xf32> to vector<4xf32>
    %36 = vector.shape_cast %35 : vector<4xf32> to vector<1x4xf32>
    %37 = tpu.concatenate %33, %36 in 0 : vector<1x4xf32>, vector<1x4xf32> -> vector<2x4xf32>
    %38 = vector.shape_cast %37 : vector<2x4xf32> to vector<1x2x4xf32>
    %c0_48 = arith.constant 0 : index
    %c0_49 = arith.constant 0 : index
    %c0_50 = arith.constant 0 : index
    %39 = vector.load %arg4[%c0_48, %c0_49, %c0_50] : memref<1x2x4xf32, #tpu.memory_space<vmem>>, vector<1x2x4xf32>
    tpu.vector_store %arg4[%c0_48, %c0_49, %c0_50], %38 {strides = array<i32>} : memref<1x2x4xf32, #tpu.memory_space<vmem>>, vector<1x2x4xf32>,
    %40 = vector.shape_cast %30 : vector<256x4xbf16> to vector<1x16x16x4xbf16>
    %c0_51 = arith.constant 0 : index
    %c0_52 = arith.constant 0 : index
    %c0_53 = arith.constant 0 : index
    %c0_54 = arith.constant 0 : index
    %41 = vector.load %arg3[%c0_51, %c0_52, %c0_53, %c0_54] : memref<1x16x16x4xbf16, #tpu.memory_space<vmem>>, vector<1x16x16x4xbf16>
    tpu.vector_store %arg3[%c0_51, %c0_52, %c0_53, %c0_54], %40 {strides = array<i32>} : memref<1x16x16x4xbf16, #tpu.memory_space<vmem>>, vector<1x16x16x4xbf16>,
    return
  }
  func.func @transform_0(%arg0: i32) -> (i32, i32, i32, i32) {
    %c0_i32 = arith.constant 0 : i32
    %c0_i32_0 = arith.constant 0 : i32
    %c0_i32_1 = arith.constant 0 : i32
    %c0_i32_2 = arith.constant 0 : i32
    return %arg0, %c0_i32, %c0_i32_0, %c0_i32_1 : i32, i32, i32, i32
  }
  func.func @transform_1(%arg0: i32) -> (i32, i32) {
    %c0_i32 = arith.constant 0 : i32
    %c0_i32_0 = arith.constant 0 : i32
    %c0_i32_1 = arith.constant 0 : i32
    return %c0_i32, %c0_i32_0 : i32, i32
  }
  func.func @transform_2(%arg0: i32) -> (i32, i32, i32, i32) {
    %c0_i32 = arith.constant 0 : i32
    %c0_i32_0 = arith.constant 0 : i32
    %c0_i32_1 = arith.constant 0 : i32
    %c0_i32_2 = arith.constant 0 : i32
    return %arg0, %c0_i32, %c0_i32_0, %c0_i32_1 : i32, i32, i32, i32
  }
  func.func @transform_3(%arg0: i32) -> (i32, i32, i32) {
    %c0_i32 = arith.constant 0 : i32
    %c0_i32_0 = arith.constant 0 : i32
    %c0_i32_1 = arith.constant 0 : i32
    return %arg0, %c0_i32, %c0_i32_0 : i32, i32, i32
  }
}

</mosaic_0001>

<llo_original>
// kernel: tpu_custom_call.1
$region0: #{tpu_custom_call.1}
  #allocation0 [shape = 'u32[]', space=smem, size = 0x4, offset = 0x4, fixed_abs, tag = 'smem constant byte address 0x4 - core index']
  #allocation1 [shape = 'u32[144,128]{1,0:T(1,128)}', space=vmem, size = 0x12000, scoped, tag = 'internal scratch']
  #allocation2 [shape = 'bf16[18,18,4]{2,1,0:T(8,128)(2,1)}', space=vmem, size = 0x1b000, scoped, tag = 'scratch operand']
  %s0 = inlined_call_operand.vmem [shape: bf16[2,16,16,4], index: 0, kind: input, shape index: {}]
  %s1 = inlined_call_operand.vmem [shape: bf16[36,4], index: 1, kind: input, shape index: {}]
  %s2 = inlined_call_operand.vmem [shape: bf16[2,16,16,4], index: 2, kind: output, shape index: {0}]
  %s3 = inlined_call_operand.hbm [shape: f32[2,2,4], index: 3, kind: output, shape index: {1}]
  %4 = xla_tuple %s2, %s3
  %s5 = sld [smem:[#allocation0]]
  $region49: #{tpu_custom_call.1} parent=0
    _
  %s7 = ssub.s32 1, %s5
  %s8 = scalar_select 0, %s7, %s5
  $region1: #{tpu_custom_call.1} parent=0
    #allocation3 [shape = 'u8[2048]{0}', space=vmem, size = 0x800, scoped, tag = 'output window, operand 1']
    #allocation4 [shape = 's32[2]{0}', space=sflag, size = 0x8, scoped, tag = 'scoped memory for tpu_custom_call.1']
    %9 = vsyncpa [#allocation4], 0
    %s10 = scalar_lea.sflag [#allocation4], 1
    %11 = vsyncpa %s10, 0
    loop: start=0, step=1, limit=4
    $region2: #{tpu_custom_call.1} parent=1 // loop_pre_header
      _
    $region3: #{tpu_custom_call.1} parent=1 // loop_header
      %s13 = sphi 0, %s17
      %p14 = scmp.ge.s32.totalorder %s13, 4
      %s23 = sphi 0, %s25
      %s26 = sphi 0, %s23
      %s27 = sphi 0, %s26
      %s43 = sphi 0, %s27
      %s47 = sphi 0, %s47
      %s49 = sphi 0, %s47
      %s50 = sphi 0, %s49
      %s64 = sphi 0, %s50
      %s70 = sphi 0, %s72
      %s73 = sphi 0, %s70
      %s74 = sphi 0, %s73
      %s90 = sphi 0, %s74
      %s96 = sphi 0, %s98
      %s99 = sphi 0, %s96
      %s100 = sphi 0, %s99
      %s116 = sphi 0, %s100
    $region4: #{tpu_custom_call.1} parent=1 // loop_header_branch
      %16 = sbr.rel (%p14) target = $region8
    $region5: #{tpu_custom_call.1} parent=1 // loop_body
      %s18 = ssub.s32 %s13, 1
      %s19 = ssub.s32 %s13, 2
      %s20 = sadd.s32 %s13, 1
      %s21 = ssub.s32 %s13, %s20
      %p22 = scmp.eq.s32.totalorder %s21, 0
      %s24 = sadd.s32 %s23, 1
      %s25 = scalar_select %p22, %s23, %s24
      %p28 = pneg %p22
      %p29 = scmp.eq.s32.totalorder %s13, 1
      %p30 = por %p28, %p29
      %p31 = scmp.ne.s32.totalorder %s23, %s26
      %p32 = scmp.eq.s32.totalorder %s13, 0
      %p33 = por %p31, %p32
      %p34 = scmp.ne.s32.totalorder %s23, %s26
      %p35 = scmp.eq.s32.totalorder %s18, 1
      %p36 = por %p34, %p35
      %p37 = scmp.ne.s32.totalorder %s26, %s27
      %p38 = scmp.eq.s32.totalorder %s18, 0
      %p39 = por %p37, %p38
      %p40 = scmp.ne.s32.totalorder %s26, %s27
      %p41 = scmp.eq.s32.totalorder %s19, 1
      %p42 = por %p40, %p41
      %p44 = scmp.ne.s32.totalorder %s27, %s43
      %p45 = scmp.eq.s32.totalorder %s19, 0
      %p46 = por %p44, %p45
      %s48 = sadd.s32 %s47, 1
      %p51 = scmp.eq.s32.totalorder %s13, 1
      %p52 = scmp.ne.s32.totalorder %s47, %s49
      %p53 = scmp.eq.s32.totalorder %s13, 0
      %p54 = por %p52, %p53
      %p55 = scmp.ne.s32.totalorder %s47, %s49
      %p56 = scmp.eq.s32.totalorder %s18, 1
      %p57 = por %p55, %p56
      %p58 = scmp.ne.s32.totalorder %s49, %s50
      %p59 = scmp.eq.s32.totalorder %s18, 0
      %p60 = por %p58, %p59
      %p61 = scmp.ne.s32.totalorder %s49, %s50
      %p62 = scmp.eq.s32.totalorder %s19, 1
      %p63 = por %p61, %p62
      %p65 = scmp.ne.s32.totalorder %s50, %s64
      %p66 = scmp.eq.s32.totalorder %s19, 0
      %p67 = por %p65, %p66
      %s68 = ssub.s32 %s13, %s20
      %p69 = scmp.eq.s32.totalorder %s68, 0
      %s71 = sadd.s32 %s70, 1
      %s72 = scalar_select %p69, %s70, %s71
      %p75 = pneg %p69
      %p76 = scmp.eq.s32.totalorder %s13, 1
      %p77 = por %p75, %p76
      %p78 = scmp.ne.s32.totalorder %s70, %s73
      %p79 = scmp.eq.s32.totalorder %s13, 0
      %p80 = por %p78, %p79
      %p81 = scmp.ne.s32.totalorder %s70, %s73
      %p82 = scmp.eq.s32.totalorder %s18, 1
      %p83 = por %p81, %p82
      %p84 = scmp.ne.s32.totalorder %s73, %s74
      %p85 = scmp.eq.s32.totalorder %s18, 0
      %p86 = por %p84, %p85
      %p87 = scmp.ne.s32.totalorder %s73, %s74
      %p88 = scmp.eq.s32.totalorder %s19, 1
      %p89 = por %p87, %p88
      %p91 = scmp.ne.s32.totalorder %s74, %s90
      %p92 = scmp.eq.s32.totalorder %s19, 0
      %p93 = por %p91, %p92
      %s94 = ssub.s32 %s13, %s20
      %p95 = scmp.eq.s32.totalorder %s94, 0
      %s97 = sadd.s32 %s96, 1
      %s98 = scalar_select %p95, %s96, %s97
      %p101 = pneg %p95
      %p102 = scmp.eq.s32.totalorder %s13, 1
      %p103 = por %p101, %p102
      %p104 = scmp.ne.s32.totalorder %s96, %s99
      %p105 = scmp.eq.s32.totalorder %s13, 0
      %p106 = por %p104, %p105
      %p107 = scmp.ne.s32.totalorder %s96, %s99
      %p108 = scmp.eq.s32.totalorder %s18, 1
      %p109 = por %p107, %p108
      %p110 = scmp.ne.s32.totalorder %s99, %s100
      %p111 = scmp.eq.s32.totalorder %s18, 0
      %p112 = por %p110, %p111
      %p113 = scmp.ne.s32.totalorder %s99, %s100
      %p114 = scmp.eq.s32.totalorder %s19, 1
      %p115 = por %p113, %p114
      %p117 = scmp.ne.s32.totalorder %s100, %s116
      %p118 = scmp.eq.s32.totalorder %s19, 0
      %p119 = por %p117, %p118
      %p120 = scmp.le.s32.totalorder 1, %s13
      %p121 = scmp.lt.s32.totalorder %s13, 3
      %p122 = pnand %p120, %p121
      %p123 = pneg %p122
      // Predicated region
      $region9: #{tpu_custom_call.1} parent=5 // pred_check
        _
      $region10: #{tpu_custom_call.1} parent=5 // pred_check_branch
        %125 = sbr.rel (%p122) target = $region12
      $region11: #{tpu_custom_call.1} parent=5 // pred_region
        %s126 = ssub.s32 %s13, 1
        // Predicated region
        $region13: #{tpu_custom_call.1} parent=11 // pred_check
          %p127 = pneg %p60
        $region14: #{tpu_custom_call.1} parent=11 // pred_check_branch
          %129 = sbr.rel (%p127) target = $region16
        $region15: #{tpu_custom_call.1} parent=11 // pred_region
          _
        $region16: #{tpu_custom_call.1} parent=11 // pred_fallthru
          _
      $region12: #{tpu_custom_call.1} parent=5 // pred_fallthru
        _
      %p130 = scmp.lt.s32.totalorder %s13, 2
      // Predicated region
      $region17: #{tpu_custom_call.1} parent=5 // pred_check
        %p131 = pneg %p130
      $region18: #{tpu_custom_call.1} parent=5 // pred_check_branch
        %133 = sbr.rel (%p131) target = $region20
      $region19: #{tpu_custom_call.1} parent=5 // pred_region
        // Predicated region
        $region21: #{tpu_custom_call.1} parent=19 // pred_check
          %p134 = pneg %p33
        $region22: #{tpu_custom_call.1} parent=19 // pred_check_branch
          %136 = sbr.rel (%p134) target = $region24
        $region23: #{tpu_custom_call.1} parent=19 // pred_region
          %p137 = scmp.lt.s32.totalorder %s13, 1
          %s138 = scalar_select %p137, %s13, 1
          %s139 = smul.addr %s138, 32
          %s140 = smul.addr %s139, 4
          %s141 = scalar_lea.vmem %s0, %s140
        $region24: #{tpu_custom_call.1} parent=19 // pred_fallthru
          _
      $region20: #{tpu_custom_call.1} parent=5 // pred_fallthru
        _
      %p142 = scmp.le.s32.totalorder 1, %s13
      %p143 = scmp.lt.s32.totalorder %s13, 3
      %p144 = pnand %p142, %p143
      %p145 = pneg %p144
      // Predicated region
      $region25: #{tpu_custom_call.1} parent=5 // pred_check
        _
      $region26: #{tpu_custom_call.1} parent=5 // pred_check_branch
        %147 = sbr.rel (%p144) target = $region28
      $region27: #{tpu_custom_call.1} parent=5 // pred_region
        %s148 = ssub.s32 %s13, 1
        %p149 = scmp.lt.s32.totalorder %s18, 1
        %s150 = scalar_select %p149, %s18, 1
        %s151 = smul.addr %s150, 32
        %s152 = smul.addr %s151, 4
        %s153 = scalar_lea.vmem %s0, %s152
        %p154 = pneg %p39
        %p155 = pneg %p36
        %p156 = pneg %p60
        %p157 = pneg %p57
        %p158 = pneg %p86
        %p159 = pneg %p83
        %p160 = scmp.lt.s32.totalorder %s18, 1
        %s161 = scalar_select %p160, %s18, 1
        %s162 = smul.addr %s161, 32
        %s163 = smul.addr %s162, 4
        %s164 = scalar_lea.vmem %s2, %s163
        %p165 = pneg %p112
        %p166 = pneg %p109
        %s167 = sand.u32 %s99, 1
        %s168 = scalar_lea.sflag [#allocation4], %s167
        %s169 = sand.u32 %s99, 1
        %s170 = smul.addr %s169, 2
        %s171 = scalar_lea.vmem [#allocation3], %s170
        %p172 = scmp.lt.s32.totalorder %s18, 1
        %s173 = scalar_select %p172, %s18, 1
        %s174 = smul.addr %s173, 32
        %s175 = smul.addr %s174, 4
        %s176 = scalar_lea.vmem %s0, %s175
        %p177 = scmp.lt.s32.totalorder %s18, 1
        %s178 = scalar_select %p177, %s18, 1
        %s179 = smul.addr %s178, 32
        %s180 = smul.addr %s179, 4
        %s181 = scalar_lea.vmem %s2, %s180
        %v183 = vld [vmem:[%s176] sm:$0xf]
        %v184 = vld [vmem:[%s176 + $0x4] sm:$0xf]
        %v185 = vld [vmem:[%s176 + $0x8] sm:$0xf]
        %v186 = vld [vmem:[%s176 + $0xc] sm:$0xf]
        %v187 = vld [vmem:[%s176 + $0x10] sm:$0xf]
        %v188 = vld [vmem:[%s176 + $0x14] sm:$0xf]
        %v189 = vld [vmem:[%s176 + $0x18] sm:$0xf]
        %v190 = vld [vmem:[%s176 + $0x1c] sm:$0xf]
        %v191 = vld [vmem:[%s176 + $0x20] sm:$0xf]
        %v192 = vld [vmem:[%s176 + $0x24] sm:$0xf]
        %v193 = vld [vmem:[%s176 + $0x28] sm:$0xf]
        %v194 = vld [vmem:[%s176 + $0x2c] sm:$0xf]
        %v195 = vld [vmem:[%s176 + $0x30] sm:$0xf]
        %v196 = vld [vmem:[%s176 + $0x34] sm:$0xf]
        %v197 = vld [vmem:[%s176 + $0x38] sm:$0xf]
        %v198 = vld [vmem:[%s176 + $0x3c] sm:$0xf]
        %v199 = vld [vmem:[%s176 + $0x40] sm:$0xf]
        %v200 = vld [vmem:[%s176 + $0x44] sm:$0xf]
        %v201 = vld [vmem:[%s176 + $0x48] sm:$0xf]
        %v202 = vld [vmem:[%s176 + $0x4c] sm:$0xf]
        %v203 = vld [vmem:[%s176 + $0x50] sm:$0xf]
        %v204 = vld [vmem:[%s176 + $0x54] sm:$0xf]
        %v205 = vld [vmem:[%s176 + $0x58] sm:$0xf]
        %v206 = vld [vmem:[%s176 + $0x5c] sm:$0xf]
        %v207 = vld [vmem:[%s176 + $0x60] sm:$0xf]
        %v208 = vld [vmem:[%s176 + $0x64] sm:$0xf]
        %v209 = vld [vmem:[%s176 + $0x68] sm:$0xf]
        %v210 = vld [vmem:[%s176 + $0x6c] sm:$0xf]
        %v211 = vld [vmem:[%s176 + $0x70] sm:$0xf]
        %v212 = vld [vmem:[%s176 + $0x74] sm:$0xf]
        %v213 = vld [vmem:[%s176 + $0x78] sm:$0xf]
        %v214 = vld [vmem:[%s176 + $0x7c] sm:$0xf]
        %vm215 = vcmask 27648
        %216 = vst.msk [vmem:[#allocation2] sm:$0xf] %vm215, 0
        %217 = vst.msk [vmem:[#allocation2 + $0x4] sm:$0xf] %vm215, 0
        %vm218 = vcmask 24576
        %219 = vst.msk [vmem:[#allocation2 + $0x8] sm:$0x1] %vm218, 0
        %s220 = scalar_lea.vmem [#allocation2], 204
        %221 = vst.msk [vmem:[%s220] sm:$0xf] %vm215, 0
        %222 = vst.msk [vmem:[%s220 + $0x4] sm:$0xf] %vm215, 0
        %223 = vst.msk [vmem:[%s220 + $0x8] sm:$0x1] %vm218, 0
        %s224 = scalar_lea.vmem [#allocation2], 12
        %vm225 = vcmask 24576
        %vm226 = vsmask.f32 256
        %vm227 = vmand %vm225, %vm226
        %v228 = vld [vmem:[%s224] sm:$0x1]
        %v229 = vsel %vm227, 0, %v228
        %230 = vst [vmem:[%s224] sm:$0x1] %v229
        %v231 = vld [vmem:[%s224 + $0xc] sm:$0x1]
        %v232 = vsel %vm227, 0, %v231
        %233 = vst [vmem:[%s224 + $0xc] sm:$0x1] %v232
        %v234 = vld [vmem:[%s224 + $0x18] sm:$0x1]
        %v235 = vsel %vm227, 0, %v234
        %236 = vst [vmem:[%s224 + $0x18] sm:$0x1] %v235
        %v237 = vld [vmem:[%s224 + $0x24] sm:$0x1]
        %v238 = vsel %vm227, 0, %v237
        %239 = vst [vmem:[%s224 + $0x24] sm:$0x1] %v238
        %v240 = vld [vmem:[%s224 + $0x30] sm:$0x1]
        %v241 = vsel %vm227, 0, %v240
        %242 = vst [vmem:[%s224 + $0x30] sm:$0x1] %v241
        %v243 = vld [vmem:[%s224 + $0x3c] sm:$0x1]
        %v244 = vsel %vm227, 0, %v243
        %245 = vst [vmem:[%s224 + $0x3c] sm:$0x1] %v244
        %v246 = vld [vmem:[%s224 + $0x48] sm:$0x1]
        %v247 = vsel %vm227, 0, %v246
        %248 = vst [vmem:[%s224 + $0x48] sm:$0x1] %v247
        %v249 = vld [vmem:[%s224 + $0x54] sm:$0x1]
        %v250 = vsel %vm227, 0, %v249
        %251 = vst [vmem:[%s224 + $0x54] sm:$0x1] %v250
        %v252 = vld [vmem:[%s224 + $0x60] sm:$0x1]
        %v253 = vsel %vm227, 0, %v252
        %254 = vst [vmem:[%s224 + $0x60] sm:$0x1] %v253
        %v255 = vld [vmem:[%s224 + $0x6c] sm:$0x1]
        %v256 = vsel %vm227, 0, %v255
        %257 = vst [vmem:[%s224 + $0x6c] sm:$0x1] %v256
        %v258 = vld [vmem:[%s224 + $0x78] sm:$0x1]
        %v259 = vsel %vm227, 0, %v258
        %260 = vst [vmem:[%s224 + $0x78] sm:$0x1] %v259
        %v261 = vld [vmem:[%s224 + $0x84] sm:$0x1]
        %v262 = vsel %vm227, 0, %v261
        %263 = vst [vmem:[%s224 + $0x84] sm:$0x1] %v262
        %v264 = vld [vmem:[%s224 + $0x90] sm:$0x1]
        %v265 = vsel %vm227, 0, %v264
        %266 = vst [vmem:[%s224 + $0x90] sm:$0x1] %v265
        %v267 = vld [vmem:[%s224 + $0x9c] sm:$0x1]
        %v268 = vsel %vm227, 0, %v267
        %269 = vst [vmem:[%s224 + $0x9c] sm:$0x1] %v268
        %v270 = vld [vmem:[%s224 + $0xa8] sm:$0x1]
        %v271 = vsel %vm227, 0, %v270
        %272 = vst [vmem:[%s224 + $0xa8] sm:$0x1] %v271
        %v273 = vld [vmem:[%s224 + $0xb4] sm:$0x1]
        %v274 = vsel %vm227, 0, %v273
        %275 = vst [vmem:[%s224 + $0xb4] sm:$0x1] %v274
        %vm276 = vsmask.f32 7938
        %vm277 = vmand %vm225, %vm276
        %v278 = vld [vmem:[%s224 + $0x8] sm:$0x1]
        %v279 = vsel %vm277, 0, %v278
        %280 = vst [vmem:[%s224 + $0x8] sm:$0x1] %v279
        %v281 = vld [vmem:[%s224 + $0x14] sm:$0x1]
        %v282 = vsel %vm277, 0, %v281
        %283 = vst [vmem:[%s224 + $0x14] sm:$0x1] %v282
        %v284 = vld [vmem:[%s224 + $0x20] sm:$0x1]
        %v285 = vsel %vm277, 0, %v284
        %286 = vst [vmem:[%s224 + $0x20] sm:$0x1] %v285
        %v287 = vld [vmem:[%s224 + $0x2c] sm:$0x1]
        %v288 = vsel %vm277, 0, %v287
        %289 = vst [vmem:[%s224 + $0x2c] sm:$0x1] %v288
        %v290 = vld [vmem:[%s224 + $0x38] sm:$0x1]
        %v291 = vsel %vm277, 0, %v290
        %292 = vst [vmem:[%s224 + $0x38] sm:$0x1] %v291
        %v293 = vld [vmem:[%s224 + $0x44] sm:$0x1]
        %v294 = vsel %vm277, 0, %v293
        %295 = vst [vmem:[%s224 + $0x44] sm:$0x1] %v294
        %v296 = vld [vmem:[%s224 + $0x50] sm:$0x1]
        %v297 = vsel %vm277, 0, %v296
        %298 = vst [vmem:[%s224 + $0x50] sm:$0x1] %v297
        %v299 = vld [vmem:[%s224 + $0x5c] sm:$0x1]
        %v300 = vsel %vm277, 0, %v299
        %301 = vst [vmem:[%s224 + $0x5c] sm:$0x1] %v300
        %v302 = vld [vmem:[%s224 + $0x68] sm:$0x1]
        %v303 = vsel %vm277, 0, %v302
        %304 = vst [vmem:[%s224 + $0x68] sm:$0x1] %v303
        %v305 = vld [vmem:[%s224 + $0x74] sm:$0x1]
        %v306 = vsel %vm277, 0, %v305
        %307 = vst [vmem:[%s224 + $0x74] sm:$0x1] %v306
        %v308 = vld [vmem:[%s224 + $0x80] sm:$0x1]
        %v309 = vsel %vm277, 0, %v308
        %310 = vst [vmem:[%s224 + $0x80] sm:$0x1] %v309
        %v311 = vld [vmem:[%s224 + $0x8c] sm:$0x1]
        %v312 = vsel %vm277, 0, %v311
        %313 = vst [vmem:[%s224 + $0x8c] sm:$0x1] %v312
        %v314 = vld [vmem:[%s224 + $0x98] sm:$0x1]
        %v315 = vsel %vm277, 0, %v314
        %316 = vst [vmem:[%s224 + $0x98] sm:$0x1] %v315
        %v317 = vld [vmem:[%s224 + $0xa4] sm:$0x1]
        %v318 = vsel %vm277, 0, %v317
        %319 = vst [vmem:[%s224 + $0xa4] sm:$0x1] %v318
        %v320 = vld [vmem:[%s224 + $0xb0] sm:$0x1]
        %v321 = vsel %vm277, 0, %v320
        %322 = vst [vmem:[%s224 + $0xb0] sm:$0x1] %v321
        %v323 = vld [vmem:[%s224 + $0xbc] sm:$0x1]
        %v324 = vsel %vm277, 0, %v323
        %325 = vst [vmem:[%s224 + $0xbc] sm:$0x1] %v324
        %vm326 = vsmask.f32 4368
        %vm327 = vmor %vm226, %vm326
        %v329 = vshrl.u32 %v183, 16
        %v331 = vrot.slane %v329, 7
        %v332 = vshll.u32 %v183, 16
        %v334 = vor.u32 %v331, %v332
        %v335 = vrot.slane %v331, 4
        %v337 = vshrl.u32 %v184, 16
        %v339 = vrot.slane %v337, 7
        %v340 = vshll.u32 %v184, 16
        %v342 = vor.u32 %v339, %v340
        %v343 = vsel %vm327, %v335, %v342
        %v344 = vrot.slane %v339, 4
        %v346 = vshrl.u32 %v185, 16
        %v348 = vrot.slane %v346, 7
        %v349 = vshll.u32 %v185, 16
        %v351 = vor.u32 %v348, %v349
        %v352 = vrot.slane %v348, 4
        %v354 = vshrl.u32 %v186, 16
        %v356 = vrot.slane %v354, 7
        %v357 = vshll.u32 %v186, 16
        %v359 = vor.u32 %v356, %v357
        %v360 = vsel %vm327, %v352, %v359
        %v361 = vrot.slane %v356, 4
        %v363 = vshrl.u32 %v187, 16
        %v365 = vrot.slane %v363, 7
        %v366 = vshll.u32 %v187, 16
        %v368 = vor.u32 %v365, %v366
        %v369 = vrot.slane %v365, 4
        %v371 = vshrl.u32 %v188, 16
        %v373 = vrot.slane %v371, 7
        %v374 = vshll.u32 %v188, 16
        %v376 = vor.u32 %v373, %v374
        %v377 = vsel %vm327, %v369, %v376
        %v378 = vrot.slane %v373, 4
        %v380 = vshrl.u32 %v189, 16
        %v382 = vrot.slane %v380, 7
        %v383 = vshll.u32 %v189, 16
        %v385 = vor.u32 %v382, %v383
        %v386 = vrot.slane %v382, 4
        %v388 = vshrl.u32 %v190, 16
        %v390 = vrot.slane %v388, 7
        %v391 = vshll.u32 %v190, 16
        %v393 = vor.u32 %v390, %v391
        %v394 = vsel %vm327, %v386, %v393
        %v395 = vrot.slane %v390, 4
        %v397 = vshrl.u32 %v191, 16
        %v399 = vrot.slane %v397, 7
        %v400 = vshll.u32 %v191, 16
        %v402 = vor.u32 %v399, %v400
        %v403 = vrot.slane %v399, 4
        %v405 = vshrl.u32 %v192, 16
        %v407 = vrot.slane %v405, 7
        %v408 = vshll.u32 %v192, 16
        %v410 = vor.u32 %v407, %v408
        %v411 = vsel %vm327, %v403, %v410
        %v412 = vrot.slane %v407, 4
        %v414 = vshrl.u32 %v193, 16
        %v416 = vrot.slane %v414, 7
        %v417 = vshll.u32 %v193, 16
        %v419 = vor.u32 %v416, %v417
        %v420 = vrot.slane %v416, 4
        %v422 = vshrl.u32 %v194, 16
        %v424 = vrot.slane %v422, 7
        %v425 = vshll.u32 %v194, 16
        %v427 = vor.u32 %v424, %v425
        %v428 = vsel %vm327, %v420, %v427
        %v429 = vrot.slane %v424, 4
        %v431 = vshrl.u32 %v195, 16
        %v433 = vrot.slane %v431, 7
        %v434 = vshll.u32 %v195, 16
        %v436 = vor.u32 %v433, %v434
        %v437 = vrot.slane %v433, 4
        %v439 = vshrl.u32 %v196, 16
        %v441 = vrot.slane %v439, 7
        %v442 = vshll.u32 %v196, 16
        %v444 = vor.u32 %v441, %v442
        %v445 = vsel %vm327, %v437, %v444
        %v446 = vrot.slane %v441, 4
        %v448 = vshrl.u32 %v197, 16
        %v450 = vrot.slane %v448, 7
        %v451 = vshll.u32 %v197, 16
        %v453 = vor.u32 %v450, %v451
        %v454 = vrot.slane %v450, 4
        %v456 = vshrl.u32 %v198, 16
        %v458 = vrot.slane %v456, 7
        %v459 = vshll.u32 %v198, 16
        %v461 = vor.u32 %v458, %v459
        %v462 = vsel %vm327, %v454, %v461
        %v463 = vrot.slane %v458, 4
        %v465 = vshrl.u32 %v199, 16
        %v467 = vrot.slane %v465, 7
        %v468 = vshll.u32 %v199, 16
        %v470 = vor.u32 %v467, %v468
        %v471 = vrot.slane %v467, 4
        %v473 = vshrl.u32 %v200, 16
        %v475 = vrot.slane %v473, 7
        %v476 = vshll.u32 %v200, 16
        %v478 = vor.u32 %v475, %v476
        %v479 = vsel %vm327, %v471, %v478
        %v480 = vrot.slane %v475, 4
        %v482 = vshrl.u32 %v201, 16
        %v484 = vrot.slane %v482, 7
        %v485 = vshll.u32 %v201, 16
        %v487 = vor.u32 %v484, %v485
        %v488 = vrot.slane %v484, 4
        %v490 = vshrl.u32 %v202, 16
        %v492 = vrot.slane %v490, 7
        %v493 = vshll.u32 %v202, 16
        %v495 = vor.u32 %v492, %v493
        %v496 = vsel %vm327, %v488, %v495
        %v497 = vrot.slane %v492, 4
        %v499 = vshrl.u32 %v203, 16
        %v501 = vrot.slane %v499, 7
        %v502 = vshll.u32 %v203, 16
        %v504 = vor.u32 %v501, %v502
        %v505 = vrot.slane %v501, 4
        %v507 = vshrl.u32 %v204, 16
        %v509 = vrot.slane %v507, 7
        %v510 = vshll.u32 %v204, 16
        %v512 = vor.u32 %v509, %v510
        %v513 = vsel %vm327, %v505, %v512
        %v514 = vrot.slane %v509, 4
        %v516 = vshrl.u32 %v205, 16
        %v518 = vrot.slane %v516, 7
        %v519 = vshll.u32 %v205, 16
        %v521 = vor.u32 %v518, %v519
        %v522 = vrot.slane %v518, 4
        %v524 = vshrl.u32 %v206, 16
        %v526 = vrot.slane %v524, 7
        %v527 = vshll.u32 %v206, 16
        %v529 = vor.u32 %v526, %v527
        %v530 = vsel %vm327, %v522, %v529
        %v531 = vrot.slane %v526, 4
        %v533 = vshrl.u32 %v207, 16
        %v535 = vrot.slane %v533, 7
        %v536 = vshll.u32 %v207, 16
        %v538 = vor.u32 %v535, %v536
        %v539 = vrot.slane %v535, 4
        %v541 = vshrl.u32 %v208, 16
        %v543 = vrot.slane %v541, 7
        %v544 = vshll.u32 %v208, 16
        %v546 = vor.u32 %v543, %v544
        %v547 = vsel %vm327, %v539, %v546
        %v548 = vrot.slane %v543, 4
        %v550 = vshrl.u32 %v209, 16
        %v552 = vrot.slane %v550, 7
        %v553 = vshll.u32 %v209, 16
        %v555 = vor.u32 %v552, %v553
        %v556 = vrot.slane %v552, 4
        %v558 = vshrl.u32 %v210, 16
        %v560 = vrot.slane %v558, 7
        %v561 = vshll.u32 %v210, 16
        %v563 = vor.u32 %v560, %v561
        %v564 = vsel %vm327, %v556, %v563
        %v565 = vrot.slane %v560, 4
        %v567 = vshrl.u32 %v211, 16
        %v569 = vrot.slane %v567, 7
        %v570 = vshll.u32 %v211, 16
        %v572 = vor.u32 %v569, %v570
        %v573 = vrot.slane %v569, 4
        %v575 = vshrl.u32 %v212, 16
        %v577 = vrot.slane %v575, 7
        %v578 = vshll.u32 %v212, 16
        %v580 = vor.u32 %v577, %v578
        %v581 = vsel %vm327, %v573, %v580
        %v582 = vrot.slane %v577, 4
        %v584 = vshrl.u32 %v213, 16
        %v586 = vrot.slane %v584, 7
        %v587 = vshll.u32 %v213, 16
        %v589 = vor.u32 %v586, %v587
        %v590 = vrot.slane %v586, 4
        %v592 = vshrl.u32 %v214, 16
        %v594 = vrot.slane %v592, 7
        %v595 = vshll.u32 %v214, 16
        %v597 = vor.u32 %v594, %v595
        %v598 = vsel %vm327, %v590, %v597
        %v599 = vrot.slane %v594, 4
        %vm648 = vcmask 27648
        %vm649 = vmand %vm648, %vm276
        %v650 = vld [vmem:[%s224] sm:$0xf]
        %v651 = vsel %vm649, %v334, %v650
        %652 = vst [vmem:[%s224] sm:$0xf] %v651
        %653 = vst.msk [vmem:[%s224 + $0x4] sm:$0xf] %vm215, %v343
        %v654 = vld [vmem:[%s224 + $0x8] sm:$0x1]
        %v655 = vsel %vm227, %v344, %v654
        %656 = vst [vmem:[%s224 + $0x8] sm:$0x1] %v655
        %v657 = vld [vmem:[%s224 + $0xc] sm:$0xf]
        %v658 = vsel %vm649, %v351, %v657
        %659 = vst [vmem:[%s224 + $0xc] sm:$0xf] %v658
        %660 = vst.msk [vmem:[%s224 + $0x10] sm:$0xf] %vm215, %v360
        %v661 = vld [vmem:[%s224 + $0x14] sm:$0x1]
        %v662 = vsel %vm227, %v361, %v661
        %663 = vst [vmem:[%s224 + $0x14] sm:$0x1] %v662
        %v664 = vld [vmem:[%s224 + $0x18] sm:$0xf]
        %v665 = vsel %vm649, %v368, %v664
        %666 = vst [vmem:[%s224 + $0x18] sm:$0xf] %v665
        %667 = vst.msk [vmem:[%s224 + $0x1c] sm:$0xf] %vm215, %v377
        %v668 = vld [vmem:[%s224 + $0x20] sm:$0x1]
        %v669 = vsel %vm227, %v378, %v668
        %670 = vst [vmem:[%s224 + $0x20] sm:$0x1] %v669
        %v671 = vld [vmem:[%s224 + $0x24] sm:$0xf]
        %v672 = vsel %vm649, %v385, %v671
        %673 = vst [vmem:[%s224 + $0x24] sm:$0xf] %v672
        %674 = vst.msk [vmem:[%s224 + $0x28] sm:$0xf] %vm215, %v394
        %v675 = vld [vmem:[%s224 + $0x2c] sm:$0x1]
        %v676 = vsel %vm227, %v395, %v675
        %677 = vst [vmem:[%s224 + $0x2c] sm:$0x1] %v676
        %v678 = vld [vmem:[%s224 + $0x30] sm:$0xf]
        %v679 = vsel %vm649, %v402, %v678
        %680 = vst [vmem:[%s224 + $0x30] sm:$0xf] %v679
        %681 = vst.msk [vmem:[%s224 + $0x34] sm:$0xf] %vm215, %v411
        %v682 = vld [vmem:[%s224 + $0x38] sm:$0x1]
        %v683 = vsel %vm227, %v412, %v682
        %684 = vst [vmem:[%s224 + $0x38] sm:$0x1] %v683
        %v685 = vld [vmem:[%s224 + $0x3c] sm:$0xf]
        %v686 = vsel %vm649, %v419, %v685
        %687 = vst [vmem:[%s224 + $0x3c] sm:$0xf] %v686
        %688 = vst.msk [vmem:[%s224 + $0x40] sm:$0xf] %vm215, %v428
        %v689 = vld [vmem:[%s224 + $0x44] sm:$0x1]
        %v690 = vsel %vm227, %v429, %v689
        %691 = vst [vmem:[%s224 + $0x44] sm:$0x1] %v690
        %v692 = vld [vmem:[%s224 + $0x48] sm:$0xf]
        %v693 = vsel %vm649, %v436, %v692
        %694 = vst [vmem:[%s224 + $0x48] sm:$0xf] %v693
        %695 = vst.msk [vmem:[%s224 + $0x4c] sm:$0xf] %vm215, %v445
        %v696 = vld [vmem:[%s224 + $0x50] sm:$0x1]
        %v697 = vsel %vm227, %v446, %v696
        %698 = vst [vmem:[%s224 + $0x50] sm:$0x1] %v697
        %v699 = vld [vmem:[%s224 + $0x54] sm:$0xf]
        %v700 = vsel %vm649, %v453, %v699
        %701 = vst [vmem:[%s224 + $0x54] sm:$0xf] %v700
        %702 = vst.msk [vmem:[%s224 + $0x58] sm:$0xf] %vm215, %v462
        %v703 = vld [vmem:[%s224 + $0x5c] sm:$0x1]
        %v704 = vsel %vm227, %v463, %v703
        %705 = vst [vmem:[%s224 + $0x5c] sm:$0x1] %v704
        %v706 = vld [vmem:[%s224 + $0x60] sm:$0xf]
        %v707 = vsel %vm649, %v470, %v706
        %708 = vst [vmem:[%s224 + $0x60] sm:$0xf] %v707
        %709 = vst.msk [vmem:[%s224 + $0x64] sm:$0xf] %vm215, %v479
        %v710 = vld [vmem:[%s224 + $0x68] sm:$0x1]
        %v711 = vsel %vm227, %v480, %v710
        %712 = vst [vmem:[%s224 + $0x68] sm:$0x1] %v711
        %v713 = vld [vmem:[%s224 + $0x6c] sm:$0xf]
        %v714 = vsel %vm649, %v487, %v713
        %715 = vst [vmem:[%s224 + $0x6c] sm:$0xf] %v714
        %716 = vst.msk [vmem:[%s224 + $0x70] sm:$0xf] %vm215, %v496
        %v717 = vld [vmem:[%s224 + $0x74] sm:$0x1]
        %v718 = vsel %vm227, %v497, %v717
        %719 = vst [vmem:[%s224 + $0x74] sm:$0x1] %v718
        %v720 = vld [vmem:[%s224 + $0x78] sm:$0xf]
        %v721 = vsel %vm649, %v504, %v720
        %722 = vst [vmem:[%s224 + $0x78] sm:$0xf] %v721
        %723 = vst.msk [vmem:[%s224 + $0x7c] sm:$0xf] %vm215, %v513
        %v724 = vld [vmem:[%s224 + $0x80] sm:$0x1]
        %v725 = vsel %vm227, %v514, %v724
        %726 = vst [vmem:[%s224 + $0x80] sm:$0x1] %v725
        %v727 = vld [vmem:[%s224 + $0x84] sm:$0xf]
        %v728 = vsel %vm649, %v521, %v727
        %729 = vst [vmem:[%s224 + $0x84] sm:$0xf] %v728
        %730 = vst.msk [vmem:[%s224 + $0x88] sm:$0xf] %vm215, %v530
        %v731 = vld [vmem:[%s224 + $0x8c] sm:$0x1]
        %v732 = vsel %vm227, %v531, %v731
        %733 = vst [vmem:[%s224 + $0x8c] sm:$0x1] %v732
        %v734 = vld [vmem:[%s224 + $0x90] sm:$0xf]
        %v735 = vsel %vm649, %v538, %v734
        %736 = vst [vmem:[%s224 + $0x90] sm:$0xf] %v735
        %737 = vst.msk [vmem:[%s224 + $0x94] sm:$0xf] %vm215, %v547
        %v738 = vld [vmem:[%s224 + $0x98] sm:$0x1]
        %v739 = vsel %vm227, %v548, %v738
        %740 = vst [vmem:[%s224 + $0x98] sm:$0x1] %v739
        %v741 = vld [vmem:[%s224 + $0x9c] sm:$0xf]
        %v742 = vsel %vm649, %v555, %v741
        %743 = vst [vmem:[%s224 + $0x9c] sm:$0xf] %v742
        %744 = vst.msk [vmem:[%s224 + $0xa0] sm:$0xf] %vm215, %v564
        %v745 = vld [vmem:[%s224 + $0xa4] sm:$0x1]
        %v746 = vsel %vm227, %v565, %v745
        %747 = vst [vmem:[%s224 + $0xa4] sm:$0x1] %v746
        %v748 = vld [vmem:[%s224 + $0xa8] sm:$0xf]
        %v749 = vsel %vm649, %v572, %v748
        %750 = vst [vmem:[%s224 + $0xa8] sm:$0xf] %v749
        %751 = vst.msk [vmem:[%s224 + $0xac] sm:$0xf] %vm215, %v581
        %v752 = vld [vmem:[%s224 + $0xb0] sm:$0x1]
        %v753 = vsel %vm227, %v582, %v752
        %754 = vst [vmem:[%s224 + $0xb0] sm:$0x1] %v753
        %v755 = vld [vmem:[%s224 + $0xb4] sm:$0xf]
        %v756 = vsel %vm649, %v589, %v755
        %757 = vst [vmem:[%s224 + $0xb4] sm:$0xf] %v756
        %758 = vst.msk [vmem:[%s224 + $0xb8] sm:$0xf] %vm215, %v598
        %v759 = vld [vmem:[%s224 + $0xbc] sm:$0x1]
        %v760 = vsel %vm227, %v599, %v759
        %761 = vst [vmem:[%s224 + $0xbc] sm:$0x1] %v760
        %v762 = vld [vmem:[#allocation2] sm:$0xf]
        %v763 = vld [vmem:[#allocation2 + $0x4] sm:$0xf]
        %v764 = vld [vmem:[#allocation2 + $0xc] sm:$0xf]
        %v765 = vld [vmem:[#allocation2 + $0x10] sm:$0xf]
        %v766 = vld [vmem:[#allocation2 + $0x18] sm:$0xf]
        %v767 = vld [vmem:[#allocation2 + $0x1c] sm:$0xf]
        %v768 = vld [vmem:[#allocation2 + $0x24] sm:$0xf]
        %v769 = vld [vmem:[#allocation2 + $0x28] sm:$0xf]
        %v770 = vld [vmem:[#allocation2 + $0x30] sm:$0xf]
        %v771 = vld [vmem:[#allocation2 + $0x34] sm:$0xf]
        %v772 = vld [vmem:[#allocation2 + $0x3c] sm:$0xf]
        %v773 = vld [vmem:[#allocation2 + $0x40] sm:$0xf]
        %v774 = vld [vmem:[#allocation2 + $0x48] sm:$0xf]
        %v775 = vld [vmem:[#allocation2 + $0x4c] sm:$0xf]
        %v776 = vld [vmem:[#allocation2 + $0x54] sm:$0xf]
        %v777 = vld [vmem:[#allocation2 + $0x58] sm:$0xf]
        %v778 = vld [vmem:[#allocation2 + $0x60] sm:$0xf]
        %v779 = vld [vmem:[#allocation2 + $0x64] sm:$0xf]
        %v780 = vld [vmem:[#allocation2 + $0x6c] sm:$0xf]
        %v781 = vld [vmem:[#allocation2 + $0x70] sm:$0xf]
        %v782 = vld [vmem:[#allocation2 + $0x78] sm:$0xf]
        %v783 = vld [vmem:[#allocation2 + $0x7c] sm:$0xf]
        %v784 = vld [vmem:[#allocation2 + $0x84] sm:$0xf]
        %v785 = vld [vmem:[#allocation2 + $0x88] sm:$0xf]
        %v786 = vld [vmem:[#allocation2 + $0x90] sm:$0xf]
        %v787 = vld [vmem:[#allocation2 + $0x94] sm:$0xf]
        %v788 = vld [vmem:[#allocation2 + $0x9c] sm:$0xf]
        %v789 = vld [vmem:[#allocation2 + $0xa0] sm:$0xf]
        %v790 = vld [vmem:[#allocation2 + $0xa8] sm:$0xf]
        %v791 = vld [vmem:[#allocation2 + $0xac] sm:$0xf]
        %v792 = vld [vmem:[#allocation2 + $0xb4] sm:$0xf]
        %v793 = vld [vmem:[#allocation2 + $0xb8] sm:$0xf]
        %v794 = vld [vmem:[#allocation2 + $0x8] sm:$0x1]
        %v795 = vld [vmem:[#allocation2 + $0x14] sm:$0x1]
        %v796 = vld [vmem:[#allocation2 + $0x20] sm:$0x1]
        %v797 = vld [vmem:[#allocation2 + $0x2c] sm:$0x1]
        %v798 = vld [vmem:[#allocation2 + $0x38] sm:$0x1]
        %v799 = vld [vmem:[#allocation2 + $0x44] sm:$0x1]
        %v800 = vld [vmem:[#allocation2 + $0x50] sm:$0x1]
        %v801 = vld [vmem:[#allocation2 + $0x5c] sm:$0x1]
        %v802 = vld [vmem:[#allocation2 + $0x68] sm:$0x1]
        %v803 = vld [vmem:[#allocation2 + $0x74] sm:$0x1]
        %v804 = vld [vmem:[#allocation2 + $0x80] sm:$0x1]
        %v805 = vld [vmem:[#allocation2 + $0x8c] sm:$0x1]
        %v806 = vld [vmem:[#allocation2 + $0x98] sm:$0x1]
        %v807 = vld [vmem:[#allocation2 + $0xa4] sm:$0x1]
        %v808 = vld [vmem:[#allocation2 + $0xb0] sm:$0x1]
        %v809 = vld [vmem:[#allocation2 + $0xbc] sm:$0x1]
        %vm810 = vsmask.f32 3328
        %vm811 = vsmask.f32 7440
        %vm812 = vmor %vm810, %vm811
        %v814 = vshrl.u32 %v762, 16
        %v816 = vrot.slane %v814, 4
        %v817 = vshll.u32 %v762, 16
        %v819 = vrot.slane %v817, 5
        %v820 = vor.u32 %v816, %v819
        %v821 = vrot.slane %v820, 4
        %v823 = vshll.u32 %v763, 16
        %v825 = vrot.slane %v823, 5
        %v826 = vsel %vm812, %v821, %v825
        %v827 = vshrl.u32 %v763, 16
        %v829 = vrot.slane %v827, 4
        %v830 = vor.u32 %v829, %v825
        %v831 = vrot.slane %v830, 4
        %v833 = vshll.u32 %v794, 16
        %v835 = vrot.slane %v833, 5
        %v836 = vsel %vm812, %v831, %v835
        %v838 = vshrl.u32 %v764, 16
        %v840 = vrot.slane %v838, 4
        %v841 = vshll.u32 %v764, 16
        %v843 = vrot.slane %v841, 5
        %v844 = vor.u32 %v840, %v843
        %v845 = vrot.slane %v844, 4
        %v847 = vshll.u32 %v765, 16
        %v849 = vrot.slane %v847, 5
        %v850 = vsel %vm812, %v845, %v849
        %v851 = vshrl.u32 %v765, 16
        %v853 = vrot.slane %v851, 4
        %v854 = vor.u32 %v853, %v849
        %v855 = vrot.slane %v854, 4
        %v857 = vshll.u32 %v795, 16
        %v859 = vrot.slane %v857, 5
        %v860 = vsel %vm812, %v855, %v859
        %v862 = vshrl.u32 %v766, 16
        %v864 = vrot.slane %v862, 4
        %v865 = vshll.u32 %v766, 16
        %v867 = vrot.slane %v865, 5
        %v868 = vor.u32 %v864, %v867
        %v869 = vrot.slane %v868, 4
        %v871 = vshll.u32 %v767, 16
        %v873 = vrot.slane %v871, 5
        %v874 = vsel %vm812, %v869, %v873
        %v875 = vshrl.u32 %v767, 16
        %v877 = vrot.slane %v875, 4
        %v878 = vor.u32 %v877, %v873
        %v879 = vrot.slane %v878, 4
        %v881 = vshll.u32 %v796, 16
        %v883 = vrot.slane %v881, 5
        %v884 = vsel %vm812, %v879, %v883
        %v886 = vshrl.u32 %v768, 16
        %v888 = vrot.slane %v886, 4
        %v889 = vshll.u32 %v768, 16
        %v891 = vrot.slane %v889, 5
        %v892 = vor.u32 %v888, %v891
        %v893 = vrot.slane %v892, 4
        %v895 = vshll.u32 %v769, 16
        %v897 = vrot.slane %v895, 5
        %v898 = vsel %vm812, %v893, %v897
        %v899 = vshrl.u32 %v769, 16
        %v901 = vrot.slane %v899, 4
        %v902 = vor.u32 %v901, %v897
        %v903 = vrot.slane %v902, 4
        %v905 = vshll.u32 %v797, 16
        %v907 = vrot.slane %v905, 5
        %v908 = vsel %vm812, %v903, %v907
        %v910 = vshrl.u32 %v770, 16
        %v912 = vrot.slane %v910, 4
        %v913 = vshll.u32 %v770, 16
        %v915 = vrot.slane %v913, 5
        %v916 = vor.u32 %v912, %v915
        %v917 = vrot.slane %v916, 4
        %v919 = vshll.u32 %v771, 16
        %v921 = vrot.slane %v919, 5
        %v922 = vsel %vm812, %v917, %v921
        %v923 = vshrl.u32 %v771, 16
        %v925 = vrot.slane %v923, 4
        %v926 = vor.u32 %v925, %v921
        %v927 = vrot.slane %v926, 4
        %v929 = vshll.u32 %v798, 16
        %v931 = vrot.slane %v929, 5
        %v932 = vsel %vm812, %v927, %v931
        %v934 = vshrl.u32 %v772, 16
        %v936 = vrot.slane %v934, 4
        %v937 = vshll.u32 %v772, 16
        %v939 = vrot.slane %v937, 5
        %v940 = vor.u32 %v936, %v939
        %v941 = vrot.slane %v940, 4
        %v943 = vshll.u32 %v773, 16
        %v945 = vrot.slane %v943, 5
        %v946 = vsel %vm812, %v941, %v945
        %v947 = vshrl.u32 %v773, 16
        %v949 = vrot.slane %v947, 4
        %v950 = vor.u32 %v949, %v945
        %v951 = vrot.slane %v950, 4
        %v953 = vshll.u32 %v799, 16
        %v955 = vrot.slane %v953, 5
        %v956 = vsel %vm812, %v951, %v955
        %v958 = vshrl.u32 %v774, 16
        %v960 = vrot.slane %v958, 4
        %v961 = vshll.u32 %v774, 16
        %v963 = vrot.slane %v961, 5
        %v964 = vor.u32 %v960, %v963
        %v965 = vrot.slane %v964, 4
        %v967 = vshll.u32 %v775, 16
        %v969 = vrot.slane %v967, 5
        %v970 = vsel %vm812, %v965, %v969
        %v971 = vshrl.u32 %v775, 16
        %v973 = vrot.slane %v971, 4
        %v974 = vor.u32 %v973, %v969
        %v975 = vrot.slane %v974, 4
        %v977 = vshll.u32 %v800, 16
        %v979 = vrot.slane %v977, 5
        %v980 = vsel %vm812, %v975, %v979
        %v982 = vshrl.u32 %v776, 16
        %v984 = vrot.slane %v982, 4
        %v985 = vshll.u32 %v776, 16
        %v987 = vrot.slane %v985, 5
        %v988 = vor.u32 %v984, %v987
        %v989 = vrot.slane %v988, 4
        %v991 = vshll.u32 %v777, 16
        %v993 = vrot.slane %v991, 5
        %v994 = vsel %vm812, %v989, %v993
        %v995 = vshrl.u32 %v777, 16
        %v997 = vrot.slane %v995, 4
        %v998 = vor.u32 %v997, %v993
        %v999 = vrot.slane %v998, 4
        %v1001 = vshll.u32 %v801, 16
        %v1003 = vrot.slane %v1001, 5
        %v1004 = vsel %vm812, %v999, %v1003
        %v1006 = vshrl.u32 %v778, 16
        %v1008 = vrot.slane %v1006, 4
        %v1009 = vshll.u32 %v778, 16
        %v1011 = vrot.slane %v1009, 5
        %v1012 = vor.u32 %v1008, %v1011
        %v1013 = vrot.slane %v1012, 4
        %v1015 = vshll.u32 %v779, 16
        %v1017 = vrot.slane %v1015, 5
        %v1018 = vsel %vm812, %v1013, %v1017
        %v1019 = vshrl.u32 %v779, 16
        %v1021 = vrot.slane %v1019, 4
        %v1022 = vor.u32 %v1021, %v1017
        %v1023 = vrot.slane %v1022, 4
        %v1025 = vshll.u32 %v802, 16
        %v1027 = vrot.slane %v1025, 5
        %v1028 = vsel %vm812, %v1023, %v1027
        %v1030 = vshrl.u32 %v780, 16
        %v1032 = vrot.slane %v1030, 4
        %v1033 = vshll.u32 %v780, 16
        %v1035 = vrot.slane %v1033, 5
        %v1036 = vor.u32 %v1032, %v1035
        %v1037 = vrot.slane %v1036, 4
        %v1039 = vshll.u32 %v781, 16
        %v1041 = vrot.slane %v1039, 5
        %v1042 = vsel %vm812, %v1037, %v1041
        %v1043 = vshrl.u32 %v781, 16
        %v1045 = vrot.slane %v1043, 4
        %v1046 = vor.u32 %v1045, %v1041
        %v1047 = vrot.slane %v1046, 4
        %v1049 = vshll.u32 %v803, 16
        %v1051 = vrot.slane %v1049, 5
        %v1052 = vsel %vm812, %v1047, %v1051
        %v1054 = vshrl.u32 %v782, 16
        %v1056 = vrot.slane %v1054, 4
        %v1057 = vshll.u32 %v782, 16
        %v1059 = vrot.slane %v1057, 5
        %v1060 = vor.u32 %v1056, %v1059
        %v1061 = vrot.slane %v1060, 4
        %v1063 = vshll.u32 %v783, 16
        %v1065 = vrot.slane %v1063, 5
        %v1066 = vsel %vm812, %v1061, %v1065
        %v1067 = vshrl.u32 %v783, 16
        %v1069 = vrot.slane %v1067, 4
        %v1070 = vor.u32 %v1069, %v1065
        %v1071 = vrot.slane %v1070, 4
        %v1073 = vshll.u32 %v804, 16
        %v1075 = vrot.slane %v1073, 5
        %v1076 = vsel %vm812, %v1071, %v1075
        %v1078 = vshrl.u32 %v784, 16
        %v1080 = vrot.slane %v1078, 4
        %v1081 = vshll.u32 %v784, 16
        %v1083 = vrot.slane %v1081, 5
        %v1084 = vor.u32 %v1080, %v1083
        %v1085 = vrot.slane %v1084, 4
        %v1087 = vshll.u32 %v785, 16
        %v1089 = vrot.slane %v1087, 5
        %v1090 = vsel %vm812, %v1085, %v1089
        %v1091 = vshrl.u32 %v785, 16
        %v1093 = vrot.slane %v1091, 4
        %v1094 = vor.u32 %v1093, %v1089
        %v1095 = vrot.slane %v1094, 4
        %v1097 = vshll.u32 %v805, 16
        %v1099 = vrot.slane %v1097, 5
        %v1100 = vsel %vm812, %v1095, %v1099
        %v1102 = vshrl.u32 %v786, 16
        %v1104 = vrot.slane %v1102, 4
        %v1105 = vshll.u32 %v786, 16
        %v1107 = vrot.slane %v1105, 5
        %v1108 = vor.u32 %v1104, %v1107
        %v1109 = vrot.slane %v1108, 4
        %v1111 = vshll.u32 %v787, 16
        %v1113 = vrot.slane %v1111, 5
        %v1114 = vsel %vm812, %v1109, %v1113
        %v1115 = vshrl.u32 %v787, 16
        %v1117 = vrot.slane %v1115, 4
        %v1118 = vor.u32 %v1117, %v1113
        %v1119 = vrot.slane %v1118, 4
        %v1121 = vshll.u32 %v806, 16
        %v1123 = vrot.slane %v1121, 5
        %v1124 = vsel %vm812, %v1119, %v1123
        %v1126 = vshrl.u32 %v788, 16
        %v1128 = vrot.slane %v1126, 4
        %v1129 = vshll.u32 %v788, 16
        %v1131 = vrot.slane %v1129, 5
        %v1132 = vor.u32 %v1128, %v1131
        %v1133 = vrot.slane %v1132, 4
        %v1135 = vshll.u32 %v789, 16
        %v1137 = vrot.slane %v1135, 5
        %v1138 = vsel %vm812, %v1133, %v1137
        %v1139 = vshrl.u32 %v789, 16
        %v1141 = vrot.slane %v1139, 4
        %v1142 = vor.u32 %v1141, %v1137
        %v1143 = vrot.slane %v1142, 4
        %v1145 = vshll.u32 %v807, 16
        %v1147 = vrot.slane %v1145, 5
        %v1148 = vsel %vm812, %v1143, %v1147
        %v1150 = vshrl.u32 %v790, 16
        %v1152 = vrot.slane %v1150, 4
        %v1153 = vshll.u32 %v790, 16
        %v1155 = vrot.slane %v1153, 5
        %v1156 = vor.u32 %v1152, %v1155
        %v1157 = vrot.slane %v1156, 4
        %v1159 = vshll.u32 %v791, 16
        %v1161 = vrot.slane %v1159, 5
        %v1162 = vsel %vm812, %v1157, %v1161
        %v1163 = vshrl.u32 %v791, 16
        %v1165 = vrot.slane %v1163, 4
        %v1166 = vor.u32 %v1165, %v1161
        %v1167 = vrot.slane %v1166, 4
        %v1169 = vshll.u32 %v808, 16
        %v1171 = vrot.slane %v1169, 5
        %v1172 = vsel %vm812, %v1167, %v1171
        %v1174 = vshrl.u32 %v792, 16
        %v1176 = vrot.slane %v1174, 4
        %v1177 = vshll.u32 %v792, 16
        %v1179 = vrot.slane %v1177, 5
        %v1180 = vor.u32 %v1176, %v1179
        %v1181 = vrot.slane %v1180, 4
        %v1183 = vshll.u32 %v793, 16
        %v1185 = vrot.slane %v1183, 5
        %v1186 = vsel %vm812, %v1181, %v1185
        %v1187 = vshrl.u32 %v793, 16
        %v1189 = vrot.slane %v1187, 4
        %v1190 = vor.u32 %v1189, %v1185
        %v1191 = vrot.slane %v1190, 4
        %v1193 = vshll.u32 %v809, 16
        %v1195 = vrot.slane %v1193, 5
        %v1196 = vsel %vm812, %v1191, %v1195
        %v1197 = vld [vmem:[#allocation2] sm:$0xe]
        %v1198 = vld [vmem:[#allocation2 + $0xc] sm:$0xe]
        %v1199 = vld [vmem:[#allocation2 + $0x18] sm:$0xe]
        %v1200 = vld [vmem:[#allocation2 + $0x24] sm:$0xe]
        %v1201 = vld [vmem:[#allocation2 + $0x30] sm:$0xe]
        %v1202 = vld [vmem:[#allocation2 + $0x3c] sm:$0xe]
        %v1203 = vld [vmem:[#allocation2 + $0x48] sm:$0xe]
        %v1204 = vld [vmem:[#allocation2 + $0x54] sm:$0xe]
        %v1205 = vld [vmem:[#allocation2 + $0x60] sm:$0xe]
        %v1206 = vld [vmem:[#allocation2 + $0x6c] sm:$0xe]
        %v1207 = vld [vmem:[#allocation2 + $0x78] sm:$0xe]
        %v1208 = vld [vmem:[#allocation2 + $0x84] sm:$0xe]
        %v1209 = vld [vmem:[#allocation2 + $0x90] sm:$0xe]
        %v1210 = vld [vmem:[#allocation2 + $0x9c] sm:$0xe]
        %v1211 = vld [vmem:[#allocation2 + $0xa8] sm:$0xe]
        %v1212 = vld [vmem:[#allocation2 + $0xb4] sm:$0xe]
        %vm1261 = vcmask 1042432
        %vm1262 = vcmask 1046532
        %vm1263 = vmor %vm1261, %vm1262
        %v1264 = vrot.slane %v1197, 5
        %v1265 = vrot.slane %v1264, 4
        %v1266 = vrot.slane %v763, 5
        %v1267 = vsel %vm1263, %v1265, %v1266
        %v1268 = vrot.slane %v1266, 4
        %v1269 = vrot.slane %v794, 5
        %v1270 = vsel %vm1263, %v1268, %v1269
        %v1271 = vrot.slane %v1198, 5
        %v1272 = vrot.slane %v1271, 4
        %v1273 = vrot.slane %v765, 5
        %v1274 = vsel %vm1263, %v1272, %v1273
        %v1275 = vrot.slane %v1273, 4
        %v1276 = vrot.slane %v795, 5
        %v1277 = vsel %vm1263, %v1275, %v1276
        %v1278 = vrot.slane %v1199, 5
        %v1279 = vrot.slane %v1278, 4
        %v1280 = vrot.slane %v767, 5
        %v1281 = vsel %vm1263, %v1279, %v1280
        %v1282 = vrot.slane %v1280, 4
        %v1283 = vrot.slane %v796, 5
        %v1284 = vsel %vm1263, %v1282, %v1283
        %v1285 = vrot.slane %v1200, 5
        %v1286 = vrot.slane %v1285, 4
        %v1287 = vrot.slane %v769, 5
        %v1288 = vsel %vm1263, %v1286, %v1287
        %v1289 = vrot.slane %v1287, 4
        %v1290 = vrot.slane %v797, 5
        %v1291 = vsel %vm1263, %v1289, %v1290
        %v1292 = vrot.slane %v1201, 5
        %v1293 = vrot.slane %v1292, 4
        %v1294 = vrot.slane %v771, 5
        %v1295 = vsel %vm1263, %v1293, %v1294
        %v1296 = vrot.slane %v1294, 4
        %v1297 = vrot.slane %v798, 5
        %v1298 = vsel %vm1263, %v1296, %v1297
        %v1299 = vrot.slane %v1202, 5
        %v1300 = vrot.slane %v1299, 4
        %v1301 = vrot.slane %v773, 5
        %v1302 = vsel %vm1263, %v1300, %v1301
        %v1303 = vrot.slane %v1301, 4
        %v1304 = vrot.slane %v799, 5
        %v1305 = vsel %vm1263, %v1303, %v1304
        %v1306 = vrot.slane %v1203, 5
        %v1307 = vrot.slane %v1306, 4
        %v1308 = vrot.slane %v775, 5
        %v1309 = vsel %vm1263, %v1307, %v1308
        %v1310 = vrot.slane %v1308, 4
        %v1311 = vrot.slane %v800, 5
        %v1312 = vsel %vm1263, %v1310, %v1311
        %v1313 = vrot.slane %v1204, 5
        %v1314 = vrot.slane %v1313, 4
        %v1315 = vrot.slane %v777, 5
        %v1316 = vsel %vm1263, %v1314, %v1315
        %v1317 = vrot.slane %v1315, 4
        %v1318 = vrot.slane %v801, 5
        %v1319 = vsel %vm1263, %v1317, %v1318
        %v1320 = vrot.slane %v1205, 5
        %v1321 = vrot.slane %v1320, 4
        %v1322 = vrot.slane %v779, 5
        %v1323 = vsel %vm1263, %v1321, %v1322
        %v1324 = vrot.slane %v1322, 4
        %v1325 = vrot.slane %v802, 5
        %v1326 = vsel %vm1263, %v1324, %v1325
        %v1327 = vrot.slane %v1206, 5
        %v1328 = vrot.slane %v1327, 4
        %v1329 = vrot.slane %v781, 5
        %v1330 = vsel %vm1263, %v1328, %v1329
        %v1331 = vrot.slane %v1329, 4
        %v1332 = vrot.slane %v803, 5
        %v1333 = vsel %vm1263, %v1331, %v1332
        %v1334 = vrot.slane %v1207, 5
        %v1335 = vrot.slane %v1334, 4
        %v1336 = vrot.slane %v783, 5
        %v1337 = vsel %vm1263, %v1335, %v1336
        %v1338 = vrot.slane %v1336, 4
        %v1339 = vrot.slane %v804, 5
        %v1340 = vsel %vm1263, %v1338, %v1339
        %v1341 = vrot.slane %v1208, 5
        %v1342 = vrot.slane %v1341, 4
        %v1343 = vrot.slane %v785, 5
        %v1344 = vsel %vm1263, %v1342, %v1343
        %v1345 = vrot.slane %v1343, 4
        %v1346 = vrot.slane %v805, 5
        %v1347 = vsel %vm1263, %v1345, %v1346
        %v1348 = vrot.slane %v1209, 5
        %v1349 = vrot.slane %v1348, 4
        %v1350 = vrot.slane %v787, 5
        %v1351 = vsel %vm1263, %v1349, %v1350
        %v1352 = vrot.slane %v1350, 4
        %v1353 = vrot.slane %v806, 5
        %v1354 = vsel %vm1263, %v1352, %v1353
        %v1355 = vrot.slane %v1210, 5
        %v1356 = vrot.slane %v1355, 4
        %v1357 = vrot.slane %v789, 5
        %v1358 = vsel %vm1263, %v1356, %v1357
        %v1359 = vrot.slane %v1357, 4
        %v1360 = vrot.slane %v807, 5
        %v1361 = vsel %vm1263, %v1359, %v1360
        %v1362 = vrot.slane %v1211, 5
        %v1363 = vrot.slane %v1362, 4
        %v1364 = vrot.slane %v791, 5
        %v1365 = vsel %vm1263, %v1363, %v1364
        %v1366 = vrot.slane %v1364, 4
        %v1367 = vrot.slane %v808, 5
        %v1368 = vsel %vm1263, %v1366, %v1367
        %v1369 = vrot.slane %v1212, 5
        %v1370 = vrot.slane %v1369, 4
        %v1371 = vrot.slane %v793, 5
        %v1372 = vsel %vm1263, %v1370, %v1371
        %v1373 = vrot.slane %v1371, 4
        %v1374 = vrot.slane %v809, 5
        %v1375 = vsel %vm1263, %v1373, %v1374
        %v1376 = vld [vmem:[%s224] sm:$0xf]
        %v1377 = vld [vmem:[%s224 + $0x4] sm:$0xf]
        %v1378 = vld [vmem:[%s224 + $0xc] sm:$0xf]
        %v1379 = vld [vmem:[%s224 + $0x10] sm:$0xf]
        %v1380 = vld [vmem:[%s224 + $0x18] sm:$0xf]
        %v1381 = vld [vmem:[%s224 + $0x1c] sm:$0xf]
        %v1382 = vld [vmem:[%s224 + $0x24] sm:$0xf]
        %v1383 = vld [vmem:[%s224 + $0x28] sm:$0xf]
        %v1384 = vld [vmem:[%s224 + $0x30] sm:$0xf]
        %v1385 = vld [vmem:[%s224 + $0x34] sm:$0xf]
        %v1386 = vld [vmem:[%s224 + $0x3c] sm:$0xf]
        %v1387 = vld [vmem:[%s224 + $0x40] sm:$0xf]
        %v1388 = vld [vmem:[%s224 + $0x48] sm:$0xf]
        %v1389 = vld [vmem:[%s224 + $0x4c] sm:$0xf]
        %v1390 = vld [vmem:[%s224 + $0x54] sm:$0xf]
        %v1391 = vld [vmem:[%s224 + $0x58] sm:$0xf]
        %v1392 = vld [vmem:[%s224 + $0x60] sm:$0xf]
        %v1393 = vld [vmem:[%s224 + $0x64] sm:$0xf]
        %v1394 = vld [vmem:[%s224 + $0x6c] sm:$0xf]
        %v1395 = vld [vmem:[%s224 + $0x70] sm:$0xf]
        %v1396 = vld [vmem:[%s224 + $0x78] sm:$0xf]
        %v1397 = vld [vmem:[%s224 + $0x7c] sm:$0xf]
        %v1398 = vld [vmem:[%s224 + $0x84] sm:$0xf]
        %v1399 = vld [vmem:[%s224 + $0x88] sm:$0xf]
        %v1400 = vld [vmem:[%s224 + $0x90] sm:$0xf]
        %v1401 = vld [vmem:[%s224 + $0x94] sm:$0xf]
        %v1402 = vld [vmem:[%s224 + $0x9c] sm:$0xf]
        %v1403 = vld [vmem:[%s224 + $0xa0] sm:$0xf]
        %v1404 = vld [vmem:[%s224 + $0xa8] sm:$0xf]
        %v1405 = vld [vmem:[%s224 + $0xac] sm:$0xf]
        %v1406 = vld [vmem:[%s224 + $0xb4] sm:$0xf]
        %v1407 = vld [vmem:[%s224 + $0xb8] sm:$0xf]
        %v1408 = vld [vmem:[%s224 + $0x8] sm:$0x1]
        %v1409 = vld [vmem:[%s224 + $0x14] sm:$0x1]
        %v1410 = vld [vmem:[%s224 + $0x20] sm:$0x1]
        %v1411 = vld [vmem:[%s224 + $0x2c] sm:$0x1]
        %v1412 = vld [vmem:[%s224 + $0x38] sm:$0x1]
        %v1413 = vld [vmem:[%s224 + $0x44] sm:$0x1]
        %v1414 = vld [vmem:[%s224 + $0x50] sm:$0x1]
        %v1415 = vld [vmem:[%s224 + $0x5c] sm:$0x1]
        %v1416 = vld [vmem:[%s224 + $0x68] sm:$0x1]
        %v1417 = vld [vmem:[%s224 + $0x74] sm:$0x1]
        %v1418 = vld [vmem:[%s224 + $0x80] sm:$0x1]
        %v1419 = vld [vmem:[%s224 + $0x8c] sm:$0x1]
        %v1420 = vld [vmem:[%s224 + $0x98] sm:$0x1]
        %v1421 = vld [vmem:[%s224 + $0xa4] sm:$0x1]
        %v1422 = vld [vmem:[%s224 + $0xb0] sm:$0x1]
        %v1423 = vld [vmem:[%s224 + $0xbc] sm:$0x1]
        %v1425 = vshrl.u32 %v1376, 16
        %v1427 = vrot.slane %v1425, 4
        %v1428 = vshll.u32 %v1376, 16
        %v1430 = vrot.slane %v1428, 5
        %v1431 = vor.u32 %v1427, %v1430
        %v1432 = vrot.slane %v1431, 4
        %v1434 = vshll.u32 %v1377, 16
        %v1436 = vrot.slane %v1434, 5
        %v1437 = vsel %vm812, %v1432, %v1436
        %v1438 = vshrl.u32 %v1377, 16
        %v1440 = vrot.slane %v1438, 4
        %v1441 = vor.u32 %v1440, %v1436
        %v1442 = vrot.slane %v1441, 4
        %v1444 = vshll.u32 %v1408, 16
        %v1446 = vrot.slane %v1444, 5
        %v1447 = vsel %vm812, %v1442, %v1446
        %v1449 = vshrl.u32 %v1378, 16
        %v1451 = vrot.slane %v1449, 4
        %v1452 = vshll.u32 %v1378, 16
        %v1454 = vrot.slane %v1452, 5
        %v1455 = vor.u32 %v1451, %v1454
        %v1456 = vrot.slane %v1455, 4
        %v1458 = vshll.u32 %v1379, 16
        %v1460 = vrot.slane %v1458, 5
        %v1461 = vsel %vm812, %v1456, %v1460
        %v1462 = vshrl.u32 %v1379, 16
        %v1464 = vrot.slane %v1462, 4
        %v1465 = vor.u32 %v1464, %v1460
        %v1466 = vrot.slane %v1465, 4
        %v1468 = vshll.u32 %v1409, 16
        %v1470 = vrot.slane %v1468, 5
        %v1471 = vsel %vm812, %v1466, %v1470
        %v1473 = vshrl.u32 %v1380, 16
        %v1475 = vrot.slane %v1473, 4
        %v1476 = vshll.u32 %v1380, 16
        %v1478 = vrot.slane %v1476, 5
        %v1479 = vor.u32 %v1475, %v1478
        %v1480 = vrot.slane %v1479, 4
        %v1482 = vshll.u32 %v1381, 16
        %v1484 = vrot.slane %v1482, 5
        %v1485 = vsel %vm812, %v1480, %v1484
        %v1486 = vshrl.u32 %v1381, 16
        %v1488 = vrot.slane %v1486, 4
        %v1489 = vor.u32 %v1488, %v1484
        %v1490 = vrot.slane %v1489, 4
        %v1492 = vshll.u32 %v1410, 16
        %v1494 = vrot.slane %v1492, 5
        %v1495 = vsel %vm812, %v1490, %v1494
        %v1497 = vshrl.u32 %v1382, 16
        %v1499 = vrot.slane %v1497, 4
        %v1500 = vshll.u32 %v1382, 16
        %v1502 = vrot.slane %v1500, 5
        %v1503 = vor.u32 %v1499, %v1502
        %v1504 = vrot.slane %v1503, 4
        %v1506 = vshll.u32 %v1383, 16
        %v1508 = vrot.slane %v1506, 5
        %v1509 = vsel %vm812, %v1504, %v1508
        %v1510 = vshrl.u32 %v1383, 16
        %v1512 = vrot.slane %v1510, 4
        %v1513 = vor.u32 %v1512, %v1508
        %v1514 = vrot.slane %v1513, 4
        %v1516 = vshll.u32 %v1411, 16
        %v1518 = vrot.slane %v1516, 5
        %v1519 = vsel %vm812, %v1514, %v1518
        %v1521 = vshrl.u32 %v1384, 16
        %v1523 = vrot.slane %v1521, 4
        %v1524 = vshll.u32 %v1384, 16
        %v1526 = vrot.slane %v1524, 5
        %v1527 = vor.u32 %v1523, %v1526
        %v1528 = vrot.slane %v1527, 4
        %v1530 = vshll.u32 %v1385, 16
        %v1532 = vrot.slane %v1530, 5
        %v1533 = vsel %vm812, %v1528, %v1532
        %v1534 = vshrl.u32 %v1385, 16
        %v1536 = vrot.slane %v1534, 4
        %v1537 = vor.u32 %v1536, %v1532
        %v1538 = vrot.slane %v1537, 4
        %v1540 = vshll.u32 %v1412, 16
        %v1542 = vrot.slane %v1540, 5
        %v1543 = vsel %vm812, %v1538, %v1542
        %v1545 = vshrl.u32 %v1386, 16
        %v1547 = vrot.slane %v1545, 4
        %v1548 = vshll.u32 %v1386, 16
        %v1550 = vrot.slane %v1548, 5
        %v1551 = vor.u32 %v1547, %v1550
        %v1552 = vrot.slane %v1551, 4
        %v1554 = vshll.u32 %v1387, 16
        %v1556 = vrot.slane %v1554, 5
        %v1557 = vsel %vm812, %v1552, %v1556
        %v1558 = vshrl.u32 %v1387, 16
        %v1560 = vrot.slane %v1558, 4
        %v1561 = vor.u32 %v1560, %v1556
        %v1562 = vrot.slane %v1561, 4
        %v1564 = vshll.u32 %v1413, 16
        %v1566 = vrot.slane %v1564, 5
        %v1567 = vsel %vm812, %v1562, %v1566
        %v1569 = vshrl.u32 %v1388, 16
        %v1571 = vrot.slane %v1569, 4
        %v1572 = vshll.u32 %v1388, 16
        %v1574 = vrot.slane %v1572, 5
        %v1575 = vor.u32 %v1571, %v1574
        %v1576 = vrot.slane %v1575, 4
        %v1578 = vshll.u32 %v1389, 16
        %v1580 = vrot.slane %v1578, 5
        %v1581 = vsel %vm812, %v1576, %v1580
        %v1582 = vshrl.u32 %v1389, 16
        %v1584 = vrot.slane %v1582, 4
        %v1585 = vor.u32 %v1584, %v1580
        %v1586 = vrot.slane %v1585, 4
        %v1588 = vshll.u32 %v1414, 16
        %v1590 = vrot.slane %v1588, 5
        %v1591 = vsel %vm812, %v1586, %v1590
        %v1593 = vshrl.u32 %v1390, 16
        %v1595 = vrot.slane %v1593, 4
        %v1596 = vshll.u32 %v1390, 16
        %v1598 = vrot.slane %v1596, 5
        %v1599 = vor.u32 %v1595, %v1598
        %v1600 = vrot.slane %v1599, 4
        %v1602 = vshll.u32 %v1391, 16
        %v1604 = vrot.slane %v1602, 5
        %v1605 = vsel %vm812, %v1600, %v1604
        %v1606 = vshrl.u32 %v1391, 16
        %v1608 = vrot.slane %v1606, 4
        %v1609 = vor.u32 %v1608, %v1604
        %v1610 = vrot.slane %v1609, 4
        %v1612 = vshll.u32 %v1415, 16
        %v1614 = vrot.slane %v1612, 5
        %v1615 = vsel %vm812, %v1610, %v1614
        %v1617 = vshrl.u32 %v1392, 16
        %v1619 = vrot.slane %v1617, 4
        %v1620 = vshll.u32 %v1392, 16
        %v1622 = vrot.slane %v1620, 5
        %v1623 = vor.u32 %v1619, %v1622
        %v1624 = vrot.slane %v1623, 4
        %v1626 = vshll.u32 %v1393, 16
        %v1628 = vrot.slane %v1626, 5
        %v1629 = vsel %vm812, %v1624, %v1628
        %v1630 = vshrl.u32 %v1393, 16
        %v1632 = vrot.slane %v1630, 4
        %v1633 = vor.u32 %v1632, %v1628
        %v1634 = vrot.slane %v1633, 4
        %v1636 = vshll.u32 %v1416, 16
        %v1638 = vrot.slane %v1636, 5
        %v1639 = vsel %vm812, %v1634, %v1638
        %v1641 = vshrl.u32 %v1394, 16
        %v1643 = vrot.slane %v1641, 4
        %v1644 = vshll.u32 %v1394, 16
        %v1646 = vrot.slane %v1644, 5
        %v1647 = vor.u32 %v1643, %v1646
        %v1648 = vrot.slane %v1647, 4
        %v1650 = vshll.u32 %v1395, 16
        %v1652 = vrot.slane %v1650, 5
        %v1653 = vsel %vm812, %v1648, %v1652
        %v1654 = vshrl.u32 %v1395, 16
        %v1656 = vrot.slane %v1654, 4
        %v1657 = vor.u32 %v1656, %v1652
        %v1658 = vrot.slane %v1657, 4
        %v1660 = vshll.u32 %v1417, 16
        %v1662 = vrot.slane %v1660, 5
        %v1663 = vsel %vm812, %v1658, %v1662
        %v1665 = vshrl.u32 %v1396, 16
        %v1667 = vrot.slane %v1665, 4
        %v1668 = vshll.u32 %v1396, 16
        %v1670 = vrot.slane %v1668, 5
        %v1671 = vor.u32 %v1667, %v1670
        %v1672 = vrot.slane %v1671, 4
        %v1674 = vshll.u32 %v1397, 16
        %v1676 = vrot.slane %v1674, 5
        %v1677 = vsel %vm812, %v1672, %v1676
        %v1678 = vshrl.u32 %v1397, 16
        %v1680 = vrot.slane %v1678, 4
        %v1681 = vor.u32 %v1680, %v1676
        %v1682 = vrot.slane %v1681, 4
        %v1684 = vshll.u32 %v1418, 16
        %v1686 = vrot.slane %v1684, 5
        %v1687 = vsel %vm812, %v1682, %v1686
        %v1689 = vshrl.u32 %v1398, 16
        %v1691 = vrot.slane %v1689, 4
        %v1692 = vshll.u32 %v1398, 16
        %v1694 = vrot.slane %v1692, 5
        %v1695 = vor.u32 %v1691, %v1694
        %v1696 = vrot.slane %v1695, 4
        %v1698 = vshll.u32 %v1399, 16
        %v1700 = vrot.slane %v1698, 5
        %v1701 = vsel %vm812, %v1696, %v1700
        %v1702 = vshrl.u32 %v1399, 16
        %v1704 = vrot.slane %v1702, 4
        %v1705 = vor.u32 %v1704, %v1700
        %v1706 = vrot.slane %v1705, 4
        %v1708 = vshll.u32 %v1419, 16
        %v1710 = vrot.slane %v1708, 5
        %v1711 = vsel %vm812, %v1706, %v1710
        %v1713 = vshrl.u32 %v1400, 16
        %v1715 = vrot.slane %v1713, 4
        %v1716 = vshll.u32 %v1400, 16
        %v1718 = vrot.slane %v1716, 5
        %v1719 = vor.u32 %v1715, %v1718
        %v1720 = vrot.slane %v1719, 4
        %v1722 = vshll.u32 %v1401, 16
        %v1724 = vrot.slane %v1722, 5
        %v1725 = vsel %vm812, %v1720, %v1724
        %v1726 = vshrl.u32 %v1401, 16
        %v1728 = vrot.slane %v1726, 4
        %v1729 = vor.u32 %v1728, %v1724
        %v1730 = vrot.slane %v1729, 4
        %v1732 = vshll.u32 %v1420, 16
        %v1734 = vrot.slane %v1732, 5
        %v1735 = vsel %vm812, %v1730, %v1734
        %v1737 = vshrl.u32 %v1402, 16
        %v1739 = vrot.slane %v1737, 4
        %v1740 = vshll.u32 %v1402, 16
        %v1742 = vrot.slane %v1740, 5
        %v1743 = vor.u32 %v1739, %v1742
        %v1744 = vrot.slane %v1743, 4
        %v1746 = vshll.u32 %v1403, 16
        %v1748 = vrot.slane %v1746, 5
        %v1749 = vsel %vm812, %v1744, %v1748
        %v1750 = vshrl.u32 %v1403, 16
        %v1752 = vrot.slane %v1750, 4
        %v1753 = vor.u32 %v1752, %v1748
        %v1754 = vrot.slane %v1753, 4
        %v1756 = vshll.u32 %v1421, 16
        %v1758 = vrot.slane %v1756, 5
        %v1759 = vsel %vm812, %v1754, %v1758
        %v1761 = vshrl.u32 %v1404, 16
        %v1763 = vrot.slane %v1761, 4
        %v1764 = vshll.u32 %v1404, 16
        %v1766 = vrot.slane %v1764, 5
        %v1767 = vor.u32 %v1763, %v1766
        %v1768 = vrot.slane %v1767, 4
        %v1770 = vshll.u32 %v1405, 16
        %v1772 = vrot.slane %v1770, 5
        %v1773 = vsel %vm812, %v1768, %v1772
        %v1774 = vshrl.u32 %v1405, 16
        %v1776 = vrot.slane %v1774, 4
        %v1777 = vor.u32 %v1776, %v1772
        %v1778 = vrot.slane %v1777, 4
        %v1780 = vshll.u32 %v1422, 16
        %v1782 = vrot.slane %v1780, 5
        %v1783 = vsel %vm812, %v1778, %v1782
        %v1785 = vshrl.u32 %v1406, 16
        %v1787 = vrot.slane %v1785, 4
        %v1788 = vshll.u32 %v1406, 16
        %v1790 = vrot.slane %v1788, 5
        %v1791 = vor.u32 %v1787, %v1790
        %v1792 = vrot.slane %v1791, 4
        %v1794 = vshll.u32 %v1407, 16
        %v1796 = vrot.slane %v1794, 5
        %v1797 = vsel %vm812, %v1792, %v1796
        %v1798 = vshrl.u32 %v1407, 16
        %v1800 = vrot.slane %v1798, 4
        %v1801 = vor.u32 %v1800, %v1796
        %v1802 = vrot.slane %v1801, 4
        %v1804 = vshll.u32 %v1423, 16
        %v1806 = vrot.slane %v1804, 5
        %v1807 = vsel %vm812, %v1802, %v1806
        %v1808 = vld [vmem:[%s224] sm:$0xe]
        %v1809 = vld [vmem:[%s224 + $0xc] sm:$0xe]
        %v1810 = vld [vmem:[%s224 + $0x18] sm:$0xe]
        %v1811 = vld [vmem:[%s224 + $0x24] sm:$0xe]
        %v1812 = vld [vmem:[%s224 + $0x30] sm:$0xe]
        %v1813 = vld [vmem:[%s224 + $0x3c] sm:$0xe]
        %v1814 = vld [vmem:[%s224 + $0x48] sm:$0xe]
        %v1815 = vld [vmem:[%s224 + $0x54] sm:$0xe]
        %v1816 = vld [vmem:[%s224 + $0x60] sm:$0xe]
        %v1817 = vld [vmem:[%s224 + $0x6c] sm:$0xe]
        %v1818 = vld [vmem:[%s224 + $0x78] sm:$0xe]
        %v1819 = vld [vmem:[%s224 + $0x84] sm:$0xe]
        %v1820 = vld [vmem:[%s224 + $0x90] sm:$0xe]
        %v1821 = vld [vmem:[%s224 + $0x9c] sm:$0xe]
        %v1822 = vld [vmem:[%s224 + $0xa8] sm:$0xe]
        %v1823 = vld [vmem:[%s224 + $0xb4] sm:$0xe]
        %v1872 = vrot.slane %v1808, 5
        %v1873 = vrot.slane %v1872, 4
        %v1874 = vrot.slane %v1377, 5
        %v1875 = vsel %vm1263, %v1873, %v1874
        %v1876 = vrot.slane %v1874, 4
        %v1877 = vrot.slane %v1408, 5
        %v1878 = vsel %vm1263, %v1876, %v1877
        %v1879 = vrot.slane %v1809, 5
        %v1880 = vrot.slane %v1879, 4
        %v1881 = vrot.slane %v1379, 5
        %v1882 = vsel %vm1263, %v1880, %v1881
        %v1883 = vrot.slane %v1881, 4
        %v1884 = vrot.slane %v1409, 5
        %v1885 = vsel %vm1263, %v1883, %v1884
        %v1886 = vrot.slane %v1810, 5
        %v1887 = vrot.slane %v1886, 4
        %v1888 = vrot.slane %v1381, 5
        %v1889 = vsel %vm1263, %v1887, %v1888
        %v1890 = vrot.slane %v1888, 4
        %v1891 = vrot.slane %v1410, 5
        %v1892 = vsel %vm1263, %v1890, %v1891
        %v1893 = vrot.slane %v1811, 5
        %v1894 = vrot.slane %v1893, 4
        %v1895 = vrot.slane %v1383, 5
        %v1896 = vsel %vm1263, %v1894, %v1895
        %v1897 = vrot.slane %v1895, 4
        %v1898 = vrot.slane %v1411, 5
        %v1899 = vsel %vm1263, %v1897, %v1898
        %v1900 = vrot.slane %v1812, 5
        %v1901 = vrot.slane %v1900, 4
        %v1902 = vrot.slane %v1385, 5
        %v1903 = vsel %vm1263, %v1901, %v1902
        %v1904 = vrot.slane %v1902, 4
        %v1905 = vrot.slane %v1412, 5
        %v1906 = vsel %vm1263, %v1904, %v1905
        %v1907 = vrot.slane %v1813, 5
        %v1908 = vrot.slane %v1907, 4
        %v1909 = vrot.slane %v1387, 5
        %v1910 = vsel %vm1263, %v1908, %v1909
        %v1911 = vrot.slane %v1909, 4
        %v1912 = vrot.slane %v1413, 5
        %v1913 = vsel %vm1263, %v1911, %v1912
        %v1914 = vrot.slane %v1814, 5
        %v1915 = vrot.slane %v1914, 4
        %v1916 = vrot.slane %v1389, 5
        %v1917 = vsel %vm1263, %v1915, %v1916
        %v1918 = vrot.slane %v1916, 4
        %v1919 = vrot.slane %v1414, 5
        %v1920 = vsel %vm1263, %v1918, %v1919
        %v1921 = vrot.slane %v1815, 5
        %v1922 = vrot.slane %v1921, 4
        %v1923 = vrot.slane %v1391, 5
        %v1924 = vsel %vm1263, %v1922, %v1923
        %v1925 = vrot.slane %v1923, 4
        %v1926 = vrot.slane %v1415, 5
        %v1927 = vsel %vm1263, %v1925, %v1926
        %v1928 = vrot.slane %v1816, 5
        %v1929 = vrot.slane %v1928, 4
        %v1930 = vrot.slane %v1393, 5
        %v1931 = vsel %vm1263, %v1929, %v1930
        %v1932 = vrot.slane %v1930, 4
        %v1933 = vrot.slane %v1416, 5
        %v1934 = vsel %vm1263, %v1932, %v1933
        %v1935 = vrot.slane %v1817, 5
        %v1936 = vrot.slane %v1935, 4
        %v1937 = vrot.slane %v1395, 5
        %v1938 = vsel %vm1263, %v1936, %v1937
        %v1939 = vrot.slane %v1937, 4
        %v1940 = vrot.slane %v1417, 5
        %v1941 = vsel %vm1263, %v1939, %v1940
        %v1942 = vrot.slane %v1818, 5
        %v1943 = vrot.slane %v1942, 4
        %v1944 = vrot.slane %v1397, 5
        %v1945 = vsel %vm1263, %v1943, %v1944
        %v1946 = vrot.slane %v1944, 4
        %v1947 = vrot.slane %v1418, 5
        %v1948 = vsel %vm1263, %v1946, %v1947
        %v1949 = vrot.slane %v1819, 5
        %v1950 = vrot.slane %v1949, 4
        %v1951 = vrot.slane %v1399, 5
        %v1952 = vsel %vm1263, %v1950, %v1951
        %v1953 = vrot.slane %v1951, 4
        %v1954 = vrot.slane %v1419, 5
        %v1955 = vsel %vm1263, %v1953, %v1954
        %v1956 = vrot.slane %v1820, 5
        %v1957 = vrot.slane %v1956, 4
        %v1958 = vrot.slane %v1401, 5
        %v1959 = vsel %vm1263, %v1957, %v1958
        %v1960 = vrot.slane %v1958, 4
        %v1961 = vrot.slane %v1420, 5
        %v1962 = vsel %vm1263, %v1960, %v1961
        %v1963 = vrot.slane %v1821, 5
        %v1964 = vrot.slane %v1963, 4
        %v1965 = vrot.slane %v1403, 5
        %v1966 = vsel %vm1263, %v1964, %v1965
        %v1967 = vrot.slane %v1965, 4
        %v1968 = vrot.slane %v1421, 5
        %v1969 = vsel %vm1263, %v1967, %v1968
        %v1970 = vrot.slane %v1822, 5
        %v1971 = vrot.slane %v1970, 4
        %v1972 = vrot.slane %v1405, 5
        %v1973 = vsel %vm1263, %v1971, %v1972
        %v1974 = vrot.slane %v1972, 4
        %v1975 = vrot.slane %v1422, 5
        %v1976 = vsel %vm1263, %v1974, %v1975
        %v1977 = vrot.slane %v1823, 5
        %v1978 = vrot.slane %v1977, 4
        %v1979 = vrot.slane %v1407, 5
        %v1980 = vsel %vm1263, %v1978, %v1979
        %v1981 = vrot.slane %v1979, 4
        %v1982 = vrot.slane %v1423, 5
        %v1983 = vsel %vm1263, %v1981, %v1982
        %s1984 = scalar_lea.vmem [#allocation2], 24
        %v1985 = vld [vmem:[%s1984] sm:$0xf]
        %v1986 = vld [vmem:[%s1984 + $0x4] sm:$0xf]
        %v1987 = vld [vmem:[%s1984 + $0xc] sm:$0xf]
        %v1988 = vld [vmem:[%s1984 + $0x10] sm:$0xf]
        %v1989 = vld [vmem:[%s1984 + $0x18] sm:$0xf]
        %v1990 = vld [vmem:[%s1984 + $0x1c] sm:$0xf]
        %v1991 = vld [vmem:[%s1984 + $0x24] sm:$0xf]
        %v1992 = vld [vmem:[%s1984 + $0x28] sm:$0xf]
        %v1993 = vld [vmem:[%s1984 + $0x30] sm:$0xf]
        %v1994 = vld [vmem:[%s1984 + $0x34] sm:$0xf]
        %v1995 = vld [vmem:[%s1984 + $0x3c] sm:$0xf]
        %v1996 = vld [vmem:[%s1984 + $0x40] sm:$0xf]
        %v1997 = vld [vmem:[%s1984 + $0x48] sm:$0xf]
        %v1998 = vld [vmem:[%s1984 + $0x4c] sm:$0xf]
        %v1999 = vld [vmem:[%s1984 + $0x54] sm:$0xf]
        %v2000 = vld [vmem:[%s1984 + $0x58] sm:$0xf]
        %v2001 = vld [vmem:[%s1984 + $0x60] sm:$0xf]
        %v2002 = vld [vmem:[%s1984 + $0x64] sm:$0xf]
        %v2003 = vld [vmem:[%s1984 + $0x6c] sm:$0xf]
        %v2004 = vld [vmem:[%s1984 + $0x70] sm:$0xf]
        %v2005 = vld [vmem:[%s1984 + $0x78] sm:$0xf]
        %v2006 = vld [vmem:[%s1984 + $0x7c] sm:$0xf]
        %v2007 = vld [vmem:[%s1984 + $0x84] sm:$0xf]
        %v2008 = vld [vmem:[%s1984 + $0x88] sm:$0xf]
        %v2009 = vld [vmem:[%s1984 + $0x90] sm:$0xf]
        %v2010 = vld [vmem:[%s1984 + $0x94] sm:$0xf]
        %v2011 = vld [vmem:[%s1984 + $0x9c] sm:$0xf]
        %v2012 = vld [vmem:[%s1984 + $0xa0] sm:$0xf]
        %v2013 = vld [vmem:[%s1984 + $0xa8] sm:$0xf]
        %v2014 = vld [vmem:[%s1984 + $0xac] sm:$0xf]
        %v2015 = vld [vmem:[%s1984 + $0xb4] sm:$0xf]
        %v2016 = vld [vmem:[%s1984 + $0xb8] sm:$0xf]
        %v2017 = vld [vmem:[%s1984 + $0x8] sm:$0x1]
        %v2018 = vld [vmem:[%s1984 + $0x14] sm:$0x1]
        %v2019 = vld [vmem:[%s1984 + $0x20] sm:$0x1]
        %v2020 = vld [vmem:[%s1984 + $0x2c] sm:$0x1]
        %v2021 = vld [vmem:[%s1984 + $0x38] sm:$0x1]
        %v2022 = vld [vmem:[%s1984 + $0x44] sm:$0x1]
        %v2023 = vld [vmem:[%s1984 + $0x50] sm:$0x1]
        %v2024 = vld [vmem:[%s1984 + $0x5c] sm:$0x1]
        %v2025 = vld [vmem:[%s1984 + $0x68] sm:$0x1]
        %v2026 = vld [vmem:[%s1984 + $0x74] sm:$0x1]
        %v2027 = vld [vmem:[%s1984 + $0x80] sm:$0x1]
        %v2028 = vld [vmem:[%s1984 + $0x8c] sm:$0x1]
        %v2029 = vld [vmem:[%s1984 + $0x98] sm:$0x1]
        %v2030 = vld [vmem:[%s1984 + $0xa4] sm:$0x1]
        %v2031 = vld [vmem:[%s1984 + $0xb0] sm:$0x1]
        %v2032 = vld [vmem:[%s1984 + $0xbc] sm:$0x1]
        %v2034 = vshrl.u32 %v1985, 16
        %v2036 = vrot.slane %v2034, 4
        %v2037 = vshll.u32 %v1985, 16
        %v2039 = vrot.slane %v2037, 5
        %v2040 = vor.u32 %v2036, %v2039
        %v2041 = vrot.slane %v2040, 4
        %v2043 = vshll.u32 %v1986, 16
        %v2045 = vrot.slane %v2043, 5
        %v2046 = vsel %vm812, %v2041, %v2045
        %v2047 = vshrl.u32 %v1986, 16
        %v2049 = vrot.slane %v2047, 4
        %v2050 = vor.u32 %v2049, %v2045
        %v2051 = vrot.slane %v2050, 4
        %v2053 = vshll.u32 %v2017, 16
        %v2055 = vrot.slane %v2053, 5
        %v2056 = vsel %vm812, %v2051, %v2055
        %v2058 = vshrl.u32 %v1987, 16
        %v2060 = vrot.slane %v2058, 4
        %v2061 = vshll.u32 %v1987, 16
        %v2063 = vrot.slane %v2061, 5
        %v2064 = vor.u32 %v2060, %v2063
        %v2065 = vrot.slane %v2064, 4
        %v2067 = vshll.u32 %v1988, 16
        %v2069 = vrot.slane %v2067, 5
        %v2070 = vsel %vm812, %v2065, %v2069
        %v2071 = vshrl.u32 %v1988, 16
        %v2073 = vrot.slane %v2071, 4
        %v2074 = vor.u32 %v2073, %v2069
        %v2075 = vrot.slane %v2074, 4
        %v2077 = vshll.u32 %v2018, 16
        %v2079 = vrot.slane %v2077, 5
        %v2080 = vsel %vm812, %v2075, %v2079
        %v2082 = vshrl.u32 %v1989, 16
        %v2084 = vrot.slane %v2082, 4
        %v2085 = vshll.u32 %v1989, 16
        %v2087 = vrot.slane %v2085, 5
        %v2088 = vor.u32 %v2084, %v2087
        %v2089 = vrot.slane %v2088, 4
        %v2091 = vshll.u32 %v1990, 16
        %v2093 = vrot.slane %v2091, 5
        %v2094 = vsel %vm812, %v2089, %v2093
        %v2095 = vshrl.u32 %v1990, 16
        %v2097 = vrot.slane %v2095, 4
        %v2098 = vor.u32 %v2097, %v2093
        %v2099 = vrot.slane %v2098, 4
        %v2101 = vshll.u32 %v2019, 16
        %v2103 = vrot.slane %v2101, 5
        %v2104 = vsel %vm812, %v2099, %v2103
        %v2106 = vshrl.u32 %v1991, 16
        %v2108 = vrot.slane %v2106, 4
        %v2109 = vshll.u32 %v1991, 16
        %v2111 = vrot.slane %v2109, 5
        %v2112 = vor.u32 %v2108, %v2111
        %v2113 = vrot.slane %v2112, 4
        %v2115 = vshll.u32 %v1992, 16
        %v2117 = vrot.slane %v2115, 5
        %v2118 = vsel %vm812, %v2113, %v2117
        %v2119 = vshrl.u32 %v1992, 16
        %v2121 = vrot.slane %v2119, 4
        %v2122 = vor.u32 %v2121, %v2117
        %v2123 = vrot.slane %v2122, 4
        %v2125 = vshll.u32 %v2020, 16
        %v2127 = vrot.slane %v2125, 5
        %v2128 = vsel %vm812, %v2123, %v2127
        %v2130 = vshrl.u32 %v1993, 16
        %v2132 = vrot.slane %v2130, 4
        %v2133 = vshll.u32 %v1993, 16
        %v2135 = vrot.slane %v2133, 5
        %v2136 = vor.u32 %v2132, %v2135
        %v2137 = vrot.slane %v2136, 4
        %v2139 = vshll.u32 %v1994, 16
        %v2141 = vrot.slane %v2139, 5
        %v2142 = vsel %vm812, %v2137, %v2141
        %v2143 = vshrl.u32 %v1994, 16
        %v2145 = vrot.slane %v2143, 4
        %v2146 = vor.u32 %v2145, %v2141
        %v2147 = vrot.slane %v2146, 4
        %v2149 = vshll.u32 %v2021, 16
        %v2151 = vrot.slane %v2149, 5
        %v2152 = vsel %vm812, %v2147, %v2151
        %v2154 = vshrl.u32 %v1995, 16
        %v2156 = vrot.slane %v2154, 4
        %v2157 = vshll.u32 %v1995, 16
        %v2159 = vrot.slane %v2157, 5
        %v2160 = vor.u32 %v2156, %v2159
        %v2161 = vrot.slane %v2160, 4
        %v2163 = vshll.u32 %v1996, 16
        %v2165 = vrot.slane %v2163, 5
        %v2166 = vsel %vm812, %v2161, %v2165
        %v2167 = vshrl.u32 %v1996, 16
        %v2169 = vrot.slane %v2167, 4
        %v2170 = vor.u32 %v2169, %v2165
        %v2171 = vrot.slane %v2170, 4
        %v2173 = vshll.u32 %v2022, 16
        %v2175 = vrot.slane %v2173, 5
        %v2176 = vsel %vm812, %v2171, %v2175
        %v2178 = vshrl.u32 %v1997, 16
        %v2180 = vrot.slane %v2178, 4
        %v2181 = vshll.u32 %v1997, 16
        %v2183 = vrot.slane %v2181, 5
        %v2184 = vor.u32 %v2180, %v2183
        %v2185 = vrot.slane %v2184, 4
        %v2187 = vshll.u32 %v1998, 16
        %v2189 = vrot.slane %v2187, 5
        %v2190 = vsel %vm812, %v2185, %v2189
        %v2191 = vshrl.u32 %v1998, 16
        %v2193 = vrot.slane %v2191, 4
        %v2194 = vor.u32 %v2193, %v2189
        %v2195 = vrot.slane %v2194, 4
        %v2197 = vshll.u32 %v2023, 16
        %v2199 = vrot.slane %v2197, 5
        %v2200 = vsel %vm812, %v2195, %v2199
        %v2202 = vshrl.u32 %v1999, 16
        %v2204 = vrot.slane %v2202, 4
        %v2205 = vshll.u32 %v1999, 16
        %v2207 = vrot.slane %v2205, 5
        %v2208 = vor.u32 %v2204, %v2207
        %v2209 = vrot.slane %v2208, 4
        %v2211 = vshll.u32 %v2000, 16
        %v2213 = vrot.slane %v2211, 5
        %v2214 = vsel %vm812, %v2209, %v2213
        %v2215 = vshrl.u32 %v2000, 16
        %v2217 = vrot.slane %v2215, 4
        %v2218 = vor.u32 %v2217, %v2213
        %v2219 = vrot.slane %v2218, 4
        %v2221 = vshll.u32 %v2024, 16
        %v2223 = vrot.slane %v2221, 5
        %v2224 = vsel %vm812, %v2219, %v2223
        %v2226 = vshrl.u32 %v2001, 16
        %v2228 = vrot.slane %v2226, 4
        %v2229 = vshll.u32 %v2001, 16
        %v2231 = vrot.slane %v2229, 5
        %v2232 = vor.u32 %v2228, %v2231
        %v2233 = vrot.slane %v2232, 4
        %v2235 = vshll.u32 %v2002, 16
        %v2237 = vrot.slane %v2235, 5
        %v2238 = vsel %vm812, %v2233, %v2237
        %v2239 = vshrl.u32 %v2002, 16
        %v2241 = vrot.slane %v2239, 4
        %v2242 = vor.u32 %v2241, %v2237
        %v2243 = vrot.slane %v2242, 4
        %v2245 = vshll.u32 %v2025, 16
        %v2247 = vrot.slane %v2245, 5
        %v2248 = vsel %vm812, %v2243, %v2247
        %v2250 = vshrl.u32 %v2003, 16
        %v2252 = vrot.slane %v2250, 4
        %v2253 = vshll.u32 %v2003, 16
        %v2255 = vrot.slane %v2253, 5
        %v2256 = vor.u32 %v2252, %v2255
        %v2257 = vrot.slane %v2256, 4
        %v2259 = vshll.u32 %v2004, 16
        %v2261 = vrot.slane %v2259, 5
        %v2262 = vsel %vm812, %v2257, %v2261
        %v2263 = vshrl.u32 %v2004, 16
        %v2265 = vrot.slane %v2263, 4
        %v2266 = vor.u32 %v2265, %v2261
        %v2267 = vrot.slane %v2266, 4
        %v2269 = vshll.u32 %v2026, 16
        %v2271 = vrot.slane %v2269, 5
        %v2272 = vsel %vm812, %v2267, %v2271
        %v2274 = vshrl.u32 %v2005, 16
        %v2276 = vrot.slane %v2274, 4
        %v2277 = vshll.u32 %v2005, 16
        %v2279 = vrot.slane %v2277, 5
        %v2280 = vor.u32 %v2276, %v2279
        %v2281 = vrot.slane %v2280, 4
        %v2283 = vshll.u32 %v2006, 16
        %v2285 = vrot.slane %v2283, 5
        %v2286 = vsel %vm812, %v2281, %v2285
        %v2287 = vshrl.u32 %v2006, 16
        %v2289 = vrot.slane %v2287, 4
        %v2290 = vor.u32 %v2289, %v2285
        %v2291 = vrot.slane %v2290, 4
        %v2293 = vshll.u32 %v2027, 16
        %v2295 = vrot.slane %v2293, 5
        %v2296 = vsel %vm812, %v2291, %v2295
        %v2298 = vshrl.u32 %v2007, 16
        %v2300 = vrot.slane %v2298, 4
        %v2301 = vshll.u32 %v2007, 16
        %v2303 = vrot.slane %v2301, 5
        %v2304 = vor.u32 %v2300, %v2303
        %v2305 = vrot.slane %v2304, 4
        %v2307 = vshll.u32 %v2008, 16
        %v2309 = vrot.slane %v2307, 5
        %v2310 = vsel %vm812, %v2305, %v2309
        %v2311 = vshrl.u32 %v2008, 16
        %v2313 = vrot.slane %v2311, 4
        %v2314 = vor.u32 %v2313, %v2309
        %v2315 = vrot.slane %v2314, 4
        %v2317 = vshll.u32 %v2028, 16
        %v2319 = vrot.slane %v2317, 5
        %v2320 = vsel %vm812, %v2315, %v2319
        %v2322 = vshrl.u32 %v2009, 16
        %v2324 = vrot.slane %v2322, 4
        %v2325 = vshll.u32 %v2009, 16
        %v2327 = vrot.slane %v2325, 5
        %v2328 = vor.u32 %v2324, %v2327
        %v2329 = vrot.slane %v2328, 4
        %v2331 = vshll.u32 %v2010, 16
        %v2333 = vrot.slane %v2331, 5
        %v2334 = vsel %vm812, %v2329, %v2333
        %v2335 = vshrl.u32 %v2010, 16
        %v2337 = vrot.slane %v2335, 4
        %v2338 = vor.u32 %v2337, %v2333
        %v2339 = vrot.slane %v2338, 4
        %v2341 = vshll.u32 %v2029, 16
        %v2343 = vrot.slane %v2341, 5
        %v2344 = vsel %vm812, %v2339, %v2343
        %v2346 = vshrl.u32 %v2011, 16
        %v2348 = vrot.slane %v2346, 4
        %v2349 = vshll.u32 %v2011, 16
        %v2351 = vrot.slane %v2349, 5
        %v2352 = vor.u32 %v2348, %v2351
        %v2353 = vrot.slane %v2352, 4
        %v2355 = vshll.u32 %v2012, 16
        %v2357 = vrot.slane %v2355, 5
        %v2358 = vsel %vm812, %v2353, %v2357
        %v2359 = vshrl.u32 %v2012, 16
        %v2361 = vrot.slane %v2359, 4
        %v2362 = vor.u32 %v2361, %v2357
        %v2363 = vrot.slane %v2362, 4
        %v2365 = vshll.u32 %v2030, 16
        %v2367 = vrot.slane %v2365, 5
        %v2368 = vsel %vm812, %v2363, %v2367
        %v2370 = vshrl.u32 %v2013, 16
        %v2372 = vrot.slane %v2370, 4
        %v2373 = vshll.u32 %v2013, 16
        %v2375 = vrot.slane %v2373, 5
        %v2376 = vor.u32 %v2372, %v2375
        %v2377 = vrot.slane %v2376, 4
        %v2379 = vshll.u32 %v2014, 16
        %v2381 = vrot.slane %v2379, 5
        %v2382 = vsel %vm812, %v2377, %v2381
        %v2383 = vshrl.u32 %v2014, 16
        %v2385 = vrot.slane %v2383, 4
        %v2386 = vor.u32 %v2385, %v2381
        %v2387 = vrot.slane %v2386, 4
        %v2389 = vshll.u32 %v2031, 16
        %v2391 = vrot.slane %v2389, 5
        %v2392 = vsel %vm812, %v2387, %v2391
        %v2394 = vshrl.u32 %v2015, 16
        %v2396 = vrot.slane %v2394, 4
        %v2397 = vshll.u32 %v2015, 16
        %v2399 = vrot.slane %v2397, 5
        %v2400 = vor.u32 %v2396, %v2399
        %v2401 = vrot.slane %v2400, 4
        %v2403 = vshll.u32 %v2016, 16
        %v2405 = vrot.slane %v2403, 5
        %v2406 = vsel %vm812, %v2401, %v2405
        %v2407 = vshrl.u32 %v2016, 16
        %v2409 = vrot.slane %v2407, 4
        %v2410 = vor.u32 %v2409, %v2405
        %v2411 = vrot.slane %v2410, 4
        %v2413 = vshll.u32 %v2032, 16
        %v2415 = vrot.slane %v2413, 5
        %v2416 = vsel %vm812, %v2411, %v2415
        %v2417 = vld [vmem:[%s1984] sm:$0xe]
        %v2418 = vld [vmem:[%s1984 + $0xc] sm:$0xe]
        %v2419 = vld [vmem:[%s1984 + $0x18] sm:$0xe]
        %v2420 = vld [vmem:[%s1984 + $0x24] sm:$0xe]
        %v2421 = vld [vmem:[%s1984 + $0x30] sm:$0xe]
        %v2422 = vld [vmem:[%s1984 + $0x3c] sm:$0xe]
        %v2423 = vld [vmem:[%s1984 + $0x48] sm:$0xe]
        %v2424 = vld [vmem:[%s1984 + $0x54] sm:$0xe]
        %v2425 = vld [vmem:[%s1984 + $0x60] sm:$0xe]
        %v2426 = vld [vmem:[%s1984 + $0x6c] sm:$0xe]
        %v2427 = vld [vmem:[%s1984 + $0x78] sm:$0xe]
        %v2428 = vld [vmem:[%s1984 + $0x84] sm:$0xe]
        %v2429 = vld [vmem:[%s1984 + $0x90] sm:$0xe]
        %v2430 = vld [vmem:[%s1984 + $0x9c] sm:$0xe]
        %v2431 = vld [vmem:[%s1984 + $0xa8] sm:$0xe]
        %v2432 = vld [vmem:[%s1984 + $0xb4] sm:$0xe]
        %v2481 = vrot.slane %v2417, 5
        %v2482 = vrot.slane %v2481, 4
        %v2483 = vrot.slane %v1986, 5
        %v2484 = vsel %vm1263, %v2482, %v2483
        %v2485 = vrot.slane %v2483, 4
        %v2486 = vrot.slane %v2017, 5
        %v2487 = vsel %vm1263, %v2485, %v2486
        %v2488 = vrot.slane %v2418, 5
        %v2489 = vrot.slane %v2488, 4
        %v2490 = vrot.slane %v1988, 5
        %v2491 = vsel %vm1263, %v2489, %v2490
        %v2492 = vrot.slane %v2490, 4
        %v2493 = vrot.slane %v2018, 5
        %v2494 = vsel %vm1263, %v2492, %v2493
        %v2495 = vrot.slane %v2419, 5
        %v2496 = vrot.slane %v2495, 4
        %v2497 = vrot.slane %v1990, 5
        %v2498 = vsel %vm1263, %v2496, %v2497
        %v2499 = vrot.slane %v2497, 4
        %v2500 = vrot.slane %v2019, 5
        %v2501 = vsel %vm1263, %v2499, %v2500
        %v2502 = vrot.slane %v2420, 5
        %v2503 = vrot.slane %v2502, 4
        %v2504 = vrot.slane %v1992, 5
        %v2505 = vsel %vm1263, %v2503, %v2504
        %v2506 = vrot.slane %v2504, 4
        %v2507 = vrot.slane %v2020, 5
        %v2508 = vsel %vm1263, %v2506, %v2507
        %v2509 = vrot.slane %v2421, 5
        %v2510 = vrot.slane %v2509, 4
        %v2511 = vrot.slane %v1994, 5
        %v2512 = vsel %vm1263, %v2510, %v2511
        %v2513 = vrot.slane %v2511, 4
        %v2514 = vrot.slane %v2021, 5
        %v2515 = vsel %vm1263, %v2513, %v2514
        %v2516 = vrot.slane %v2422, 5
        %v2517 = vrot.slane %v2516, 4
        %v2518 = vrot.slane %v1996, 5
        %v2519 = vsel %vm1263, %v2517, %v2518
        %v2520 = vrot.slane %v2518, 4
        %v2521 = vrot.slane %v2022, 5
        %v2522 = vsel %vm1263, %v2520, %v2521
        %v2523 = vrot.slane %v2423, 5
        %v2524 = vrot.slane %v2523, 4
        %v2525 = vrot.slane %v1998, 5
        %v2526 = vsel %vm1263, %v2524, %v2525
        %v2527 = vrot.slane %v2525, 4
        %v2528 = vrot.slane %v2023, 5
        %v2529 = vsel %vm1263, %v2527, %v2528
        %v2530 = vrot.slane %v2424, 5
        %v2531 = vrot.slane %v2530, 4
        %v2532 = vrot.slane %v2000, 5
        %v2533 = vsel %vm1263, %v2531, %v2532
        %v2534 = vrot.slane %v2532, 4
        %v2535 = vrot.slane %v2024, 5
        %v2536 = vsel %vm1263, %v2534, %v2535
        %v2537 = vrot.slane %v2425, 5
        %v2538 = vrot.slane %v2537, 4
        %v2539 = vrot.slane %v2002, 5
        %v2540 = vsel %vm1263, %v2538, %v2539
        %v2541 = vrot.slane %v2539, 4
        %v2542 = vrot.slane %v2025, 5
        %v2543 = vsel %vm1263, %v2541, %v2542
        %v2544 = vrot.slane %v2426, 5
        %v2545 = vrot.slane %v2544, 4
        %v2546 = vrot.slane %v2004, 5
        %v2547 = vsel %vm1263, %v2545, %v2546
        %v2548 = vrot.slane %v2546, 4
        %v2549 = vrot.slane %v2026, 5
        %v2550 = vsel %vm1263, %v2548, %v2549
        %v2551 = vrot.slane %v2427, 5
        %v2552 = vrot.slane %v2551, 4
        %v2553 = vrot.slane %v2006, 5
        %v2554 = vsel %vm1263, %v2552, %v2553
        %v2555 = vrot.slane %v2553, 4
        %v2556 = vrot.slane %v2027, 5
        %v2557 = vsel %vm1263, %v2555, %v2556
        %v2558 = vrot.slane %v2428, 5
        %v2559 = vrot.slane %v2558, 4
        %v2560 = vrot.slane %v2008, 5
        %v2561 = vsel %vm1263, %v2559, %v2560
        %v2562 = vrot.slane %v2560, 4
        %v2563 = vrot.slane %v2028, 5
        %v2564 = vsel %vm1263, %v2562, %v2563
        %v2565 = vrot.slane %v2429, 5
        %v2566 = vrot.slane %v2565, 4
        %v2567 = vrot.slane %v2010, 5
        %v2568 = vsel %vm1263, %v2566, %v2567
        %v2569 = vrot.slane %v2567, 4
        %v2570 = vrot.slane %v2029, 5
        %v2571 = vsel %vm1263, %v2569, %v2570
        %v2572 = vrot.slane %v2430, 5
        %v2573 = vrot.slane %v2572, 4
        %v2574 = vrot.slane %v2012, 5
        %v2575 = vsel %vm1263, %v2573, %v2574
        %v2576 = vrot.slane %v2574, 4
        %v2577 = vrot.slane %v2030, 5
        %v2578 = vsel %vm1263, %v2576, %v2577
        %v2579 = vrot.slane %v2431, 5
        %v2580 = vrot.slane %v2579, 4
        %v2581 = vrot.slane %v2014, 5
        %v2582 = vsel %vm1263, %v2580, %v2581
        %v2583 = vrot.slane %v2581, 4
        %v2584 = vrot.slane %v2031, 5
        %v2585 = vsel %vm1263, %v2583, %v2584
        %v2586 = vrot.slane %v2432, 5
        %v2587 = vrot.slane %v2586, 4
        %v2588 = vrot.slane %v2016, 5
        %v2589 = vsel %vm1263, %v2587, %v2588
        %v2590 = vrot.slane %v2588, 4
        %v2591 = vrot.slane %v2032, 5
        %v2592 = vsel %vm1263, %v2590, %v2591
        %v2609 = vunpack.c.l.b16 %v762
        %v2610 = vunpack.c.l.b16 %v763
        %v2611 = vunpack.c.l.b16 %v764
        %v2612 = vunpack.c.l.b16 %v765
        %v2613 = vunpack.c.l.b16 %v766
        %v2614 = vunpack.c.l.b16 %v767
        %v2615 = vunpack.c.l.b16 %v768
        %v2616 = vunpack.c.l.b16 %v769
        %v2617 = vunpack.c.l.b16 %v770
        %v2618 = vunpack.c.l.b16 %v771
        %v2619 = vunpack.c.l.b16 %v772
        %v2620 = vunpack.c.l.b16 %v773
        %v2621 = vunpack.c.l.b16 %v774
        %v2622 = vunpack.c.l.b16 %v775
        %v2623 = vunpack.c.l.b16 %v776
        %v2624 = vunpack.c.l.b16 %v777
        %v2625 = vunpack.c.l.b16 %v778
        %v2626 = vunpack.c.l.b16 %v779
        %v2627 = vunpack.c.l.b16 %v780
        %v2628 = vunpack.c.l.b16 %v781
        %v2629 = vunpack.c.l.b16 %v782
        %v2630 = vunpack.c.l.b16 %v783
        %v2631 = vunpack.c.l.b16 %v784
        %v2632 = vunpack.c.l.b16 %v785
        %v2633 = vunpack.c.l.b16 %v786
        %v2634 = vunpack.c.l.b16 %v787
        %v2635 = vunpack.c.l.b16 %v788
        %v2636 = vunpack.c.l.b16 %v789
        %v2637 = vunpack.c.l.b16 %v790
        %v2638 = vunpack.c.l.b16 %v791
        %v2639 = vunpack.c.l.b16 %v792
        %v2640 = vunpack.c.l.b16 %v793
        %v2641 = vpack.c.b16 %v2610, %v2609
        %v2642 = vpack.c.b16 %v2612, %v2611
        %v2643 = vpack.c.b16 %v2614, %v2613
        %v2644 = vpack.c.b16 %v2616, %v2615
        %v2645 = vpack.c.b16 %v2618, %v2617
        %v2646 = vpack.c.b16 %v2620, %v2619
        %v2647 = vpack.c.b16 %v2622, %v2621
        %v2648 = vpack.c.b16 %v2624, %v2623
        %v2649 = vpack.c.b16 %v2626, %v2625
        %v2650 = vpack.c.b16 %v2628, %v2627
        %v2651 = vpack.c.b16 %v2630, %v2629
        %v2652 = vpack.c.b16 %v2632, %v2631
        %v2653 = vpack.c.b16 %v2634, %v2633
        %v2654 = vpack.c.b16 %v2636, %v2635
        %v2655 = vpack.c.b16 %v2638, %v2637
        %v2656 = vpack.c.b16 %v2640, %v2639
        %v2657 = vunpack.c.l.b16 %v826
        %v2658 = vunpack.c.l.b16 %v836
        %v2659 = vunpack.c.l.b16 %v850
        %v2660 = vunpack.c.l.b16 %v860
        %v2661 = vunpack.c.l.b16 %v874
        %v2662 = vunpack.c.l.b16 %v884
        %v2663 = vunpack.c.l.b16 %v898
        %v2664 = vunpack.c.l.b16 %v908
        %v2665 = vunpack.c.l.b16 %v922
        %v2666 = vunpack.c.l.b16 %v932
        %v2667 = vunpack.c.l.b16 %v946
        %v2668 = vunpack.c.l.b16 %v956
        %v2669 = vunpack.c.l.b16 %v970
        %v2670 = vunpack.c.l.b16 %v980
        %v2671 = vunpack.c.l.b16 %v994
        %v2672 = vunpack.c.l.b16 %v1004
        %v2673 = vunpack.c.l.b16 %v1018
        %v2674 = vunpack.c.l.b16 %v1028
        %v2675 = vunpack.c.l.b16 %v1042
        %v2676 = vunpack.c.l.b16 %v1052
        %v2677 = vunpack.c.l.b16 %v1066
        %v2678 = vunpack.c.l.b16 %v1076
        %v2679 = vunpack.c.l.b16 %v1090
        %v2680 = vunpack.c.l.b16 %v1100
        %v2681 = vunpack.c.l.b16 %v1114
        %v2682 = vunpack.c.l.b16 %v1124
        %v2683 = vunpack.c.l.b16 %v1138
        %v2684 = vunpack.c.l.b16 %v1148
        %v2685 = vunpack.c.l.b16 %v1162
        %v2686 = vunpack.c.l.b16 %v1172
        %v2687 = vunpack.c.l.b16 %v1186
        %v2688 = vunpack.c.l.b16 %v1196
        %v2689 = vpack.c.b16 %v2658, %v2657
        %v2690 = vpack.c.b16 %v2660, %v2659
        %v2691 = vpack.c.b16 %v2662, %v2661
        %v2692 = vpack.c.b16 %v2664, %v2663
        %v2693 = vpack.c.b16 %v2666, %v2665
        %v2694 = vpack.c.b16 %v2668, %v2667
        %v2695 = vpack.c.b16 %v2670, %v2669
        %v2696 = vpack.c.b16 %v2672, %v2671
        %v2697 = vpack.c.b16 %v2674, %v2673
        %v2698 = vpack.c.b16 %v2676, %v2675
        %v2699 = vpack.c.b16 %v2678, %v2677
        %v2700 = vpack.c.b16 %v2680, %v2679
        %v2701 = vpack.c.b16 %v2682, %v2681
        %v2702 = vpack.c.b16 %v2684, %v2683
        %v2703 = vpack.c.b16 %v2686, %v2685
        %v2704 = vpack.c.b16 %v2688, %v2687
        %2705 = vrot.lane.b32.xlu0 %v2689, 4
        %v2706 = vpop.permute.xlu0 %2705
        %2707 = vrot.lane.b32.xlu0 %v2690, 4
        %v2708 = vpop.permute.xlu0 %2707
        %2709 = vrot.lane.b32.xlu0 %v2691, 4
        %v2710 = vpop.permute.xlu0 %2709
        %2711 = vrot.lane.b32.xlu0 %v2692, 4
        %v2712 = vpop.permute.xlu0 %2711
        %2713 = vrot.lane.b32.xlu0 %v2693, 4
        %v2714 = vpop.permute.xlu0 %2713
        %2715 = vrot.lane.b32.xlu0 %v2694, 4
        %v2716 = vpop.permute.xlu0 %2715
        %2717 = vrot.lane.b32.xlu0 %v2695, 4
        %v2718 = vpop.permute.xlu0 %2717
        %2719 = vrot.lane.b32.xlu0 %v2696, 4
        %v2720 = vpop.permute.xlu0 %2719
        %2721 = vrot.lane.b32.xlu0 %v2697, 4
        %v2722 = vpop.permute.xlu0 %2721
        %2723 = vrot.lane.b32.xlu0 %v2698, 4
        %v2724 = vpop.permute.xlu0 %2723
        %2725 = vrot.lane.b32.xlu0 %v2699, 4
        %v2726 = vpop.permute.xlu0 %2725
        %2727 = vrot.lane.b32.xlu0 %v2700, 4
        %v2728 = vpop.permute.xlu0 %2727
        %2729 = vrot.lane.b32.xlu0 %v2701, 4
        %v2730 = vpop.permute.xlu0 %2729
        %2731 = vrot.lane.b32.xlu0 %v2702, 4
        %v2732 = vpop.permute.xlu0 %2731
        %2733 = vrot.lane.b32.xlu0 %v2703, 4
        %v2734 = vpop.permute.xlu0 %2733
        %2735 = vrot.lane.b32.xlu0 %v2704, 4
        %v2736 = vpop.permute.xlu0 %2735
        %v2737 = vunpack.c.l.b16 %v1267
        %v2738 = vunpack.c.l.b16 %v1270
        %v2739 = vunpack.c.l.b16 %v1274
        %v2740 = vunpack.c.l.b16 %v1277
        %v2741 = vunpack.c.l.b16 %v1281
        %v2742 = vunpack.c.l.b16 %v1284
        %v2743 = vunpack.c.l.b16 %v1288
        %v2744 = vunpack.c.l.b16 %v1291
        %v2745 = vunpack.c.l.b16 %v1295
        %v2746 = vunpack.c.l.b16 %v1298
        %v2747 = vunpack.c.l.b16 %v1302
        %v2748 = vunpack.c.l.b16 %v1305
        %v2749 = vunpack.c.l.b16 %v1309
        %v2750 = vunpack.c.l.b16 %v1312
        %v2751 = vunpack.c.l.b16 %v1316
        %v2752 = vunpack.c.l.b16 %v1319
        %v2753 = vunpack.c.l.b16 %v1323
        %v2754 = vunpack.c.l.b16 %v1326
        %v2755 = vunpack.c.l.b16 %v1330
        %v2756 = vunpack.c.l.b16 %v1333
        %v2757 = vunpack.c.l.b16 %v1337
        %v2758 = vunpack.c.l.b16 %v1340
        %v2759 = vunpack.c.l.b16 %v1344
        %v2760 = vunpack.c.l.b16 %v1347
        %v2761 = vunpack.c.l.b16 %v1351
        %v2762 = vunpack.c.l.b16 %v1354
        %v2763 = vunpack.c.l.b16 %v1358
        %v2764 = vunpack.c.l.b16 %v1361
        %v2765 = vunpack.c.l.b16 %v1365
        %v2766 = vunpack.c.l.b16 %v1368
        %v2767 = vunpack.c.l.b16 %v1372
        %v2768 = vunpack.c.l.b16 %v1375
        %v2769 = vpack.c.b16 %v2738, %v2737
        %v2770 = vpack.c.b16 %v2740, %v2739
        %v2771 = vpack.c.b16 %v2742, %v2741
        %v2772 = vpack.c.b16 %v2744, %v2743
        %v2773 = vpack.c.b16 %v2746, %v2745
        %v2774 = vpack.c.b16 %v2748, %v2747
        %v2775 = vpack.c.b16 %v2750, %v2749
        %v2776 = vpack.c.b16 %v2752, %v2751
        %v2777 = vpack.c.b16 %v2754, %v2753
        %v2778 = vpack.c.b16 %v2756, %v2755
        %v2779 = vpack.c.b16 %v2758, %v2757
        %v2780 = vpack.c.b16 %v2760, %v2759
        %v2781 = vpack.c.b16 %v2762, %v2761
        %v2782 = vpack.c.b16 %v2764, %v2763
        %v2783 = vpack.c.b16 %v2766, %v2765
        %v2784 = vpack.c.b16 %v2768, %v2767
        %2785 = vrot.lane.b32.xlu0 %v2769, 8
        %v2786 = vpop.permute.xlu0 %2785
        %2787 = vrot.lane.b32.xlu0 %v2770, 8
        %v2788 = vpop.permute.xlu0 %2787
        %2789 = vrot.lane.b32.xlu0 %v2771, 8
        %v2790 = vpop.permute.xlu0 %2789
        %2791 = vrot.lane.b32.xlu0 %v2772, 8
        %v2792 = vpop.permute.xlu0 %2791
        %2793 = vrot.lane.b32.xlu0 %v2773, 8
        %v2794 = vpop.permute.xlu0 %2793
        %2795 = vrot.lane.b32.xlu0 %v2774, 8
        %v2796 = vpop.permute.xlu0 %2795
        %2797 = vrot.lane.b32.xlu0 %v2775, 8
        %v2798 = vpop.permute.xlu0 %2797
        %2799 = vrot.lane.b32.xlu0 %v2776, 8
        %v2800 = vpop.permute.xlu0 %2799
        %2801 = vrot.lane.b32.xlu0 %v2777, 8
        %v2802 = vpop.permute.xlu0 %2801
        %2803 = vrot.lane.b32.xlu0 %v2778, 8
        %v2804 = vpop.permute.xlu0 %2803
        %2805 = vrot.lane.b32.xlu0 %v2779, 8
        %v2806 = vpop.permute.xlu0 %2805
        %2807 = vrot.lane.b32.xlu0 %v2780, 8
        %v2808 = vpop.permute.xlu0 %2807
        %2809 = vrot.lane.b32.xlu0 %v2781, 8
        %v2810 = vpop.permute.xlu0 %2809
        %2811 = vrot.lane.b32.xlu0 %v2782, 8
        %v2812 = vpop.permute.xlu0 %2811
        %2813 = vrot.lane.b32.xlu0 %v2783, 8
        %v2814 = vpop.permute.xlu0 %2813
        %2815 = vrot.lane.b32.xlu0 %v2784, 8
        %v2816 = vpop.permute.xlu0 %2815
        %v2833 = vunpack.c.l.b16 %v1376
        %v2834 = vunpack.c.l.b16 %v1377
        %v2835 = vunpack.c.l.b16 %v1378
        %v2836 = vunpack.c.l.b16 %v1379
        %v2837 = vunpack.c.l.b16 %v1380
        %v2838 = vunpack.c.l.b16 %v1381
        %v2839 = vunpack.c.l.b16 %v1382
        %v2840 = vunpack.c.l.b16 %v1383
        %v2841 = vunpack.c.l.b16 %v1384
        %v2842 = vunpack.c.l.b16 %v1385
        %v2843 = vunpack.c.l.b16 %v1386
        %v2844 = vunpack.c.l.b16 %v1387
        %v2845 = vunpack.c.l.b16 %v1388
        %v2846 = vunpack.c.l.b16 %v1389
        %v2847 = vunpack.c.l.b16 %v1390
        %v2848 = vunpack.c.l.b16 %v1391
        %v2849 = vunpack.c.l.b16 %v1392
        %v2850 = vunpack.c.l.b16 %v1393
        %v2851 = vunpack.c.l.b16 %v1394
        %v2852 = vunpack.c.l.b16 %v1395
        %v2853 = vunpack.c.l.b16 %v1396
        %v2854 = vunpack.c.l.b16 %v1397
        %v2855 = vunpack.c.l.b16 %v1398
        %v2856 = vunpack.c.l.b16 %v1399
        %v2857 = vunpack.c.l.b16 %v1400
        %v2858 = vunpack.c.l.b16 %v1401
        %v2859 = vunpack.c.l.b16 %v1402
        %v2860 = vunpack.c.l.b16 %v1403
        %v2861 = vunpack.c.l.b16 %v1404
        %v2862 = vunpack.c.l.b16 %v1405
        %v2863 = vunpack.c.l.b16 %v1406
        %v2864 = vunpack.c.l.b16 %v1407
        %v2865 = vpack.c.b16 %v2834, %v2833
        %v2866 = vpack.c.b16 %v2836, %v2835
        %v2867 = vpack.c.b16 %v2838, %v2837
        %v2868 = vpack.c.b16 %v2840, %v2839
        %v2869 = vpack.c.b16 %v2842, %v2841
        %v2870 = vpack.c.b16 %v2844, %v2843
        %v2871 = vpack.c.b16 %v2846, %v2845
        %v2872 = vpack.c.b16 %v2848, %v2847
        %v2873 = vpack.c.b16 %v2850, %v2849
        %v2874 = vpack.c.b16 %v2852, %v2851
        %v2875 = vpack.c.b16 %v2854, %v2853
        %v2876 = vpack.c.b16 %v2856, %v2855
        %v2877 = vpack.c.b16 %v2858, %v2857
        %v2878 = vpack.c.b16 %v2860, %v2859
        %v2879 = vpack.c.b16 %v2862, %v2861
        %v2880 = vpack.c.b16 %v2864, %v2863
        %2881 = vrot.lane.b32.xlu0 %v2865, 12
        %v2882 = vpop.permute.xlu0 %2881
        %2883 = vrot.lane.b32.xlu0 %v2866, 12
        %v2884 = vpop.permute.xlu0 %2883
        %2885 = vrot.lane.b32.xlu0 %v2867, 12
        %v2886 = vpop.permute.xlu0 %2885
        %2887 = vrot.lane.b32.xlu0 %v2868, 12
        %v2888 = vpop.permute.xlu0 %2887
        %2889 = vrot.lane.b32.xlu0 %v2869, 12
        %v2890 = vpop.permute.xlu0 %2889
        %2891 = vrot.lane.b32.xlu0 %v2870, 12
        %v2892 = vpop.permute.xlu0 %2891
        %2893 = vrot.lane.b32.xlu0 %v2871, 12
        %v2894 = vpop.permute.xlu0 %2893
        %2895 = vrot.lane.b32.xlu0 %v2872, 12
        %v2896 = vpop.permute.xlu0 %2895
        %2897 = vrot.lane.b32.xlu0 %v2873, 12
        %v2898 = vpop.permute.xlu0 %2897
        %2899 = vrot.lane.b32.xlu0 %v2874, 12
        %v2900 = vpop.permute.xlu0 %2899
        %2901 = vrot.lane.b32.xlu0 %v2875, 12
        %v2902 = vpop.permute.xlu0 %2901
        %2903 = vrot.lane.b32.xlu0 %v2876, 12
        %v2904 = vpop.permute.xlu0 %2903
        %2905 = vrot.lane.b32.xlu0 %v2877, 12
        %v2906 = vpop.permute.xlu0 %2905
        %2907 = vrot.lane.b32.xlu0 %v2878, 12
        %v2908 = vpop.permute.xlu0 %2907
        %2909 = vrot.lane.b32.xlu0 %v2879, 12
        %v2910 = vpop.permute.xlu0 %2909
        %2911 = vrot.lane.b32.xlu0 %v2880, 12
        %v2912 = vpop.permute.xlu0 %2911
        %v2913 = vunpack.c.l.b16 %v1437
        %v2914 = vunpack.c.l.b16 %v1447
        %v2915 = vunpack.c.l.b16 %v1461
        %v2916 = vunpack.c.l.b16 %v1471
        %v2917 = vunpack.c.l.b16 %v1485
        %v2918 = vunpack.c.l.b16 %v1495
        %v2919 = vunpack.c.l.b16 %v1509
        %v2920 = vunpack.c.l.b16 %v1519
        %v2921 = vunpack.c.l.b16 %v1533
        %v2922 = vunpack.c.l.b16 %v1543
        %v2923 = vunpack.c.l.b16 %v1557
        %v2924 = vunpack.c.l.b16 %v1567
        %v2925 = vunpack.c.l.b16 %v1581
        %v2926 = vunpack.c.l.b16 %v1591
        %v2927 = vunpack.c.l.b16 %v1605
        %v2928 = vunpack.c.l.b16 %v1615
        %v2929 = vunpack.c.l.b16 %v1629
        %v2930 = vunpack.c.l.b16 %v1639
        %v2931 = vunpack.c.l.b16 %v1653
        %v2932 = vunpack.c.l.b16 %v1663
        %v2933 = vunpack.c.l.b16 %v1677
        %v2934 = vunpack.c.l.b16 %v1687
        %v2935 = vunpack.c.l.b16 %v1701
        %v2936 = vunpack.c.l.b16 %v1711
        %v2937 = vunpack.c.l.b16 %v1725
        %v2938 = vunpack.c.l.b16 %v1735
        %v2939 = vunpack.c.l.b16 %v1749
        %v2940 = vunpack.c.l.b16 %v1759
        %v2941 = vunpack.c.l.b16 %v1773
        %v2942 = vunpack.c.l.b16 %v1783
        %v2943 = vunpack.c.l.b16 %v1797
        %v2944 = vunpack.c.l.b16 %v1807
        %v2945 = vpack.c.b16 %v2914, %v2913
        %v2946 = vpack.c.b16 %v2916, %v2915
        %v2947 = vpack.c.b16 %v2918, %v2917
        %v2948 = vpack.c.b16 %v2920, %v2919
        %v2949 = vpack.c.b16 %v2922, %v2921
        %v2950 = vpack.c.b16 %v2924, %v2923
        %v2951 = vpack.c.b16 %v2926, %v2925
        %v2952 = vpack.c.b16 %v2928, %v2927
        %v2953 = vpack.c.b16 %v2930, %v2929
        %v2954 = vpack.c.b16 %v2932, %v2931
        %v2955 = vpack.c.b16 %v2934, %v2933
        %v2956 = vpack.c.b16 %v2936, %v2935
        %v2957 = vpack.c.b16 %v2938, %v2937
        %v2958 = vpack.c.b16 %v2940, %v2939
        %v2959 = vpack.c.b16 %v2942, %v2941
        %v2960 = vpack.c.b16 %v2944, %v2943
        %2961 = vrot.lane.b32.xlu0 %v2945, 16
        %v2962 = vpop.permute.xlu0 %2961
        %2963 = vrot.lane.b32.xlu0 %v2946, 16
        %v2964 = vpop.permute.xlu0 %2963
        %2965 = vrot.lane.b32.xlu0 %v2947, 16
        %v2966 = vpop.permute.xlu0 %2965
        %2967 = vrot.lane.b32.xlu0 %v2948, 16
        %v2968 = vpop.permute.xlu0 %2967
        %2969 = vrot.lane.b32.xlu0 %v2949, 16
        %v2970 = vpop.permute.xlu0 %2969
        %2971 = vrot.lane.b32.xlu0 %v2950, 16
        %v2972 = vpop.permute.xlu0 %2971
        %2973 = vrot.lane.b32.xlu0 %v2951, 16
        %v2974 = vpop.permute.xlu0 %2973
        %2975 = vrot.lane.b32.xlu0 %v2952, 16
        %v2976 = vpop.permute.xlu0 %2975
        %2977 = vrot.lane.b32.xlu0 %v2953, 16
        %v2978 = vpop.permute.xlu0 %2977
        %2979 = vrot.lane.b32.xlu0 %v2954, 16
        %v2980 = vpop.permute.xlu0 %2979
        %2981 = vrot.lane.b32.xlu0 %v2955, 16
        %v2982 = vpop.permute.xlu0 %2981
        %2983 = vrot.lane.b32.xlu0 %v2956, 16
        %v2984 = vpop.permute.xlu0 %2983
        %2985 = vrot.lane.b32.xlu0 %v2957, 16
        %v2986 = vpop.permute.xlu0 %2985
        %2987 = vrot.lane.b32.xlu0 %v2958, 16
        %v2988 = vpop.permute.xlu0 %2987
        %2989 = vrot.lane.b32.xlu0 %v2959, 16
        %v2990 = vpop.permute.xlu0 %2989
        %2991 = vrot.lane.b32.xlu0 %v2960, 16
        %v2992 = vpop.permute.xlu0 %2991
        %v2993 = vunpack.c.l.b16 %v1875
        %v2994 = vunpack.c.l.b16 %v1878
        %v2995 = vunpack.c.l.b16 %v1882
        %v2996 = vunpack.c.l.b16 %v1885
        %v2997 = vunpack.c.l.b16 %v1889
        %v2998 = vunpack.c.l.b16 %v1892
        %v2999 = vunpack.c.l.b16 %v1896
        %v3000 = vunpack.c.l.b16 %v1899
        %v3001 = vunpack.c.l.b16 %v1903
        %v3002 = vunpack.c.l.b16 %v1906
        %v3003 = vunpack.c.l.b16 %v1910
        %v3004 = vunpack.c.l.b16 %v1913
        %v3005 = vunpack.c.l.b16 %v1917
        %v3006 = vunpack.c.l.b16 %v1920
        %v3007 = vunpack.c.l.b16 %v1924
        %v3008 = vunpack.c.l.b16 %v1927
        %v3009 = vunpack.c.l.b16 %v1931
        %v3010 = vunpack.c.l.b16 %v1934
        %v3011 = vunpack.c.l.b16 %v1938
        %v3012 = vunpack.c.l.b16 %v1941
        %v3013 = vunpack.c.l.b16 %v1945
        %v3014 = vunpack.c.l.b16 %v1948
        %v3015 = vunpack.c.l.b16 %v1952
        %v3016 = vunpack.c.l.b16 %v1955
        %v3017 = vunpack.c.l.b16 %v1959
        %v3018 = vunpack.c.l.b16 %v1962
        %v3019 = vunpack.c.l.b16 %v1966
        %v3020 = vunpack.c.l.b16 %v1969
        %v3021 = vunpack.c.l.b16 %v1973
        %v3022 = vunpack.c.l.b16 %v1976
        %v3023 = vunpack.c.l.b16 %v1980
        %v3024 = vunpack.c.l.b16 %v1983
        %v3025 = vpack.c.b16 %v2994, %v2993
        %v3026 = vpack.c.b16 %v2996, %v2995
        %v3027 = vpack.c.b16 %v2998, %v2997
        %v3028 = vpack.c.b16 %v3000, %v2999
        %v3029 = vpack.c.b16 %v3002, %v3001
        %v3030 = vpack.c.b16 %v3004, %v3003
        %v3031 = vpack.c.b16 %v3006, %v3005
        %v3032 = vpack.c.b16 %v3008, %v3007
        %v3033 = vpack.c.b16 %v3010, %v3009
        %v3034 = vpack.c.b16 %v3012, %v3011
        %v3035 = vpack.c.b16 %v3014, %v3013
        %v3036 = vpack.c.b16 %v3016, %v3015
        %v3037 = vpack.c.b16 %v3018, %v3017
        %v3038 = vpack.c.b16 %v3020, %v3019
        %v3039 = vpack.c.b16 %v3022, %v3021
        %v3040 = vpack.c.b16 %v3024, %v3023
        %3041 = vrot.lane.b32.xlu0 %v3025, 20
        %v3042 = vpop.permute.xlu0 %3041
        %3043 = vrot.lane.b32.xlu0 %v3026, 20
        %v3044 = vpop.permute.xlu0 %3043
        %3045 = vrot.lane.b32.xlu0 %v3027, 20
        %v3046 = vpop.permute.xlu0 %3045
        %3047 = vrot.lane.b32.xlu0 %v3028, 20
        %v3048 = vpop.permute.xlu0 %3047
        %3049 = vrot.lane.b32.xlu0 %v3029, 20
        %v3050 = vpop.permute.xlu0 %3049
        %3051 = vrot.lane.b32.xlu0 %v3030, 20
        %v3052 = vpop.permute.xlu0 %3051
        %3053 = vrot.lane.b32.xlu0 %v3031, 20
        %v3054 = vpop.permute.xlu0 %3053
        %3055 = vrot.lane.b32.xlu0 %v3032, 20
        %v3056 = vpop.permute.xlu0 %3055
        %3057 = vrot.lane.b32.xlu0 %v3033, 20
        %v3058 = vpop.permute.xlu0 %3057
        %3059 = vrot.lane.b32.xlu0 %v3034, 20
        %v3060 = vpop.permute.xlu0 %3059
        %3061 = vrot.lane.b32.xlu0 %v3035, 20
        %v3062 = vpop.permute.xlu0 %3061
        %3063 = vrot.lane.b32.xlu0 %v3036, 20
        %v3064 = vpop.permute.xlu0 %3063
        %3065 = vrot.lane.b32.xlu0 %v3037, 20
        %v3066 = vpop.permute.xlu0 %3065
        %3067 = vrot.lane.b32.xlu0 %v3038, 20
        %v3068 = vpop.permute.xlu0 %3067
        %3069 = vrot.lane.b32.xlu0 %v3039, 20
        %v3070 = vpop.permute.xlu0 %3069
        %3071 = vrot.lane.b32.xlu0 %v3040, 20
        %v3072 = vpop.permute.xlu0 %3071
        %v3089 = vunpack.c.l.b16 %v1985
        %v3090 = vunpack.c.l.b16 %v1986
        %v3091 = vunpack.c.l.b16 %v1987
        %v3092 = vunpack.c.l.b16 %v1988
        %v3093 = vunpack.c.l.b16 %v1989
        %v3094 = vunpack.c.l.b16 %v1990
        %v3095 = vunpack.c.l.b16 %v1991
        %v3096 = vunpack.c.l.b16 %v1992
        %v3097 = vunpack.c.l.b16 %v1993
        %v3098 = vunpack.c.l.b16 %v1994
        %v3099 = vunpack.c.l.b16 %v1995
        %v3100 = vunpack.c.l.b16 %v1996
        %v3101 = vunpack.c.l.b16 %v1997
        %v3102 = vunpack.c.l.b16 %v1998
        %v3103 = vunpack.c.l.b16 %v1999
        %v3104 = vunpack.c.l.b16 %v2000
        %v3105 = vunpack.c.l.b16 %v2001
        %v3106 = vunpack.c.l.b16 %v2002
        %v3107 = vunpack.c.l.b16 %v2003
        %v3108 = vunpack.c.l.b16 %v2004
        %v3109 = vunpack.c.l.b16 %v2005
        %v3110 = vunpack.c.l.b16 %v2006
        %v3111 = vunpack.c.l.b16 %v2007
        %v3112 = vunpack.c.l.b16 %v2008
        %v3113 = vunpack.c.l.b16 %v2009
        %v3114 = vunpack.c.l.b16 %v2010
        %v3115 = vunpack.c.l.b16 %v2011
        %v3116 = vunpack.c.l.b16 %v2012
        %v3117 = vunpack.c.l.b16 %v2013
        %v3118 = vunpack.c.l.b16 %v2014
        %v3119 = vunpack.c.l.b16 %v2015
        %v3120 = vunpack.c.l.b16 %v2016
        %v3121 = vpack.c.b16 %v3090, %v3089
        %v3122 = vpack.c.b16 %v3092, %v3091
        %v3123 = vpack.c.b16 %v3094, %v3093
        %v3124 = vpack.c.b16 %v3096, %v3095
        %v3125 = vpack.c.b16 %v3098, %v3097
        %v3126 = vpack.c.b16 %v3100, %v3099
        %v3127 = vpack.c.b16 %v3102, %v3101
        %v3128 = vpack.c.b16 %v3104, %v3103
        %v3129 = vpack.c.b16 %v3106, %v3105
        %v3130 = vpack.c.b16 %v3108, %v3107
        %v3131 = vpack.c.b16 %v3110, %v3109
        %v3132 = vpack.c.b16 %v3112, %v3111
        %v3133 = vpack.c.b16 %v3114, %v3113
        %v3134 = vpack.c.b16 %v3116, %v3115
        %v3135 = vpack.c.b16 %v3118, %v3117
        %v3136 = vpack.c.b16 %v3120, %v3119
        %3137 = vrot.lane.b32.xlu0 %v3121, 24
        %v3138 = vpop.permute.xlu0 %3137
        %3139 = vrot.lane.b32.xlu0 %v3122, 24
        %v3140 = vpop.permute.xlu0 %3139
        %3141 = vrot.lane.b32.xlu0 %v3123, 24
        %v3142 = vpop.permute.xlu0 %3141
        %3143 = vrot.lane.b32.xlu0 %v3124, 24
        %v3144 = vpop.permute.xlu0 %3143
        %3145 = vrot.lane.b32.xlu0 %v3125, 24
        %v3146 = vpop.permute.xlu0 %3145
        %3147 = vrot.lane.b32.xlu0 %v3126, 24
        %v3148 = vpop.permute.xlu0 %3147
        %3149 = vrot.lane.b32.xlu0 %v3127, 24
        %v3150 = vpop.permute.xlu0 %3149
        %3151 = vrot.lane.b32.xlu0 %v3128, 24
        %v3152 = vpop.permute.xlu0 %3151
        %3153 = vrot.lane.b32.xlu0 %v3129, 24
        %v3154 = vpop.permute.xlu0 %3153
        %3155 = vrot.lane.b32.xlu0 %v3130, 24
        %v3156 = vpop.permute.xlu0 %3155
        %3157 = vrot.lane.b32.xlu0 %v3131, 24
        %v3158 = vpop.permute.xlu0 %3157
        %3159 = vrot.lane.b32.xlu0 %v3132, 24
        %v3160 = vpop.permute.xlu0 %3159
        %3161 = vrot.lane.b32.xlu0 %v3133, 24
        %v3162 = vpop.permute.xlu0 %3161
        %3163 = vrot.lane.b32.xlu0 %v3134, 24
        %v3164 = vpop.permute.xlu0 %3163
        %3165 = vrot.lane.b32.xlu0 %v3135, 24
        %v3166 = vpop.permute.xlu0 %3165
        %3167 = vrot.lane.b32.xlu0 %v3136, 24
        %v3168 = vpop.permute.xlu0 %3167
        %v3169 = vunpack.c.l.b16 %v2046
        %v3170 = vunpack.c.l.b16 %v2056
        %v3171 = vunpack.c.l.b16 %v2070
        %v3172 = vunpack.c.l.b16 %v2080
        %v3173 = vunpack.c.l.b16 %v2094
        %v3174 = vunpack.c.l.b16 %v2104
        %v3175 = vunpack.c.l.b16 %v2118
        %v3176 = vunpack.c.l.b16 %v2128
        %v3177 = vunpack.c.l.b16 %v2142
        %v3178 = vunpack.c.l.b16 %v2152
        %v3179 = vunpack.c.l.b16 %v2166
        %v3180 = vunpack.c.l.b16 %v2176
        %v3181 = vunpack.c.l.b16 %v2190
        %v3182 = vunpack.c.l.b16 %v2200
        %v3183 = vunpack.c.l.b16 %v2214
        %v3184 = vunpack.c.l.b16 %v2224
        %v3185 = vunpack.c.l.b16 %v2238
        %v3186 = vunpack.c.l.b16 %v2248
        %v3187 = vunpack.c.l.b16 %v2262
        %v3188 = vunpack.c.l.b16 %v2272
        %v3189 = vunpack.c.l.b16 %v2286
        %v3190 = vunpack.c.l.b16 %v2296
        %v3191 = vunpack.c.l.b16 %v2310
        %v3192 = vunpack.c.l.b16 %v2320
        %v3193 = vunpack.c.l.b16 %v2334
        %v3194 = vunpack.c.l.b16 %v2344
        %v3195 = vunpack.c.l.b16 %v2358
        %v3196 = vunpack.c.l.b16 %v2368
        %v3197 = vunpack.c.l.b16 %v2382
        %v3198 = vunpack.c.l.b16 %v2392
        %v3199 = vunpack.c.l.b16 %v2406
        %v3200 = vunpack.c.l.b16 %v2416
        %v3201 = vpack.c.b16 %v3170, %v3169
        %v3202 = vpack.c.b16 %v3172, %v3171
        %v3203 = vpack.c.b16 %v3174, %v3173
        %v3204 = vpack.c.b16 %v3176, %v3175
        %v3205 = vpack.c.b16 %v3178, %v3177
        %v3206 = vpack.c.b16 %v3180, %v3179
        %v3207 = vpack.c.b16 %v3182, %v3181
        %v3208 = vpack.c.b16 %v3184, %v3183
        %v3209 = vpack.c.b16 %v3186, %v3185
        %v3210 = vpack.c.b16 %v3188, %v3187
        %v3211 = vpack.c.b16 %v3190, %v3189
        %v3212 = vpack.c.b16 %v3192, %v3191
        %v3213 = vpack.c.b16 %v3194, %v3193
        %v3214 = vpack.c.b16 %v3196, %v3195
        %v3215 = vpack.c.b16 %v3198, %v3197
        %v3216 = vpack.c.b16 %v3200, %v3199
        %3217 = vrot.lane.b32.xlu0 %v3201, 28
        %v3218 = vpop.permute.xlu0 %3217
        %3219 = vrot.lane.b32.xlu0 %v3202, 28
        %v3220 = vpop.permute.xlu0 %3219
        %3221 = vrot.lane.b32.xlu0 %v3203, 28
        %v3222 = vpop.permute.xlu0 %3221
        %3223 = vrot.lane.b32.xlu0 %v3204, 28
        %v3224 = vpop.permute.xlu0 %3223
        %3225 = vrot.lane.b32.xlu0 %v3205, 28
        %v3226 = vpop.permute.xlu0 %3225
        %3227 = vrot.lane.b32.xlu0 %v3206, 28
        %v3228 = vpop.permute.xlu0 %3227
        %3229 = vrot.lane.b32.xlu0 %v3207, 28
        %v3230 = vpop.permute.xlu0 %3229
        %3231 = vrot.lane.b32.xlu0 %v3208, 28
        %v3232 = vpop.permute.xlu0 %3231
        %3233 = vrot.lane.b32.xlu0 %v3209, 28
        %v3234 = vpop.permute.xlu0 %3233
        %3235 = vrot.lane.b32.xlu0 %v3210, 28
        %v3236 = vpop.permute.xlu0 %3235
        %3237 = vrot.lane.b32.xlu0 %v3211, 28
        %v3238 = vpop.permute.xlu0 %3237
        %3239 = vrot.lane.b32.xlu0 %v3212, 28
        %v3240 = vpop.permute.xlu0 %3239
        %3241 = vrot.lane.b32.xlu0 %v3213, 28
        %v3242 = vpop.permute.xlu0 %3241
        %3243 = vrot.lane.b32.xlu0 %v3214, 28
        %v3244 = vpop.permute.xlu0 %3243
        %3245 = vrot.lane.b32.xlu0 %v3215, 28
        %v3246 = vpop.permute.xlu0 %3245
        %3247 = vrot.lane.b32.xlu0 %v3216, 28
        %v3248 = vpop.permute.xlu0 %3247
        %v3249 = vunpack.c.l.b16 %v2484
        %v3250 = vunpack.c.l.b16 %v2487
        %v3251 = vunpack.c.l.b16 %v2491
        %v3252 = vunpack.c.l.b16 %v2494
        %v3253 = vunpack.c.l.b16 %v2498
        %v3254 = vunpack.c.l.b16 %v2501
        %v3255 = vunpack.c.l.b16 %v2505
        %v3256 = vunpack.c.l.b16 %v2508
        %v3257 = vunpack.c.l.b16 %v2512
        %v3258 = vunpack.c.l.b16 %v2515
        %v3259 = vunpack.c.l.b16 %v2519
        %v3260 = vunpack.c.l.b16 %v2522
        %v3261 = vunpack.c.l.b16 %v2526
        %v3262 = vunpack.c.l.b16 %v2529
        %v3263 = vunpack.c.l.b16 %v2533
        %v3264 = vunpack.c.l.b16 %v2536
        %v3265 = vunpack.c.l.b16 %v2540
        %v3266 = vunpack.c.l.b16 %v2543
        %v3267 = vunpack.c.l.b16 %v2547
        %v3268 = vunpack.c.l.b16 %v2550
        %v3269 = vunpack.c.l.b16 %v2554
        %v3270 = vunpack.c.l.b16 %v2557
        %v3271 = vunpack.c.l.b16 %v2561
        %v3272 = vunpack.c.l.b16 %v2564
        %v3273 = vunpack.c.l.b16 %v2568
        %v3274 = vunpack.c.l.b16 %v2571
        %v3275 = vunpack.c.l.b16 %v2575
        %v3276 = vunpack.c.l.b16 %v2578
        %v3277 = vunpack.c.l.b16 %v2582
        %v3278 = vunpack.c.l.b16 %v2585
        %v3279 = vunpack.c.l.b16 %v2589
        %v3280 = vunpack.c.l.b16 %v2592
        %v3281 = vpack.c.b16 %v3250, %v3249
        %v3282 = vpack.c.b16 %v3252, %v3251
        %v3283 = vpack.c.b16 %v3254, %v3253
        %v3284 = vpack.c.b16 %v3256, %v3255
        %v3285 = vpack.c.b16 %v3258, %v3257
        %v3286 = vpack.c.b16 %v3260, %v3259
        %v3287 = vpack.c.b16 %v3262, %v3261
        %v3288 = vpack.c.b16 %v3264, %v3263
        %v3289 = vpack.c.b16 %v3266, %v3265
        %v3290 = vpack.c.b16 %v3268, %v3267
        %v3291 = vpack.c.b16 %v3270, %v3269
        %v3292 = vpack.c.b16 %v3272, %v3271
        %v3293 = vpack.c.b16 %v3274, %v3273
        %v3294 = vpack.c.b16 %v3276, %v3275
        %v3295 = vpack.c.b16 %v3278, %v3277
        %v3296 = vpack.c.b16 %v3280, %v3279
        %3297 = vrot.lane.b32.xlu0 %v3281, 32
        %v3298 = vpop.permute.xlu0 %3297
        %3299 = vrot.lane.b32.xlu0 %v3282, 32
        %v3300 = vpop.permute.xlu0 %3299
        %3301 = vrot.lane.b32.xlu0 %v3283, 32
        %v3302 = vpop.permute.xlu0 %3301
        %3303 = vrot.lane.b32.xlu0 %v3284, 32
        %v3304 = vpop.permute.xlu0 %3303
        %3305 = vrot.lane.b32.xlu0 %v3285, 32
        %v3306 = vpop.permute.xlu0 %3305
        %3307 = vrot.lane.b32.xlu0 %v3286, 32
        %v3308 = vpop.permute.xlu0 %3307
        %3309 = vrot.lane.b32.xlu0 %v3287, 32
        %v3310 = vpop.permute.xlu0 %3309
        %3311 = vrot.lane.b32.xlu0 %v3288, 32
        %v3312 = vpop.permute.xlu0 %3311
        %3313 = vrot.lane.b32.xlu0 %v3289, 32
        %v3314 = vpop.permute.xlu0 %3313
        %3315 = vrot.lane.b32.xlu0 %v3290, 32
        %v3316 = vpop.permute.xlu0 %3315
        %3317 = vrot.lane.b32.xlu0 %v3291, 32
        %v3318 = vpop.permute.xlu0 %3317
        %3319 = vrot.lane.b32.xlu0 %v3292, 32
        %v3320 = vpop.permute.xlu0 %3319
        %3321 = vrot.lane.b32.xlu0 %v3293, 32
        %v3322 = vpop.permute.xlu0 %3321
        %3323 = vrot.lane.b32.xlu0 %v3294, 32
        %v3324 = vpop.permute.xlu0 %3323
        %3325 = vrot.lane.b32.xlu0 %v3295, 32
        %v3326 = vpop.permute.xlu0 %3325
        %3327 = vrot.lane.b32.xlu0 %v3296, 32
        %v3328 = vpop.permute.xlu0 %3327
        %vm3329 = vcmask 31744
        %v3332 = vsel %vm3329, %v2641, %v2706
        %v3335 = vsel %vm3329, %v2642, %v2708
        %v3338 = vsel %vm3329, %v2643, %v2710
        %v3341 = vsel %vm3329, %v2644, %v2712
        %v3344 = vsel %vm3329, %v2645, %v2714
        %v3347 = vsel %vm3329, %v2646, %v2716
        %v3350 = vsel %vm3329, %v2647, %v2718
        %v3353 = vsel %vm3329, %v2648, %v2720
        %v3356 = vsel %vm3329, %v2649, %v2722
        %v3359 = vsel %vm3329, %v2650, %v2724
        %v3362 = vsel %vm3329, %v2651, %v2726
        %v3365 = vsel %vm3329, %v2652, %v2728
        %v3368 = vsel %vm3329, %v2653, %v2730
        %v3371 = vsel %vm3329, %v2654, %v2732
        %v3374 = vsel %vm3329, %v2655, %v2734
        %v3377 = vsel %vm3329, %v2656, %v2736
        %vm3378 = vcmask 64512
        %v3380 = vsel %vm3378, %v3332, %v2786
        %v3382 = vsel %vm3378, %v3335, %v2788
        %v3384 = vsel %vm3378, %v3338, %v2790
        %v3386 = vsel %vm3378, %v3341, %v2792
        %v3388 = vsel %vm3378, %v3344, %v2794
        %v3390 = vsel %vm3378, %v3347, %v2796
        %v3392 = vsel %vm3378, %v3350, %v2798
        %v3394 = vsel %vm3378, %v3353, %v2800
        %v3396 = vsel %vm3378, %v3356, %v2802
        %v3398 = vsel %vm3378, %v3359, %v2804
        %v3400 = vsel %vm3378, %v3362, %v2806
        %v3402 = vsel %vm3378, %v3365, %v2808
        %v3404 = vsel %vm3378, %v3368, %v2810
        %v3406 = vsel %vm3378, %v3371, %v2812
        %v3408 = vsel %vm3378, %v3374, %v2814
        %v3410 = vsel %vm3378, %v3377, %v2816
        %vm3411 = vcmask 97280
        %v3413 = vsel %vm3411, %v3380, %v2882
        %v3415 = vsel %vm3411, %v3382, %v2884
        %v3417 = vsel %vm3411, %v3384, %v2886
        %v3419 = vsel %vm3411, %v3386, %v2888
        %v3421 = vsel %vm3411, %v3388, %v2890
        %v3423 = vsel %vm3411, %v3390, %v2892
        %v3425 = vsel %vm3411, %v3392, %v2894
        %v3427 = vsel %vm3411, %v3394, %v2896
        %v3429 = vsel %vm3411, %v3396, %v2898
        %v3431 = vsel %vm3411, %v3398, %v2900
        %v3433 = vsel %vm3411, %v3400, %v2902
        %v3435 = vsel %vm3411, %v3402, %v2904
        %v3437 = vsel %vm3411, %v3404, %v2906
        %v3439 = vsel %vm3411, %v3406, %v2908
        %v3441 = vsel %vm3411, %v3408, %v2910
        %v3443 = vsel %vm3411, %v3410, %v2912
        %vm3444 = vcmask 130048
        %v3446 = vsel %vm3444, %v3413, %v2962
        %v3448 = vsel %vm3444, %v3415, %v2964
        %v3450 = vsel %vm3444, %v3417, %v2966
        %v3452 = vsel %vm3444, %v3419, %v2968
        %v3454 = vsel %vm3444, %v3421, %v2970
        %v3456 = vsel %vm3444, %v3423, %v2972
        %v3458 = vsel %vm3444, %v3425, %v2974
        %v3460 = vsel %vm3444, %v3427, %v2976
        %v3462 = vsel %vm3444, %v3429, %v2978
        %v3464 = vsel %vm3444, %v3431, %v2980
        %v3466 = vsel %vm3444, %v3433, %v2982
        %v3468 = vsel %vm3444, %v3435, %v2984
        %v3470 = vsel %vm3444, %v3437, %v2986
        %v3472 = vsel %vm3444, %v3439, %v2988
        %v3474 = vsel %vm3444, %v3441, %v2990
        %v3476 = vsel %vm3444, %v3443, %v2992
        %vm3477 = vcmask 162816
        %v3479 = vsel %vm3477, %v3446, %v3042
        %v3481 = vsel %vm3477, %v3448, %v3044
        %v3483 = vsel %vm3477, %v3450, %v3046
        %v3485 = vsel %vm3477, %v3452, %v3048
        %v3487 = vsel %vm3477, %v3454, %v3050
        %v3489 = vsel %vm3477, %v3456, %v3052
        %v3491 = vsel %vm3477, %v3458, %v3054
        %v3493 = vsel %vm3477, %v3460, %v3056
        %v3495 = vsel %vm3477, %v3462, %v3058
        %v3497 = vsel %vm3477, %v3464, %v3060
        %v3499 = vsel %vm3477, %v3466, %v3062
        %v3501 = vsel %vm3477, %v3468, %v3064
        %v3503 = vsel %vm3477, %v3470, %v3066
        %v3505 = vsel %vm3477, %v3472, %v3068
        %v3507 = vsel %vm3477, %v3474, %v3070
        %v3509 = vsel %vm3477, %v3476, %v3072
        %vm3510 = vcmask 195584
        %v3512 = vsel %vm3510, %v3479, %v3138
        %v3514 = vsel %vm3510, %v3481, %v3140
        %v3516 = vsel %vm3510, %v3483, %v3142
        %v3518 = vsel %vm3510, %v3485, %v3144
        %v3520 = vsel %vm3510, %v3487, %v3146
        %v3522 = vsel %vm3510, %v3489, %v3148
        %v3524 = vsel %vm3510, %v3491, %v3150
        %v3526 = vsel %vm3510, %v3493, %v3152
        %v3528 = vsel %vm3510, %v3495, %v3154
        %v3530 = vsel %vm3510, %v3497, %v3156
        %v3532 = vsel %vm3510, %v3499, %v3158
        %v3534 = vsel %vm3510, %v3501, %v3160
        %v3536 = vsel %vm3510, %v3503, %v3162
        %v3538 = vsel %vm3510, %v3505, %v3164
        %v3540 = vsel %vm3510, %v3507, %v3166
        %v3542 = vsel %vm3510, %v3509, %v3168
        %vm3543 = vcmask 228352
        %v3545 = vsel %vm3543, %v3512, %v3218
        %v3547 = vsel %vm3543, %v3514, %v3220
        %v3549 = vsel %vm3543, %v3516, %v3222
        %v3551 = vsel %vm3543, %v3518, %v3224
        %v3553 = vsel %vm3543, %v3520, %v3226
        %v3555 = vsel %vm3543, %v3522, %v3228
        %v3557 = vsel %vm3543, %v3524, %v3230
        %v3559 = vsel %vm3543, %v3526, %v3232
        %v3561 = vsel %vm3543, %v3528, %v3234
        %v3563 = vsel %vm3543, %v3530, %v3236
        %v3565 = vsel %vm3543, %v3532, %v3238
        %v3567 = vsel %vm3543, %v3534, %v3240
        %v3569 = vsel %vm3543, %v3536, %v3242
        %v3571 = vsel %vm3543, %v3538, %v3244
        %v3573 = vsel %vm3543, %v3540, %v3246
        %v3575 = vsel %vm3543, %v3542, %v3248
        %vm3576 = vcmask 261120
        %v3578 = vsel %vm3576, %v3545, %v3298
        %v3580 = vsel %vm3576, %v3547, %v3300
        %v3582 = vsel %vm3576, %v3549, %v3302
        %v3584 = vsel %vm3576, %v3551, %v3304
        %v3586 = vsel %vm3576, %v3553, %v3306
        %v3588 = vsel %vm3576, %v3555, %v3308
        %v3590 = vsel %vm3576, %v3557, %v3310
        %v3592 = vsel %vm3576, %v3559, %v3312
        %v3594 = vsel %vm3576, %v3561, %v3314
        %v3596 = vsel %vm3576, %v3563, %v3316
        %v3598 = vsel %vm3576, %v3565, %v3318
        %v3600 = vsel %vm3576, %v3567, %v3320
        %v3602 = vsel %vm3576, %v3569, %v3322
        %v3604 = vsel %vm3576, %v3571, %v3324
        %v3606 = vsel %vm3576, %v3573, %v3326
        %v3608 = vsel %vm3576, %v3575, %v3328
        %v3609 = vld [vmem:[%s1] sm:$0xf]
        %v3610 = vld [vmem:[%s1 + $0x4] sm:$0xf]
        %v3611 = vld [vmem:[%s1 + $0x8] sm:$0xf]
        %v3612 = vld [vmem:[%s1 + $0xc] sm:$0xf]
        %v3613 = vld [vmem:[%s1 + $0x10] sm:$0x3]
        %v3619 = vunpack.c.l.b16 %v3609
        %v3620 = vunpack.c.l.b16 %v3610
        %v3621 = vunpack.c.l.b16 %v3611
        %v3622 = vunpack.c.l.b16 %v3612
        %v3623 = vunpack.c.l.b16 %v3613
        %v3624 = vpack.c.b16 %v3620, %v3619
        %v3625 = vpack.c.b16 %v3622, %v3621
        %v3626 = vpack.c.b16 %v3623, %v3623
        %vm3629 = vcmask 293888
        %v3630 = vsel %vm3629, %v3578, 0
        %v3632 = vsel %vm3629, %v3580, 0
        %v3634 = vsel %vm3629, %v3582, 0
        %v3636 = vsel %vm3629, %v3584, 0
        %v3638 = vsel %vm3629, %v3586, 0
        %v3640 = vsel %vm3629, %v3588, 0
        %v3642 = vsel %vm3629, %v3590, 0
        %v3644 = vsel %vm3629, %v3592, 0
        %v3646 = vsel %vm3629, %v3594, 0
        %v3648 = vsel %vm3629, %v3596, 0
        %v3650 = vsel %vm3629, %v3598, 0
        %v3652 = vsel %vm3629, %v3600, 0
        %v3654 = vsel %vm3629, %v3602, 0
        %v3656 = vsel %vm3629, %v3604, 0
        %v3658 = vsel %vm3629, %v3606, 0
        %v3660 = vsel %vm3629, %v3608, 0
        %vm3662 = vcmask 1041408
        %v3664 = vsel %vm3662, %v3626, 0
        %3666 = vmatprep.subr.bf16.mxu0 0
        %3667 = vmatpush1.bf16.msra.mxu0 %v3624
        %3668 = vmatprep.subr.bf16.mxu0 0
        %3669 = vmatpush1.bf16.msra.mxu0 %v3625
        %3670 = vmatprep.subr.bf16.mxu0 0
        %3671 = vmatpush1.bf16.msra.mxu0 %v3664
        %3672 = vmatprep.subr.bf16.mxu0 0
        %3673 = vmatpush1.bf16.msra.mxu0 0
        %3674 = vmatprep.subr.bf16.mxu0 0
        %3675 = vmatpush1.bf16.msra.mxu0 0
        %3676 = vmatprep.subr.bf16.mxu0 0
        %3677 = vmatpush1.bf16.msra.mxu0 0
        %3678 = vmatprep.subr.bf16.mxu0 0
        %3679 = vmatpush1.bf16.msra.mxu0 0
        %3680 = vmatprep.subr.bf16.mxu0 0
        %3681 = vmatpush1.bf16.msra.mxu0 0
        %3682 = vmatprep.subr.bf16.mxu0 0
        %3683 = vmatpush1.bf16.msra.mxu0 0
        %3684 = vmatprep.subr.bf16.mxu0 0
        %3685 = vmatpush1.bf16.msra.mxu0 0
        %3686 = vmatprep.subr.bf16.mxu0 0
        %3687 = vmatpush1.bf16.msra.mxu0 0
        %3688 = vmatprep.subr.bf16.mxu0 0
        %3689 = vmatpush1.bf16.msra.mxu0 0
        %3690 = vmatprep.subr.bf16.mxu0 0
        %3691 = vmatpush1.bf16.msra.mxu0 0
        %3692 = vmatprep.subr.bf16.mxu0 0
        %3693 = vmatpush1.bf16.msra.mxu0 0
        %3694 = vmatprep.subr.bf16.mxu0 0
        %3695 = vmatpush1.bf16.msra.mxu0 0
        %3696 = vmatprep.subr.bf16.mxu0 0
        %3697 = vmatpush1.bf16.msra.mxu0 0
        %3698 = vmatprep.mubr.bf16.mxu0 0
        %3699 = vmatmul.mubr.bf16.gmra.mrb[0].mxu0 %v3630
        %v3700 = vpop.f32.mrb[0].mxu0
        %v3701 = vadd.f32 0.0, %v3700
        %v3702 = vpop.f32.mrb[0].mxu0
        %v3703 = vpop.f32.mrb[0].mxu0
        %v3704 = vadd.f32 0.0, %v3703
        %v3705 = vpop.f32.mrb[0].mxu0
        %3706 = vmatprep.mubr.bf16.mxu0 0
        %3707 = vmatmul.mubr.bf16.gmra.mrb[0].mxu0 %v3632
        %v3708 = vpop.f32.mrb[0].mxu0
        %v3709 = vadd.f32 0.0, %v3708
        %v3710 = vpop.f32.mrb[0].mxu0
        %v3711 = vpop.f32.mrb[0].mxu0
        %v3712 = vadd.f32 0.0, %v3711
        %v3713 = vpop.f32.mrb[0].mxu0
        %3714 = vmatprep.mubr.bf16.mxu0 0
        %3715 = vmatmul.mubr.bf16.gmra.mrb[0].mxu0 %v3634
        %v3716 = vpop.f32.mrb[0].mxu0
        %v3717 = vadd.f32 0.0, %v3716
        %v3718 = vpop.f32.mrb[0].mxu0
        %v3719 = vpop.f32.mrb[0].mxu0
        %v3720 = vadd.f32 0.0, %v3719
        %v3721 = vpop.f32.mrb[0].mxu0
        %3722 = vmatprep.mubr.bf16.mxu0 0
        %3723 = vmatmul.mubr.bf16.gmra.mrb[0].mxu0 %v3636
        %v3724 = vpop.f32.mrb[0].mxu0
        %v3725 = vadd.f32 0.0, %v3724
        %v3726 = vpop.f32.mrb[0].mxu0
        %v3727 = vpop.f32.mrb[0].mxu0
        %v3728 = vadd.f32 0.0, %v3727
        %v3729 = vpop.f32.mrb[0].mxu0
        %3730 = vmatprep.mubr.bf16.mxu0 0
        %3731 = vmatmul.mubr.bf16.gmra.mrb[0].mxu0 %v3638
        %v3732 = vpop.f32.mrb[0].mxu0
        %v3733 = vadd.f32 0.0, %v3732
        %v3734 = vpop.f32.mrb[0].mxu0
        %v3735 = vpop.f32.mrb[0].mxu0
        %v3736 = vadd.f32 0.0, %v3735
        %v3737 = vpop.f32.mrb[0].mxu0
        %3738 = vmatprep.mubr.bf16.mxu0 0
        %3739 = vmatmul.mubr.bf16.gmra.mrb[0].mxu0 %v3640
        %v3740 = vpop.f32.mrb[0].mxu0
        %v3741 = vadd.f32 0.0, %v3740
        %v3742 = vpop.f32.mrb[0].mxu0
        %v3743 = vpop.f32.mrb[0].mxu0
        %v3744 = vadd.f32 0.0, %v3743
        %v3745 = vpop.f32.mrb[0].mxu0
        %3746 = vmatprep.mubr.bf16.mxu0 0
        %3747 = vmatmul.mubr.bf16.gmra.mrb[0].mxu0 %v3642
        %v3748 = vpop.f32.mrb[0].mxu0
        %v3749 = vadd.f32 0.0, %v3748
        %v3750 = vpop.f32.mrb[0].mxu0
        %v3751 = vpop.f32.mrb[0].mxu0
        %v3752 = vadd.f32 0.0, %v3751
        %v3753 = vpop.f32.mrb[0].mxu0
        %3754 = vmatprep.mubr.bf16.mxu0 0
        %3755 = vmatmul.mubr.bf16.gmra.mrb[0].mxu0 %v3644
        %v3756 = vpop.f32.mrb[0].mxu0
        %v3757 = vadd.f32 0.0, %v3756
        %v3758 = vpop.f32.mrb[0].mxu0
        %v3759 = vpop.f32.mrb[0].mxu0
        %v3760 = vadd.f32 0.0, %v3759
        %v3761 = vpop.f32.mrb[0].mxu0
        %3762 = vmatprep.mubr.bf16.mxu0 0
        %3763 = vmatmul.mubr.bf16.gmra.mrb[0].mxu0 %v3646
        %v3764 = vpop.f32.mrb[0].mxu0
        %v3765 = vadd.f32 0.0, %v3764
        %v3766 = vpop.f32.mrb[0].mxu0
        %v3767 = vpop.f32.mrb[0].mxu0
        %v3768 = vadd.f32 0.0, %v3767
        %v3769 = vpop.f32.mrb[0].mxu0
        %3770 = vmatprep.mubr.bf16.mxu0 0
        %3771 = vmatmul.mubr.bf16.gmra.mrb[0].mxu0 %v3648
        %v3772 = vpop.f32.mrb[0].mxu0
        %v3773 = vadd.f32 0.0, %v3772
        %v3774 = vpop.f32.mrb[0].mxu0
        %v3775 = vpop.f32.mrb[0].mxu0
        %v3776 = vadd.f32 0.0, %v3775
        %v3777 = vpop.f32.mrb[0].mxu0
        %3778 = vmatprep.mubr.bf16.mxu0 0
        %3779 = vmatmul.mubr.bf16.gmra.mrb[0].mxu0 %v3650
        %v3780 = vpop.f32.mrb[0].mxu0
        %v3781 = vadd.f32 0.0, %v3780
        %v3782 = vpop.f32.mrb[0].mxu0
        %v3783 = vpop.f32.mrb[0].mxu0
        %v3784 = vadd.f32 0.0, %v3783
        %v3785 = vpop.f32.mrb[0].mxu0
        %3786 = vmatprep.mubr.bf16.mxu0 0
        %3787 = vmatmul.mubr.bf16.gmra.mrb[0].mxu0 %v3652
        %v3788 = vpop.f32.mrb[0].mxu0
        %v3789 = vadd.f32 0.0, %v3788
        %v3790 = vpop.f32.mrb[0].mxu0
        %v3791 = vpop.f32.mrb[0].mxu0
        %v3792 = vadd.f32 0.0, %v3791
        %v3793 = vpop.f32.mrb[0].mxu0
        %3794 = vmatprep.mubr.bf16.mxu0 0
        %3795 = vmatmul.mubr.bf16.gmra.mrb[0].mxu0 %v3654
        %v3796 = vpop.f32.mrb[0].mxu0
        %v3797 = vadd.f32 0.0, %v3796
        %v3798 = vpop.f32.mrb[0].mxu0
        %v3799 = vpop.f32.mrb[0].mxu0
        %v3800 = vadd.f32 0.0, %v3799
        %v3801 = vpop.f32.mrb[0].mxu0
        %3802 = vmatprep.mubr.bf16.mxu0 0
        %3803 = vmatmul.mubr.bf16.gmra.mrb[0].mxu0 %v3656
        %v3804 = vpop.f32.mrb[0].mxu0
        %v3805 = vadd.f32 0.0, %v3804
        %v3806 = vpop.f32.mrb[0].mxu0
        %v3807 = vpop.f32.mrb[0].mxu0
        %v3808 = vadd.f32 0.0, %v3807
        %v3809 = vpop.f32.mrb[0].mxu0
        %3810 = vmatprep.mubr.bf16.mxu0 0
        %3811 = vmatmul.mubr.bf16.gmra.mrb[0].mxu0 %v3658
        %v3812 = vpop.f32.mrb[0].mxu0
        %v3813 = vadd.f32 0.0, %v3812
        %v3814 = vpop.f32.mrb[0].mxu0
        %v3815 = vpop.f32.mrb[0].mxu0
        %v3816 = vadd.f32 0.0, %v3815
        %v3817 = vpop.f32.mrb[0].mxu0
        %3818 = vmatprep.mubr.bf16.mxu0 0
        %3819 = vmatmul.mubr.bf16.gmra.mrb[0].mxu0 %v3660
        %v3820 = vpop.f32.mrb[0].mxu0
        %v3821 = vadd.f32 0.0, %v3820
        %v3822 = vpop.f32.mrb[0].mxu0
        %v3823 = vpop.f32.mrb[0].mxu0
        %v3824 = vadd.f32 0.0, %v3823
        %v3825 = vpop.f32.mrb[0].mxu0
        %3826 = vdwg.mxu0
        %v3827 = vpack.c.bf16 %v3704, %v3701
        %v3828 = vpack.c.bf16 %v3712, %v3709
        %v3829 = vpack.c.bf16 %v3720, %v3717
        %v3830 = vpack.c.bf16 %v3728, %v3725
        %v3831 = vpack.c.bf16 %v3736, %v3733
        %v3832 = vpack.c.bf16 %v3744, %v3741
        %v3833 = vpack.c.bf16 %v3752, %v3749
        %v3834 = vpack.c.bf16 %v3760, %v3757
        %v3835 = vpack.c.bf16 %v3768, %v3765
        %v3836 = vpack.c.bf16 %v3776, %v3773
        %v3837 = vpack.c.bf16 %v3784, %v3781
        %v3838 = vpack.c.bf16 %v3792, %v3789
        %v3839 = vpack.c.bf16 %v3800, %v3797
        %v3840 = vpack.c.bf16 %v3808, %v3805
        %v3841 = vpack.c.bf16 %v3816, %v3813
        %v3842 = vpack.c.bf16 %v3824, %v3821
        %v3843 = vunpack.c.l.bf16 %v3827
        %v3844 = vunpack.c.h.bf16 %v3827
        %v3845 = vunpack.c.l.bf16 %v3828
        %v3846 = vunpack.c.h.bf16 %v3828
        %v3847 = vunpack.c.l.bf16 %v3829
        %v3848 = vunpack.c.h.bf16 %v3829
        %v3849 = vunpack.c.l.bf16 %v3830
        %v3850 = vunpack.c.h.bf16 %v3830
        %v3851 = vunpack.c.l.bf16 %v3831
        %v3852 = vunpack.c.h.bf16 %v3831
        %v3853 = vunpack.c.l.bf16 %v3832
        %v3854 = vunpack.c.h.bf16 %v3832
        %v3855 = vunpack.c.l.bf16 %v3833
        %v3856 = vunpack.c.h.bf16 %v3833
        %v3857 = vunpack.c.l.bf16 %v3834
        %v3858 = vunpack.c.h.bf16 %v3834
        %v3859 = vunpack.c.l.bf16 %v3835
        %v3860 = vunpack.c.h.bf16 %v3835
        %v3861 = vunpack.c.l.bf16 %v3836
        %v3862 = vunpack.c.h.bf16 %v3836
        %v3863 = vunpack.c.l.bf16 %v3837
        %v3864 = vunpack.c.h.bf16 %v3837
        %v3865 = vunpack.c.l.bf16 %v3838
        %v3866 = vunpack.c.h.bf16 %v3838
        %v3867 = vunpack.c.l.bf16 %v3839
        %v3868 = vunpack.c.h.bf16 %v3839
        %v3869 = vunpack.c.l.bf16 %v3840
        %v3870 = vunpack.c.h.bf16 %v3840
        %v3871 = vunpack.c.l.bf16 %v3841
        %v3872 = vunpack.c.h.bf16 %v3841
        %v3873 = vunpack.c.l.bf16 %v3842
        %v3874 = vunpack.c.h.bf16 %v3842
        %v3875 = vsel %vm3329, %v3843, 0.0
        %v3876 = vsel %vm3329, %v3844, 0.0
        %v3877 = vadd.f32 %v3875, %v3876
        %v3878 = vsel %vm3329, %v3845, 0.0
        %v3879 = vadd.f32 %v3877, %v3878
        %v3880 = vsel %vm3329, %v3846, 0.0
        %v3881 = vadd.f32 %v3879, %v3880
        %v3882 = vsel %vm3329, %v3847, 0.0
        %v3883 = vadd.f32 %v3881, %v3882
        %v3884 = vsel %vm3329, %v3848, 0.0
        %v3885 = vadd.f32 %v3883, %v3884
        %v3886 = vsel %vm3329, %v3849, 0.0
        %v3887 = vadd.f32 %v3885, %v3886
        %v3888 = vsel %vm3329, %v3850, 0.0
        %v3889 = vadd.f32 %v3887, %v3888
        %v3890 = vsel %vm3329, %v3851, 0.0
        %v3891 = vadd.f32 %v3889, %v3890
        %v3892 = vsel %vm3329, %v3852, 0.0
        %v3893 = vadd.f32 %v3891, %v3892
        %v3894 = vsel %vm3329, %v3853, 0.0
        %v3895 = vadd.f32 %v3893, %v3894
        %v3896 = vsel %vm3329, %v3854, 0.0
        %v3897 = vadd.f32 %v3895, %v3896
        %v3898 = vsel %vm3329, %v3855, 0.0
        %v3899 = vadd.f32 %v3897, %v3898
        %v3900 = vsel %vm3329, %v3856, 0.0
        %v3901 = vadd.f32 %v3899, %v3900
        %v3902 = vsel %vm3329, %v3857, 0.0
        %v3903 = vadd.f32 %v3901, %v3902
        %v3904 = vsel %vm3329, %v3858, 0.0
        %v3905 = vadd.f32 %v3903, %v3904
        %v3906 = vsel %vm3329, %v3859, 0.0
        %v3907 = vadd.f32 %v3905, %v3906
        %v3908 = vsel %vm3329, %v3860, 0.0
        %v3909 = vadd.f32 %v3907, %v3908
        %v3910 = vsel %vm3329, %v3861, 0.0
        %v3911 = vadd.f32 %v3909, %v3910
        %v3912 = vsel %vm3329, %v3862, 0.0
        %v3913 = vadd.f32 %v3911, %v3912
        %v3914 = vsel %vm3329, %v3863, 0.0
        %v3915 = vadd.f32 %v3913, %v3914
        %v3916 = vsel %vm3329, %v3864, 0.0
        %v3917 = vadd.f32 %v3915, %v3916
        %v3918 = vsel %vm3329, %v3865, 0.0
        %v3919 = vadd.f32 %v3917, %v3918
        %v3920 = vsel %vm3329, %v3866, 0.0
        %v3921 = vadd.f32 %v3919, %v3920
        %v3922 = vsel %vm3329, %v3867, 0.0
        %v3923 = vadd.f32 %v3921, %v3922
        %v3924 = vsel %vm3329, %v3868, 0.0
        %v3925 = vadd.f32 %v3923, %v3924
        %v3926 = vsel %vm3329, %v3869, 0.0
        %v3927 = vadd.f32 %v3925, %v3926
        %v3928 = vsel %vm3329, %v3870, 0.0
        %v3929 = vadd.f32 %v3927, %v3928
        %v3930 = vsel %vm3329, %v3871, 0.0
        %v3931 = vadd.f32 %v3929, %v3930
        %v3932 = vsel %vm3329, %v3872, 0.0
        %v3933 = vadd.f32 %v3931, %v3932
        %v3934 = vsel %vm3329, %v3873, 0.0
        %v3935 = vadd.f32 %v3933, %v3934
        %v3936 = vsel %vm3329, %v3874, 0.0
        %v3937 = vadd.f32 %v3935, %v3936
        %v3938 = vrot.slane %v3937, 4
        %v3939 = vadd.f32 %v3937, %v3938
        %v3940 = vrot.slane %v3939, 2
        %v3941 = vadd.f32 %v3939, %v3940
        %v3942 = vrot.slane %v3941, 1
        %v3943 = vadd.f32 %v3941, %v3942
        %v3944 = vmul.f32 %v3843, %v3843
        %v3945 = vmul.f32 %v3844, %v3844
        %v3946 = vmul.f32 %v3845, %v3845
        %v3947 = vmul.f32 %v3846, %v3846
        %v3948 = vmul.f32 %v3847, %v3847
        %v3949 = vmul.f32 %v3848, %v3848
        %v3950 = vmul.f32 %v3849, %v3849
        %v3951 = vmul.f32 %v3850, %v3850
        %v3952 = vmul.f32 %v3851, %v3851
        %v3953 = vmul.f32 %v3852, %v3852
        %v3954 = vmul.f32 %v3853, %v3853
        %v3955 = vmul.f32 %v3854, %v3854
        %v3956 = vmul.f32 %v3855, %v3855
        %v3957 = vmul.f32 %v3856, %v3856
        %v3958 = vmul.f32 %v3857, %v3857
        %v3959 = vmul.f32 %v3858, %v3858
        %v3960 = vmul.f32 %v3859, %v3859
        %v3961 = vmul.f32 %v3860, %v3860
        %v3962 = vmul.f32 %v3861, %v3861
        %v3963 = vmul.f32 %v3862, %v3862
        %v3964 = vmul.f32 %v3863, %v3863
        %v3965 = vmul.f32 %v3864, %v3864
        %v3966 = vmul.f32 %v3865, %v3865
        %v3967 = vmul.f32 %v3866, %v3866
        %v3968 = vmul.f32 %v3867, %v3867
        %v3969 = vmul.f32 %v3868, %v3868
        %v3970 = vmul.f32 %v3869, %v3869
        %v3971 = vmul.f32 %v3870, %v3870
        %v3972 = vmul.f32 %v3871, %v3871
        %v3973 = vmul.f32 %v3872, %v3872
        %v3974 = vmul.f32 %v3873, %v3873
        %v3975 = vmul.f32 %v3874, %v3874
        %v3976 = vsel %vm3329, %v3944, 0.0
        %v3977 = vsel %vm3329, %v3945, 0.0
        %v3978 = vadd.f32 %v3976, %v3977
        %v3979 = vsel %vm3329, %v3946, 0.0
        %v3980 = vadd.f32 %v3978, %v3979
        %v3981 = vsel %vm3329, %v3947, 0.0
        %v3982 = vadd.f32 %v3980, %v3981
        %v3983 = vsel %vm3329, %v3948, 0.0
        %v3984 = vadd.f32 %v3982, %v3983
        %v3985 = vsel %vm3329, %v3949, 0.0
        %v3986 = vadd.f32 %v3984, %v3985
        %v3987 = vsel %vm3329, %v3950, 0.0
        %v3988 = vadd.f32 %v3986, %v3987
        %v3989 = vsel %vm3329, %v3951, 0.0
        %v3990 = vadd.f32 %v3988, %v3989
        %v3991 = vsel %vm3329, %v3952, 0.0
        %v3992 = vadd.f32 %v3990, %v3991
        %v3993 = vsel %vm3329, %v3953, 0.0
        %v3994 = vadd.f32 %v3992, %v3993
        %v3995 = vsel %vm3329, %v3954, 0.0
        %v3996 = vadd.f32 %v3994, %v3995
        %v3997 = vsel %vm3329, %v3955, 0.0
        %v3998 = vadd.f32 %v3996, %v3997
        %v3999 = vsel %vm3329, %v3956, 0.0
        %v4000 = vadd.f32 %v3998, %v3999
        %v4001 = vsel %vm3329, %v3957, 0.0
        %v4002 = vadd.f32 %v4000, %v4001
        %v4003 = vsel %vm3329, %v3958, 0.0
        %v4004 = vadd.f32 %v4002, %v4003
        %v4005 = vsel %vm3329, %v3959, 0.0
        %v4006 = vadd.f32 %v4004, %v4005
        %v4007 = vsel %vm3329, %v3960, 0.0
        %v4008 = vadd.f32 %v4006, %v4007
        %v4009 = vsel %vm3329, %v3961, 0.0
        %v4010 = vadd.f32 %v4008, %v4009
        %v4011 = vsel %vm3329, %v3962, 0.0
        %v4012 = vadd.f32 %v4010, %v4011
        %v4013 = vsel %vm3329, %v3963, 0.0
        %v4014 = vadd.f32 %v4012, %v4013
        %v4015 = vsel %vm3329, %v3964, 0.0
        %v4016 = vadd.f32 %v4014, %v4015
        %v4017 = vsel %vm3329, %v3965, 0.0
        %v4018 = vadd.f32 %v4016, %v4017
        %v4019 = vsel %vm3329, %v3966, 0.0
        %v4020 = vadd.f32 %v4018, %v4019
        %v4021 = vsel %vm3329, %v3967, 0.0
        %v4022 = vadd.f32 %v4020, %v4021
        %v4023 = vsel %vm3329, %v3968, 0.0
        %v4024 = vadd.f32 %v4022, %v4023
        %v4025 = vsel %vm3329, %v3969, 0.0
        %v4026 = vadd.f32 %v4024, %v4025
        %v4027 = vsel %vm3329, %v3970, 0.0
        %v4028 = vadd.f32 %v4026, %v4027
        %v4029 = vsel %vm3329, %v3971, 0.0
        %v4030 = vadd.f32 %v4028, %v4029
        %v4031 = vsel %vm3329, %v3972, 0.0
        %v4032 = vadd.f32 %v4030, %v4031
        %v4033 = vsel %vm3329, %v3973, 0.0
        %v4034 = vadd.f32 %v4032, %v4033
        %v4035 = vsel %vm3329, %v3974, 0.0
        %v4036 = vadd.f32 %v4034, %v4035
        %v4037 = vsel %vm3329, %v3975, 0.0
        %v4038 = vadd.f32 %v4036, %v4037
        %v4039 = vrot.slane %v4038, 4
        %v4040 = vadd.f32 %v4038, %v4039
        %v4041 = vrot.slane %v4040, 2
        %v4042 = vadd.f32 %v4040, %v4041
        %v4043 = vrot.slane %v4042, 1
        %v4044 = vadd.f32 %v4042, %v4043
        %vm4045 = vcmask 1040384
        %v4046 = vsel %vm4045, %v3943, %v4044
        %vm4047 = vcmask 25600
        %4048 = vst.msk [vmem:[%s171] sm:$0x3] %vm4047, %v4046
        %v4065 = vunpack.c.l.b16 %v3827
        %v4066 = vunpack.c.h.b16 %v3827
        %v4067 = vunpack.c.l.b16 %v3828
        %v4068 = vunpack.c.h.b16 %v3828
        %v4069 = vunpack.c.l.b16 %v3829
        %v4070 = vunpack.c.h.b16 %v3829
        %v4071 = vunpack.c.l.b16 %v3830
        %v4072 = vunpack.c.h.b16 %v3830
        %v4073 = vunpack.c.l.b16 %v3831
        %v4074 = vunpack.c.h.b16 %v3831
        %v4075 = vunpack.c.l.b16 %v3832
        %v4076 = vunpack.c.h.b16 %v3832
        %v4077 = vunpack.c.l.b16 %v3833
        %v4078 = vunpack.c.h.b16 %v3833
        %v4079 = vunpack.c.l.b16 %v3834
        %v4080 = vunpack.c.h.b16 %v3834
        %v4081 = vunpack.c.l.b16 %v3835
        %v4082 = vunpack.c.h.b16 %v3835
        %v4083 = vunpack.c.l.b16 %v3836
        %v4084 = vunpack.c.h.b16 %v3836
        %v4085 = vunpack.c.l.b16 %v3837
        %v4086 = vunpack.c.h.b16 %v3837
        %v4087 = vunpack.c.l.b16 %v3838
        %v4088 = vunpack.c.h.b16 %v3838
        %v4089 = vunpack.c.l.b16 %v3839
        %v4090 = vunpack.c.h.b16 %v3839
        %v4091 = vunpack.c.l.b16 %v3840
        %v4092 = vunpack.c.h.b16 %v3840
        %v4093 = vunpack.c.l.b16 %v3841
        %v4094 = vunpack.c.h.b16 %v3841
        %v4095 = vunpack.c.l.b16 %v3842
        %v4096 = vunpack.c.h.b16 %v3842
        %v4097 = vpack.c.b16 %v4065, %v4065
        %v4098 = vpack.c.b16 %v4066, %v4066
        %v4099 = vpack.c.b16 %v4067, %v4067
        %v4100 = vpack.c.b16 %v4068, %v4068
        %v4101 = vpack.c.b16 %v4069, %v4069
        %v4102 = vpack.c.b16 %v4070, %v4070
        %v4103 = vpack.c.b16 %v4071, %v4071
        %v4104 = vpack.c.b16 %v4072, %v4072
        %v4105 = vpack.c.b16 %v4073, %v4073
        %v4106 = vpack.c.b16 %v4074, %v4074
        %v4107 = vpack.c.b16 %v4075, %v4075
        %v4108 = vpack.c.b16 %v4076, %v4076
        %v4109 = vpack.c.b16 %v4077, %v4077
        %v4110 = vpack.c.b16 %v4078, %v4078
        %v4111 = vpack.c.b16 %v4079, %v4079
        %v4112 = vpack.c.b16 %v4080, %v4080
        %v4113 = vpack.c.b16 %v4081, %v4081
        %v4114 = vpack.c.b16 %v4082, %v4082
        %v4115 = vpack.c.b16 %v4083, %v4083
        %v4116 = vpack.c.b16 %v4084, %v4084
        %v4117 = vpack.c.b16 %v4085, %v4085
        %v4118 = vpack.c.b16 %v4086, %v4086
        %v4119 = vpack.c.b16 %v4087, %v4087
        %v4120 = vpack.c.b16 %v4088, %v4088
        %v4121 = vpack.c.b16 %v4089, %v4089
        %v4122 = vpack.c.b16 %v4090, %v4090
        %v4123 = vpack.c.b16 %v4091, %v4091
        %v4124 = vpack.c.b16 %v4092, %v4092
        %v4125 = vpack.c.b16 %v4093, %v4093
        %v4126 = vpack.c.b16 %v4094, %v4094
        %v4127 = vpack.c.b16 %v4095, %v4095
        %v4128 = vpack.c.b16 %v4096, %v4096
        %4161 = vst.msk [vmem:[%s181] sm:$0xf] %vm215, %v4097
        %4162 = vst.msk [vmem:[%s181 + $0x4] sm:$0xf] %vm215, %v4098
        %4163 = vst.msk [vmem:[%s181 + $0x8] sm:$0xf] %vm215, %v4099
        %4164 = vst.msk [vmem:[%s181 + $0xc] sm:$0xf] %vm215, %v4100
        %4165 = vst.msk [vmem:[%s181 + $0x10] sm:$0xf] %vm215, %v4101
        %4166 = vst.msk [vmem:[%s181 + $0x14] sm:$0xf] %vm215, %v4102
        %4167 = vst.msk [vmem:[%s181 + $0x18] sm:$0xf] %vm215, %v4103
        %4168 = vst.msk [vmem:[%s181 + $0x1c] sm:$0xf] %vm215, %v4104
        %4169 = vst.msk [vmem:[%s181 + $0x20] sm:$0xf] %vm215, %v4105
        %4170 = vst.msk [vmem:[%s181 + $0x24] sm:$0xf] %vm215, %v4106
        %4171 = vst.msk [vmem:[%s181 + $0x28] sm:$0xf] %vm215, %v4107
        %4172 = vst.msk [vmem:[%s181 + $0x2c] sm:$0xf] %vm215, %v4108
        %4173 = vst.msk [vmem:[%s181 + $0x30] sm:$0xf] %vm215, %v4109
        %4174 = vst.msk [vmem:[%s181 + $0x34] sm:$0xf] %vm215, %v4110
        %4175 = vst.msk [vmem:[%s181 + $0x38] sm:$0xf] %vm215, %v4111
        %4176 = vst.msk [vmem:[%s181 + $0x3c] sm:$0xf] %vm215, %v4112
        %4177 = vst.msk [vmem:[%s181 + $0x40] sm:$0xf] %vm215, %v4113
        %4178 = vst.msk [vmem:[%s181 + $0x44] sm:$0xf] %vm215, %v4114
        %4179 = vst.msk [vmem:[%s181 + $0x48] sm:$0xf] %vm215, %v4115
        %4180 = vst.msk [vmem:[%s181 + $0x4c] sm:$0xf] %vm215, %v4116
        %4181 = vst.msk [vmem:[%s181 + $0x50] sm:$0xf] %vm215, %v4117
        %4182 = vst.msk [vmem:[%s181 + $0x54] sm:$0xf] %vm215, %v4118
        %4183 = vst.msk [vmem:[%s181 + $0x58] sm:$0xf] %vm215, %v4119
        %4184 = vst.msk [vmem:[%s181 + $0x5c] sm:$0xf] %vm215, %v4120
        %4185 = vst.msk [vmem:[%s181 + $0x60] sm:$0xf] %vm215, %v4121
        %4186 = vst.msk [vmem:[%s181 + $0x64] sm:$0xf] %vm215, %v4122
        %4187 = vst.msk [vmem:[%s181 + $0x68] sm:$0xf] %vm215, %v4123
        %4188 = vst.msk [vmem:[%s181 + $0x6c] sm:$0xf] %vm215, %v4124
        %4189 = vst.msk [vmem:[%s181 + $0x70] sm:$0xf] %vm215, %v4125
        %4190 = vst.msk [vmem:[%s181 + $0x74] sm:$0xf] %vm215, %v4126
        %4191 = vst.msk [vmem:[%s181 + $0x78] sm:$0xf] %vm215, %v4127
        %4192 = vst.msk [vmem:[%s181 + $0x7c] sm:$0xf] %vm215, %v4128
        %p4193 = scmp.lt.s32.totalorder %s18, 1
        %s4194 = scalar_select %p4193, %s18, 1
        %s4195 = smul.addr %s4194, 32
        %s4196 = smul.addr %s4195, 4
        %s4197 = scalar_lea.vmem %s2, %s4196
        %s4198 = sand.u32 %s99, 1
        %s4199 = scalar_lea.sflag [#allocation4], %s4198
        %s4200 = sand.u32 %s99, 1
        %s4201 = smul.addr %s4200, 2
        %s4202 = scalar_lea.vmem [#allocation3], %s4201
        // Predicated region
        $region29: #{tpu_custom_call.1} parent=27 // pred_check
          %p4203 = pneg %p83
        $region30: #{tpu_custom_call.1} parent=27 // pred_check_branch
          %4205 = sbr.rel (%p4203) target = $region32
        $region31: #{tpu_custom_call.1} parent=27 // pred_region
          _
        $region32: #{tpu_custom_call.1} parent=27 // pred_fallthru
          _
        // Predicated region
        $region33: #{tpu_custom_call.1} parent=27 // pred_check
          %p4206 = pneg %p109
        $region34: #{tpu_custom_call.1} parent=27 // pred_check_branch
          %4208 = sbr.rel (%p4206) target = $region36
        $region35: #{tpu_custom_call.1} parent=27 // pred_region
          %s4210 = ssub.s32 32, 32
          %4211 = vsyncadd %s4199, %s4210
          %s4212 = smul.addr %s18, 32
          %s4213 = scalar_lea.hbm %s3, %s4212
          %s4215 = sshll.u32 %s4202, 4
          %s4216 = int_to_ptr.vmem [resolvable:$true] %s4215
          %4218 = dma.vmem_to_hbm [thread:$0]  %s4216, 32, %s4213, %s4199
        $region36: #{tpu_custom_call.1} parent=27 // pred_fallthru
          _
      $region28: #{tpu_custom_call.1} parent=5 // pred_fallthru
        _
      %p4219 = scmp.le.s32.totalorder 2, %s13
      // Predicated region
      $region37: #{tpu_custom_call.1} parent=5 // pred_check
        %p4220 = pneg %p4219
      $region38: #{tpu_custom_call.1} parent=5 // pred_check_branch
        %4222 = sbr.rel (%p4220) target = $region40
      $region39: #{tpu_custom_call.1} parent=5 // pred_region
        %s4223 = ssub.s32 %s13, 2
        // Predicated region
        $region41: #{tpu_custom_call.1} parent=39 // pred_check
          %p4224 = pneg %p89
        $region42: #{tpu_custom_call.1} parent=39 // pred_check_branch
          %4226 = sbr.rel (%p4224) target = $region44
        $region43: #{tpu_custom_call.1} parent=39 // pred_region
          %p4227 = scmp.lt.s32.totalorder %s19, 1
          %s4228 = scalar_select %p4227, %s19, 1
          %s4229 = smul.addr %s4228, 32
          %s4230 = smul.addr %s4229, 4
          %s4231 = scalar_lea.vmem %s2, %s4230
        $region44: #{tpu_custom_call.1} parent=39 // pred_fallthru
          _
        // Predicated region
        $region45: #{tpu_custom_call.1} parent=39 // pred_check
          %p4232 = pneg %p115
        $region46: #{tpu_custom_call.1} parent=39 // pred_check_branch
          %4234 = sbr.rel (%p4232) target = $region48
        $region47: #{tpu_custom_call.1} parent=39 // pred_region
          %s4235 = sand.u32 %s100, 1
          %s4236 = scalar_lea.sflag [#allocation4], %s4235
          %s4237 = sand.u32 %s100, 1
          %s4238 = smul.addr %s4237, 2
          %s4239 = scalar_lea.vmem [#allocation3], %s4238
          %4240 = dma.done %s4236, 32
        $region48: #{tpu_custom_call.1} parent=39 // pred_fallthru
          _
      $region40: #{tpu_custom_call.1} parent=5 // pred_fallthru
        _
    $region6: #{tpu_custom_call.1} parent=1 // loop_footer
      %s17 = sadd.s32 1, %s13
    $region7: #{tpu_custom_call.1} parent=1 // loop_footer_branch
      %12 = sbr.rel target = $region3
    $region8: #{tpu_custom_call.1} parent=1 // loop_exit
      _
    %4241 = vsyncpa [#allocation4], 1
    %s4242 = scalar_lea.sflag [#allocation4], 1
    %4243 = vsyncpa %s4242, 1

</llo_original>
